<compile_context>
chip_gen: v7x
topology: tpu7x:2x2x1
jax: 0.10.0
libtpu: 0.0.40
codegen_flags: <defaults>
</compile_context>

<pallas_src>
import numpy as np
import jax
import jax.numpy as jnp
from jax.experimental import pallas as pl
from jax.experimental.pallas import tpu as pltpu

F32 = jnp.float32
BF16 = jnp.bfloat16

# Order in which the constant (weight) arrays are passed to the kernel.
_ORDER = ("w1", "S1", "B2", "S2",
          "WR3", "B33", "B35", "W3p", "S3",
          "WR4", "B43", "B45", "W4p", "aff")


# ----------------------------------------------------------------------------
# Fused kernel
# ----------------------------------------------------------------------------
def _make_fused_kernel(cfg):
    C = cfg["C"]
    H1, W1 = cfg["H1"], cfg["W1"]
    H2, W2 = cfg["H2"], cfg["W2"]
    H3, W3 = cfg["H3"], cfg["W3"]
    H4, W4 = cfg["H4"], cfg["W4"]
    Cin3, Cin4 = cfg["Cin3"], cfg["Cin4"]
    c1_3, r3_3, c3_3, r5_3, c5_3, cp_3 = cfg["inc3"]
    c1_4, r3_4, c3_4, r5_4, c5_4, cp_4 = cfg["inc4"]
    aff_off = cfg["aff_off"]

    def _pool2x2(blocks, rp_ref, H, W, chans, S_ref):
        """MaxPool2d(2, stride=2) of channel-interleaved slabs.

        blocks: list of f32 [H, W*cb] slabs (one per channel block).  Row
        pooling = static row-pair maxes written into the `rp_ref` scratch;
        the W-direction compaction (and the block -> interleaved channel
        permutation) is folded into the constant 0/1 selection matmul S.
        Returns the pooled, channel-interleaved [H//2, (W//2)*sum(chans)] map.
        """
        loff = 0
        for blk, cb in zip(blocks, chans):
            for i in range(H // 2):
                rp_ref[i:i + 1, loff:loff + W * cb] = jnp.maximum(
                    blk[2 * i:2 * i + 1, :], blk[2 * i + 1:2 * i + 2, :])
            loff += W * cb
        out, roff, loff = None, 0, 0
        for cb in chans:
            # max over adjacent w pairs, kept un-compacted (valid at even w).
            ml = jnp.maximum(rp_ref[0:H // 2, loff:loff + (W - 1) * cb],
                             rp_ref[0:H // 2, loff + cb:loff + W * cb])
            part = jnp.dot(ml.astype(BF16),
                           S_ref[roff:roff + (W - 1) * cb, :],
                           preferred_element_type=F32)
            out = part if out is None else out + part
            loff += W * cb
            roff += (W - 1) * cb
        return out

    def _banded_conv(p_ref, B_ref, K, H, s, b):
        """KxK conv (stride 1) as K banded matmuls over a row-padded bf16 slab."""
        acc = jnp.zeros((H, B_ref.shape[2]), F32)
        for di in range(K):
            acc = acc + jnp.dot(p_ref[di:di + H, :], B_ref[di],
                                preferred_element_type=F32)
        return jnp.maximum(acc * s + b, 0.0)

    def _maxpool3x3(p_ref, H, W, Cc):
        """3x3/s1/p1 maxpool on a zero-padded interleaved slab (inputs >= 0)."""
        mp = p_ref[1:1 + H, Cc:(W + 1) * Cc]
        for di in range(3):
            for dj in range(3):
                if di == 1 and dj == 1:
                    continue
                mp = jnp.maximum(mp, p_ref[di:di + H, dj * Cc:(dj + W) * Cc])
        return mp

    def kernel(x_ref, w1_ref, S1_ref, B2_ref, S2_ref,
               WR3_ref, B33_ref, B35_ref, W3p_ref, S3_ref,
               WR4_ref, B43_ref, B45_ref, W4p_ref, aff_ref,
               out_ref,
               p1, rp, p2, p3, p33, p35, p4, p43, p45):

        def aff(name):
            o, n = aff_off[name]
            return aff_ref[0:1, o:o + n], aff_ref[1:2, o:o + n]

        # Zero the padded scratch slabs every step (cheap; stays correct when
        # the batch grid axis is split across TensorCores on v7x).
        for r in (p1, p2, p3, p33, p35, p4, p43, p45):
            r[...] = jnp.zeros_like(r)

        # ---- stage 1: depthwise 5x5 (pad 2) + BN + ReLU, on the VPU --------
        p1[2:2 + H1, 2 * C:(W1 + 2) * C] = x_ref[0]
        acc = jnp.zeros((H1, W1 * C), F32)
        t = 0
        for di in range(5):
            for dj in range(5):
                acc = acc + p1[di:di + H1, dj * C:(dj + W1) * C] * w1_ref[t:t + 1, :]
                t += 1
        s, b = aff("c1")
        y1 = jnp.maximum(acc * s + b, 0.0)                       # [H1, W1*C]

        # ---- maxpool 2x2/s2 + stage 2: grouped 3x3 (pad 1), banded MXU -----
        pooled1 = _pool2x2([y1], rp, H1, W1, (C,), S1_ref)       # [H2, W2*C]
        p2[1:1 + H2, :] = pooled1.astype(BF16)
        s, b = aff("c2")
        y2 = _banded_conv(p2, B2_ref, 3, H2, s, b)               # [H2, W2*2C]

        # ---- maxpool 2x2/s2 + inception block 3 -----------------------------
        x3 = _pool2x2([y2], rp, H2, W2, (2 * C,), S2_ref)        # [H3, W3*Cin3]
        x3b = x3.astype(BF16)
        p3[1:1 + H3, Cin3:(W3 + 1) * Cin3] = x3b
        sR, bR = aff("r3")
        red = jnp.dot(x3b, WR3_ref[...], preferred_element_type=F32)
        red = jnp.maximum(red * sR + bR, 0.0)                    # [H3, W3*(c1+r3+r5)]
        o1 = W3 * c1_3
        o2 = o1 + W3 * r3_3
        v1 = red[:, 0:o1]
        p33[1:1 + H3, :] = red[:, o1:o2].astype(BF16)
        p35[2:2 + H3, :] = red[:, o2:].astype(BF16)
        s, b = aff("i33")
        v2 = _banded_conv(p33, B33_ref, 3, H3, s, b)
        s, b = aff("i35")
        v3 = _banded_conv(p35, B35_ref, 5, H3, s, b)
        mp = _maxpool3x3(p3, H3, W3, Cin3)
        s, b = aff("i3p")
        v4 = jnp.maximum(
            jnp.dot(mp, W3p_ref[...], preferred_element_type=F32) * s + b, 0.0)

        # ---- maxpool 2x2/s2 + inception block 4 -----------------------------
        x4 = _pool2x2([v1, v2, v3, v4], rp, H3, W3,
                      (c1_3, c3_3, c5_3, cp_3), S3_ref)          # [H4, W4*Cin4]
        x4b = x4.astype(BF16)
        p4[1:1 + H4, Cin4:(W4 + 1) * Cin4] = x4b
        sR, bR = aff("r4")
        red = jnp.dot(x4b, WR4_ref[...], preferred_element_type=F32)
        red = jnp.maximum(red * sR + bR, 0.0)
        o1 = W4 * c1_4
        o2 = o1 + W4 * r3_4
        u1 = red[:, 0:o1]
        p43[1:1 + H4, :] = red[:, o1:o2].astype(BF16)
        p45[2:2 + H4, :] = red[:, o2:].astype(BF16)
        s, b = aff("i43")
        u2 = _banded_conv(p43, B43_ref, 3, H4, s, b)
        s, b = aff("i45")
        u3 = _banded_conv(p45, B45_ref, 5, H4, s, b)
        mp = _maxpool3x3(p4, H4, W4, Cin4)
        s, b = aff("i4p")
        u4 = jnp.maximum(
            jnp.dot(mp, W4p_ref[...], preferred_element_type=F32) * s + b, 0.0)

        # ---- AvgPool2d(2, stride 1): 2x2 -> 1x1; flatten (NCHW order) -------
        def avg_head(v, cb):
            return 0.25 * (v[0:1, 0:cb] + v[0:1, cb:2 * cb]
                           + v[1:2, 0:cb] + v[1:2, cb:2 * cb])

        off = 0
        for v, cb in ((u1, c1_4), (u2, c3_4), (u3, c5_4), (u4, cp_4)):
            out_ref[0, 0:1, off:off + cb] = avg_head(v, cb).astype(out_ref.dtype)
            off += cb

    return kernel


# ----------------------------------------------------------------------------
# Builder-side weight packing (tiny, eager)
# ----------------------------------------------------------------------------
def _conv_bn_params(key, cin, cout, k, groups=1):
    kw_, kb_, kg_, kbe_, km_, kv_ = jax.random.split(key, 6)
    w = jax.random.normal(kw_, (k, k, cin, cout), F32) * 0.1
    if groups > 1:  # grouped conv == dense conv with block-diag channel mask
        ipg, opg = cin // groups, cout // groups
        ci = jnp.arange(cin)[:, None] // ipg
        co = jnp.arange(cout)[None, :] // opg
        w = w * (ci == co).astype(F32)[None, None]
    b = 0.1 * jax.random.normal(kb_, (cout,), F32)
    gamma = 1.0 + 0.1 * jax.random.normal(kg_, (cout,), F32)
    beta = 0.1 * jax.random.normal(kbe_, (cout,), F32)
    mean = 0.1 * jax.random.normal(km_, (cout,), F32)
    var = 0.5 + 0.1 * jnp.abs(jax.random.normal(kv_, (cout,), F32))
    scale = gamma / jnp.sqrt(var + 1e-5)            # folded eval-mode BN
    bias = beta + scale * (b - mean)                # includes conv bias
    return w, scale, bias


def _band_weight(w, W):
    """[K,K,Cin,Cout] -> [K, W*Cin, W*Cout]: the dj taps folded into rows."""
    w = np.asarray(w, np.float32)
    K, _, Cin, Cout = w.shape
    p = K // 2
    B = np.zeros((K, W * Cin, W * Cout), np.float32)
    for di in range(K):
        for wo in range(W):
            for dj in range(K):
                wi = wo + dj - p
                if 0 <= wi < W:
                    B[di, wi * Cin:(wi + 1) * Cin,
                      wo * Cout:(wo + 1) * Cout] = w[di, dj]
    return jnp.asarray(B, BF16)


def _kron_1x1(w1x1, W):
    """1x1 conv on an interleaved slab: block-diagonal [W*Cin, W*Cout]."""
    return jnp.kron(jnp.eye(W, dtype=F32), w1x1)


def _pool_select(W, chans):
    """0/1 matrix folding 2x2/s2 lane compaction + block->interleave permute."""
    Ctot = int(sum(chans))
    S = np.zeros(((W - 1) * Ctot, (W // 2) * Ctot), np.float32)
    roff, choff = 0, 0
    for cb in chans:
        for w2 in range(W // 2):
            for c in range(cb):
                S[roff + 2 * w2 * cb + c, w2 * Ctot + choff + c] = 1.0
        roff += (W - 1) * cb
        choff += cb
    return jnp.asarray(S, BF16)


def _tile(v, W):
    return jnp.tile(v, W)


# ----------------------------------------------------------------------------
# Network builder: params contain ONLY arrays; static config lives in closures.
# ----------------------------------------------------------------------------
def build_inception_net(key, in_channels, H, W):
    C = in_channels
    assert H == 16 and W == 16, "fused head is specialized to 16x16 inputs"
    # TODO(synk): generalize the fused avgpool/NCHW-flatten head to other H/W.
    H1, W1 = H, W
    H2, W2 = H // 2, W // 2
    H3, W3 = H // 4, W // 4
    H4, W4 = H // 8, W // 8

    inc3 = (8, 96, 16, 16, 8, 16)       # c1, r3, c3, r5, c5, cp
    inc4 = (16, 96, 32, 16, 16, 32)
    Cin3 = 2 * C
    Cin4 = inc3[0] + inc3[2] + inc3[4] + inc3[5]    # 48
    Ctot4 = inc4[0] + inc4[2] + inc4[4] + inc4[5]   # 96

    k1, k2, k3, k4 = jax.random.split(key, 4)

    # stage 1: depthwise 5x5 -> per-channel VPU broadcast weights
    w1, s1, b1 = _conv_bn_params(k1, C, C, 5, groups=C)
    d1 = w1[:, :, jnp.arange(C), jnp.arange(C)]                  # [5,5,C]
    w1_taps = jnp.stack([_tile(d1[i, j], W1)
                         for i in range(5) for j in range(5)], 0).astype(F32)

    # stage 2: grouped 3x3 (1 in -> 2 out per group) -> banded MXU weights
    w2, s2, b2 = _conv_bn_params(k2, C, 2 * C, 3, groups=C)
    B2 = _band_weight(w2, W2)

    def _inception(kk, cin, dims, Wd):
        c1, r3, c3, r5, c5, cp = dims
        ks = jax.random.split(kk, 6)
        w1x, s1x, b1x = _conv_bn_params(ks[0], cin, c1, 1)
        w3a, s3a, b3a = _conv_bn_params(ks[1], cin, r3, 1)
        w3b, s3b, b3b = _conv_bn_params(ks[2], r3, c3, 3)
        w5a, s5a, b5a = _conv_bn_params(ks[3], cin, r5, 1)
        w5b, s5b, b5b = _conv_bn_params(ks[4], r5, c5, 5)
        w4p, s4p, b4p = _conv_bn_params(ks[5], cin, cp, 1)
        # fused [branch1 | 3x3-reduce | 5x5-reduce] 1x1 conv (lane-dense out)
        WR = jnp.concatenate([_kron_1x1(w1x[0, 0], Wd),
                              _kron_1x1(w3a[0, 0], Wd),
                              _kron_1x1(w5a[0, 0], Wd)], axis=1).astype(BF16)
        sR = jnp.concatenate([_tile(s1x, Wd), _tile(s3a, Wd), _tile(s5a, Wd)])
        bR = jnp.concatenate([_tile(b1x, Wd), _tile(b3a, Wd), _tile(b5a, Wd)])
        return dict(WR=WR, sR=sR, bR=bR,
                    B3=_band_weight(w3b, Wd), s3=_tile(s3b, Wd), b3=_tile(b3b, Wd),
                    B5=_band_weight(w5b, Wd), s5=_tile(s5b, Wd), b5=_tile(b5b, Wd),
                    Wp=_kron_1x1(w4p[0, 0], Wd).astype(BF16),
                    sp=_tile(s4p, Wd), bp=_tile(b4p, Wd))

    i3 = _inception(k3, Cin3, inc3, W3)
    i4 = _inception(k4, Cin4, inc4, W4)

    # pooling selection matrices (pool3 also re-interleaves the branch blocks)
    S1 = _pool_select(W1, (C,))
    S2 = _pool_select(W2, (2 * C,))
    S3 = _pool_select(W3, (inc3[0], inc3[2], inc3[4], inc3[5]))

    # pack all folded BN affines into one [2, total] array
    segs = [("c1", _tile(s1, W1), _tile(b1, W1)),
            ("c2", _tile(s2, W2), _tile(b2, W2)),
            ("r3", i3["sR"], i3["bR"]),
            ("i33", i3["s3"], i3["b3"]),
            ("i35", i3["s5"], i3["b5"]),
            ("i3p", i3["sp"], i3["bp"]),
            ("r4", i4["sR"], i4["bR"]),
            ("i43", i4["s3"], i4["b3"]),
            ("i45", i4["s5"], i4["b5"]),
            ("i4p", i4["sp"], i4["bp"])]
    aff_off, off, scales, biases = {}, 0, [], []
    for name, s_, b_ in segs:
        aff_off[name] = (off, int(s_.shape[0]))
        off += int(s_.shape[0])
        scales.append(s_)
        biases.append(b_)
    aff = jnp.stack([jnp.concatenate(scales), jnp.concatenate(biases)], 0).astype(F32)

    params = dict(w1=w1_taps, S1=S1, B2=B2, S2=S2,
                  WR3=i3["WR"], B33=i3["B3"], B35=i3["B5"], W3p=i3["Wp"], S3=S3,
                  WR4=i4["WR"], B43=i4["B3"], B45=i4["B5"], W4p=i4["Wp"],
                  aff=aff)

    cfg = dict(C=C, H1=H1, W1=W1, H2=H2, W2=W2, H3=H3, W3=W3, H4=H4, W4=W4,
               Cin3=Cin3, Cin4=Cin4, inc3=inc3, inc4=inc4, aff_off=aff_off)
    kernel = _make_fused_kernel(cfg)

    rp_h = H1 // 2
    rp_w = max(W1 * C, W2 * 2 * C, W3 * Cin4)

    def _const_spec(a):
        nd = a.ndim
        return pl.BlockSpec(a.shape, lambda n, _nd=nd: (0,) * _nd)

    def apply_fn(params, x_nchw):
        N = x_nchw.shape[0]
        x = jnp.transpose(x_nchw, (0, 2, 3, 1)).reshape(N, H1, W1 * C).astype(F32)
        consts = [params[k] for k in _ORDER]
        weight_bytes = sum(int(a.size) * a.dtype.itemsize for a in consts)
        cost = pl.CostEstimate(
            flops=int(2 * 7.0e5) * N, transcendentals=0,
            bytes_accessed=int(x.size * 4 + weight_bytes + N * Ctot4 * 4))
        out = pl.pallas_call(
            kernel,
            out_shape=jax.ShapeDtypeStruct((N, 1, Ctot4), F32),
            grid=(N,),
            in_specs=[pl.BlockSpec((1, H1, W1 * C), lambda n: (n, 0, 0))]
                     + [_const_spec(a) for a in consts],
            out_specs=pl.BlockSpec((1, 1, Ctot4), lambda n: (n, 0, 0)),
            scratch_shapes=[
                pltpu.VMEM((H1 + 4, (W1 + 4) * C), F32),       # p1 (stage-1 pad)
                pltpu.VMEM((rp_h, rp_w), F32),                 # rp (row-pool tmp)
                pltpu.VMEM((H2 + 2, W2 * C), BF16),            # p2
                pltpu.VMEM((H3 + 2, (W3 + 2) * Cin3), BF16),   # p3 (inc3 input)
                pltpu.VMEM((H3 + 2, W3 * inc3[1]), BF16),      # p33
                pltpu.VMEM((H3 + 4, W3 * inc3[3]), BF16),      # p35
                pltpu.VMEM((H4 + 2, (W4 + 2) * Cin4), BF16),   # p4 (inc4 input)
                pltpu.VMEM((H4 + 2, W4 * inc4[1]), BF16),      # p43
                pltpu.VMEM((H4 + 4, W4 * inc4[3]), BF16),      # p45
            ],
            compiler_params=pltpu.CompilerParams(
                dimension_semantics=("parallel",)),
            cost_estimate=cost,
        )(x, *consts)
        return out.reshape(N, Ctot4)

    return params, apply_fn


if __name__ == "__main__":
    key = jax.random.PRNGKey(0)
    k_params, k_x = jax.random.split(key)
    in_channels, H, W = 4, 16, 16
    params, apply_fn = build_inception_net(k_params, in_channels, H, W)
    x = jax.random.normal(k_x, (2, in_channels, H, W), jnp.float32)
    out = jax.jit(apply_fn)(params, x)
    out = jax.block_until_ready(out)
    assert out.shape == (2, 96), out.shape
    assert bool(jnp.all(jnp.isfinite(out)))
    print("KERNEL_OK")
</pallas_src>

<mosaic_0001>
module attributes {stable_mosaic.version = 11 : i64} {
  func.func @kernel(%arg0: i32, %arg1: memref<1x16x64xf32, #tpu.memory_space<vmem>>, %arg2: memref<25x64xf32, #tpu.memory_space<vmem>>, %arg3: memref<60x32xbf16, #tpu.memory_space<vmem>>, %arg4: memref<3x32x64xbf16, #tpu.memory_space<vmem>>, %arg5: memref<56x32xbf16, #tpu.memory_space<vmem>>, %arg6: memref<32x480xbf16, #tpu.memory_space<vmem>>, %arg7: memref<3x384x64xbf16, #tpu.memory_space<vmem>>, %arg8: memref<5x64x32xbf16, #tpu.memory_space<vmem>>, %arg9: memref<32x64xbf16, #tpu.memory_space<vmem>>, %arg10: memref<144x96xbf16, #tpu.memory_space<vmem>>, %arg11: memref<96x256xbf16, #tpu.memory_space<vmem>>, %arg12: memref<3x192x64xbf16, #tpu.memory_space<vmem>>, %arg13: memref<5x32x32xbf16, #tpu.memory_space<vmem>>, %arg14: memref<96x64xbf16, #tpu.memory_space<vmem>>, %arg15: memref<2x1184xf32, #tpu.memory_space<vmem>>, %arg16: memref<1x1x96xf32, #tpu.memory_space<vmem>>, %arg17: memref<20x80xf32, #tpu.memory_space<vmem>>, %arg18: memref<8x192xf32, #tpu.memory_space<vmem>>, %arg19: memref<10x32xbf16, #tpu.memory_space<vmem>>, %arg20: memref<6x48xbf16, #tpu.memory_space<vmem>>, %arg21: memref<6x384xbf16, #tpu.memory_space<vmem>>, %arg22: memref<8x64xbf16, #tpu.memory_space<vmem>>, %arg23: memref<4x192xbf16, #tpu.memory_space<vmem>>, %arg24: memref<4x192xbf16, #tpu.memory_space<vmem>>, %arg25: memref<6x32xbf16, #tpu.memory_space<vmem>>) attributes {dimension_semantics = [#tpu.dimension_semantics<parallel>], iteration_bounds = array<i64: 2>, scalar_prefetch = 0 : i64, scratch_operands = 9 : i64, tpu.core_type = #tpu.core_type<tc>, window_params = [{transform_indices = @transform_0, window_bounds = array<i64: 1, 16, 64>}, {pipeline_mode = #tpu.pipeline_mode<synchronous>, transform_indices = @transform_1, window_bounds = array<i64: 25, 64>}, {pipeline_mode = #tpu.pipeline_mode<synchronous>, transform_indices = @transform_2, window_bounds = array<i64: 60, 32>}, {pipeline_mode = #tpu.pipeline_mode<synchronous>, transform_indices = @transform_3, window_bounds = array<i64: 3, 32, 64>}, {pipeline_mode = #tpu.pipeline_mode<synchronous>, transform_indices = @transform_4, window_bounds = array<i64: 56, 32>}, {pipeline_mode = #tpu.pipeline_mode<synchronous>, transform_indices = @transform_5, window_bounds = array<i64: 32, 480>}, {pipeline_mode = #tpu.pipeline_mode<synchronous>, transform_indices = @transform_6, window_bounds = array<i64: 3, 384, 64>}, {pipeline_mode = #tpu.pipeline_mode<synchronous>, transform_indices = @transform_7, window_bounds = array<i64: 5, 64, 32>}, {pipeline_mode = #tpu.pipeline_mode<synchronous>, transform_indices = @transform_8, window_bounds = array<i64: 32, 64>}, {pipeline_mode = #tpu.pipeline_mode<synchronous>, transform_indices = @transform_9, window_bounds = array<i64: 144, 96>}, {pipeline_mode = #tpu.pipeline_mode<synchronous>, transform_indices = @transform_10, window_bounds = array<i64: 96, 256>}, {pipeline_mode = #tpu.pipeline_mode<synchronous>, transform_indices = @transform_11, window_bounds = array<i64: 3, 192, 64>}, {pipeline_mode = #tpu.pipeline_mode<synchronous>, transform_indices = @transform_12, window_bounds = array<i64: 5, 32, 32>}, {pipeline_mode = #tpu.pipeline_mode<synchronous>, transform_indices = @transform_13, window_bounds = array<i64: 96, 64>}, {pipeline_mode = #tpu.pipeline_mode<synchronous>, transform_indices = @transform_14, window_bounds = array<i64: 2, 1184>}, {transform_indices = @transform_15, window_bounds = array<i64: 1, 1, 96>}]} {
    %cst = arith.constant 0.000000e+00 : f32
    %0 = vector.broadcast %cst : f32 to vector<20x80xf32>
    %c0 = arith.constant 0 : index
    %c0_0 = arith.constant 0 : index
    %1 = vector.load %arg17[%c0, %c0_0] : memref<20x80xf32, #tpu.memory_space<vmem>>, vector<20x80xf32>
    tpu.vector_store %arg17[%c0, %c0_0], %0 {strides = array<i32>} : memref<20x80xf32, #tpu.memory_space<vmem>>, vector<20x80xf32>,
    %cst_1 = arith.constant 0.000000e+00 : bf16
    %2 = vector.broadcast %cst_1 : bf16 to vector<10x32xbf16>
    %c0_2 = arith.constant 0 : index
    %c0_3 = arith.constant 0 : index
    %3 = vector.load %arg19[%c0_2, %c0_3] : memref<10x32xbf16, #tpu.memory_space<vmem>>, vector<10x32xbf16>
    tpu.vector_store %arg19[%c0_2, %c0_3], %2 {strides = array<i32>} : memref<10x32xbf16, #tpu.memory_space<vmem>>, vector<10x32xbf16>,
    %cst_4 = arith.constant 0.000000e+00 : bf16
    %4 = vector.broadcast %cst_4 : bf16 to vector<6x48xbf16>
    %c0_5 = arith.constant 0 : index
    %c0_6 = arith.constant 0 : index
    %5 = vector.load %arg20[%c0_5, %c0_6] : memref<6x48xbf16, #tpu.memory_space<vmem>>, vector<6x48xbf16>
    tpu.vector_store %arg20[%c0_5, %c0_6], %4 {strides = array<i32>} : memref<6x48xbf16, #tpu.memory_space<vmem>>, vector<6x48xbf16>,
    %cst_7 = arith.constant 0.000000e+00 : bf16
    %6 = vector.broadcast %cst_7 : bf16 to vector<6x384xbf16>
    %c0_8 = arith.constant 0 : index
    %c0_9 = arith.constant 0 : index
    %7 = vector.load %arg21[%c0_8, %c0_9] : memref<6x384xbf16, #tpu.memory_space<vmem>>, vector<6x384xbf16>
    tpu.vector_store %arg21[%c0_8, %c0_9], %6 {strides = array<i32>} : memref<6x384xbf16, #tpu.memory_space<vmem>>, vector<6x384xbf16>,
    %cst_10 = arith.constant 0.000000e+00 : bf16
    %8 = vector.broadcast %cst_10 : bf16 to vector<8x64xbf16>
    %c0_11 = arith.constant 0 : index
    %c0_12 = arith.constant 0 : index
    %9 = vector.load %arg22[%c0_11, %c0_12] : memref<8x64xbf16, #tpu.memory_space<vmem>>, vector<8x64xbf16>
    tpu.vector_store %arg22[%c0_11, %c0_12], %8 {strides = array<i32>} : memref<8x64xbf16, #tpu.memory_space<vmem>>, vector<8x64xbf16>,
    %cst_13 = arith.constant 0.000000e+00 : bf16
    %10 = vector.broadcast %cst_13 : bf16 to vector<4x192xbf16>
    %c0_14 = arith.constant 0 : index
    %c0_15 = arith.constant 0 : index
    %11 = vector.load %arg23[%c0_14, %c0_15] : memref<4x192xbf16, #tpu.memory_space<vmem>>, vector<4x192xbf16>
    tpu.vector_store %arg23[%c0_14, %c0_15], %10 {strides = array<i32>} : memref<4x192xbf16, #tpu.memory_space<vmem>>, vector<4x192xbf16>,
    %cst_16 = arith.constant 0.000000e+00 : bf16
    %12 = vector.broadcast %cst_16 : bf16 to vector<4x192xbf16>
    %c0_17 = arith.constant 0 : index
    %c0_18 = arith.constant 0 : index
    %13 = vector.load %arg24[%c0_17, %c0_18] : memref<4x192xbf16, #tpu.memory_space<vmem>>, vector<4x192xbf16>
    tpu.vector_store %arg24[%c0_17, %c0_18], %12 {strides = array<i32>} : memref<4x192xbf16, #tpu.memory_space<vmem>>, vector<4x192xbf16>,
    %cst_19 = arith.constant 0.000000e+00 : bf16
    %14 = vector.broadcast %cst_19 : bf16 to vector<6x32xbf16>
    %c0_20 = arith.constant 0 : index
    %c0_21 = arith.constant 0 : index
    %15 = vector.load %arg25[%c0_20, %c0_21] : memref<6x32xbf16, #tpu.memory_space<vmem>>, vector<6x32xbf16>
    tpu.vector_store %arg25[%c0_20, %c0_21], %14 {strides = array<i32>} : memref<6x32xbf16, #tpu.memory_space<vmem>>, vector<6x32xbf16>,
    %c0_22 = arith.constant 0 : index
    %c0_23 = arith.constant 0 : index
    %c0_24 = arith.constant 0 : index
    %16 = vector.load %arg1[%c0_22, %c0_23, %c0_24] : memref<1x16x64xf32, #tpu.memory_space<vmem>>, vector<1x16x64xf32>
    %17 = vector.shape_cast %16 : vector<1x16x64xf32> to vector<16x64xf32>
    %c2 = arith.constant 2 : index
    %c8 = arith.constant 8 : index
    %18 = vector.load %arg17[%c2, %c8] : memref<20x80xf32, #tpu.memory_space<vmem>>, vector<16x64xf32>
    tpu.vector_store %arg17[%c2, %c8], %17 {strides = array<i32>} : memref<20x80xf32, #tpu.memory_space<vmem>>, vector<16x64xf32>,
    %cst_25 = arith.constant 0.000000e+00 : f32
    %19 = vector.broadcast %cst_25 : f32 to vector<16x64xf32>
    %c0_26 = arith.constant 0 : index
    %c0_27 = arith.constant 0 : index
    %20 = vector.load %arg17[%c0_26, %c0_27] : memref<20x80xf32, #tpu.memory_space<vmem>>, vector<16x64xf32>
    %c0_28 = arith.constant 0 : index
    %c0_29 = arith.constant 0 : index
    %21 = vector.load %arg2[%c0_28, %c0_29] : memref<25x64xf32, #tpu.memory_space<vmem>>, vector<1x64xf32>
    %22 = vector.broadcast %21 : vector<1x64xf32> to vector<16x64xf32>
    %23 = arith.mulf %20, %22 : vector<16x64xf32>
    %24 = arith.addf %19, %23 : vector<16x64xf32>
    %c0_30 = arith.constant 0 : index
    %c4 = arith.constant 4 : index
    %25 = vector.load %arg17[%c0_30, %c4] : memref<20x80xf32, #tpu.memory_space<vmem>>, vector<16x64xf32>
    %c1 = arith.constant 1 : index
    %c0_31 = arith.constant 0 : index
    %26 = vector.load %arg2[%c1, %c0_31] : memref<25x64xf32, #tpu.memory_space<vmem>>, vector<1x64xf32>
    %27 = vector.broadcast %26 : vector<1x64xf32> to vector<16x64xf32>
    %28 = arith.mulf %25, %27 : vector<16x64xf32>
    %29 = arith.addf %24, %28 : vector<16x64xf32>
    %c0_32 = arith.constant 0 : index
    %c8_33 = arith.constant 8 : index
    %30 = vector.load %arg17[%c0_32, %c8_33] : memref<20x80xf32, #tpu.memory_space<vmem>>, vector<16x64xf32>
    %c2_34 = arith.constant 2 : index
    %c0_35 = arith.constant 0 : index
    %31 = vector.load %arg2[%c2_34, %c0_35] : memref<25x64xf32, #tpu.memory_space<vmem>>, vector<1x64xf32>
    %32 = vector.broadcast %31 : vector<1x64xf32> to vector<16x64xf32>
    %33 = arith.mulf %30, %32 : vector<16x64xf32>
    %34 = arith.addf %29, %33 : vector<16x64xf32>
    %c0_36 = arith.constant 0 : index
    %c12 = arith.constant 12 : index
    %35 = vector.load %arg17[%c0_36, %c12] : memref<20x80xf32, #tpu.memory_space<vmem>>, vector<16x64xf32>
    %c3 = arith.constant 3 : index
    %c0_37 = arith.constant 0 : index
    %36 = vector.load %arg2[%c3, %c0_37] : memref<25x64xf32, #tpu.memory_space<vmem>>, vector<1x64xf32>
    %37 = vector.broadcast %36 : vector<1x64xf32> to vector<16x64xf32>
    %38 = arith.mulf %35, %37 : vector<16x64xf32>
    %39 = arith.addf %34, %38 : vector<16x64xf32>
    %c0_38 = arith.constant 0 : index
    %c16 = arith.constant 16 : index
    %40 = vector.load %arg17[%c0_38, %c16] : memref<20x80xf32, #tpu.memory_space<vmem>>, vector<16x64xf32>
    %c4_39 = arith.constant 4 : index
    %c0_40 = arith.constant 0 : index
    %41 = vector.load %arg2[%c4_39, %c0_40] : memref<25x64xf32, #tpu.memory_space<vmem>>, vector<1x64xf32>
    %42 = vector.broadcast %41 : vector<1x64xf32> to vector<16x64xf32>
    %43 = arith.mulf %40, %42 : vector<16x64xf32>
    %44 = arith.addf %39, %43 : vector<16x64xf32>
    %c1_41 = arith.constant 1 : index
    %c0_42 = arith.constant 0 : index
    %45 = vector.load %arg17[%c1_41, %c0_42] : memref<20x80xf32, #tpu.memory_space<vmem>>, vector<16x64xf32>
    %c5 = arith.constant 5 : index
    %c0_43 = arith.constant 0 : index
    %46 = vector.load %arg2[%c5, %c0_43] : memref<25x64xf32, #tpu.memory_space<vmem>>, vector<1x64xf32>
    %47 = vector.broadcast %46 : vector<1x64xf32> to vector<16x64xf32>
    %48 = arith.mulf %45, %47 : vector<16x64xf32>
    %49 = arith.addf %44, %48 : vector<16x64xf32>
    %c1_44 = arith.constant 1 : index
    %c4_45 = arith.constant 4 : index
    %50 = vector.load %arg17[%c1_44, %c4_45] : memref<20x80xf32, #tpu.memory_space<vmem>>, vector<16x64xf32>
    %c6 = arith.constant 6 : index
    %c0_46 = arith.constant 0 : index
    %51 = vector.load %arg2[%c6, %c0_46] : memref<25x64xf32, #tpu.memory_space<vmem>>, vector<1x64xf32>
    %52 = vector.broadcast %51 : vector<1x64xf32> to vector<16x64xf32>
    %53 = arith.mulf %50, %52 : vector<16x64xf32>
    %54 = arith.addf %49, %53 : vector<16x64xf32>
    %c1_47 = arith.constant 1 : index
    %c8_48 = arith.constant 8 : index
    %55 = vector.load %arg17[%c1_47, %c8_48] : memref<20x80xf32, #tpu.memory_space<vmem>>, vector<16x64xf32>
    %c7 = arith.constant 7 : index
    %c0_49 = arith.constant 0 : index
    %56 = vector.load %arg2[%c7, %c0_49] : memref<25x64xf32, #tpu.memory_space<vmem>>, vector<1x64xf32>
    %57 = vector.broadcast %56 : vector<1x64xf32> to vector<16x64xf32>
    %58 = arith.mulf %55, %57 : vector<16x64xf32>
    %59 = arith.addf %54, %58 : vector<16x64xf32>
    %c1_50 = arith.constant 1 : index
    %c12_51 = arith.constant 12 : index
    %60 = vector.load %arg17[%c1_50, %c12_51] : memref<20x80xf32, #tpu.memory_space<vmem>>, vector<16x64xf32>
    %c8_52 = arith.constant 8 : index
    %c0_53 = arith.constant 0 : index
    %61 = vector.load %arg2[%c8_52, %c0_53] : memref<25x64xf32, #tpu.memory_space<vmem>>, vector<1x64xf32>
    %62 = vector.broadcast %61 : vector<1x64xf32> to vector<16x64xf32>
    %63 = arith.mulf %60, %62 : vector<16x64xf32>
    %64 = arith.addf %59, %63 : vector<16x64xf32>
    %c1_54 = arith.constant 1 : index
    %c16_55 = arith.constant 16 : index
    %65 = vector.load %arg17[%c1_54, %c16_55] : memref<20x80xf32, #tpu.memory_space<vmem>>, vector<16x64xf32>
    %c9 = arith.constant 9 : index
    %c0_56 = arith.constant 0 : index
    %66 = vector.load %arg2[%c9, %c0_56] : memref<25x64xf32, #tpu.memory_space<vmem>>, vector<1x64xf32>
    %67 = vector.broadcast %66 : vector<1x64xf32> to vector<16x64xf32>
    %68 = arith.mulf %65, %67 : vector<16x64xf32>
    %69 = arith.addf %64, %68 : vector<16x64xf32>
    %c2_57 = arith.constant 2 : index
    %c0_58 = arith.constant 0 : index
    %70 = vector.load %arg17[%c2_57, %c0_58] : memref<20x80xf32, #tpu.memory_space<vmem>>, vector<16x64xf32>
    %c10 = arith.constant 10 : index
    %c0_59 = arith.constant 0 : index
    %71 = vector.load %arg2[%c10, %c0_59] : memref<25x64xf32, #tpu.memory_space<vmem>>, vector<1x64xf32>
    %72 = vector.broadcast %71 : vector<1x64xf32> to vector<16x64xf32>
    %73 = arith.mulf %70, %72 : vector<16x64xf32>
    %74 = arith.addf %69, %73 : vector<16x64xf32>
    %c2_60 = arith.constant 2 : index
    %c4_61 = arith.constant 4 : index
    %75 = vector.load %arg17[%c2_60, %c4_61] : memref<20x80xf32, #tpu.memory_space<vmem>>, vector<16x64xf32>
    %c11 = arith.constant 11 : index
    %c0_62 = arith.constant 0 : index
    %76 = vector.load %arg2[%c11, %c0_62] : memref<25x64xf32, #tpu.memory_space<vmem>>, vector<1x64xf32>
    %77 = vector.broadcast %76 : vector<1x64xf32> to vector<16x64xf32>
    %78 = arith.mulf %75, %77 : vector<16x64xf32>
    %79 = arith.addf %74, %78 : vector<16x64xf32>
    %c2_63 = arith.constant 2 : index
    %c8_64 = arith.constant 8 : index
    %80 = vector.load %arg17[%c2_63, %c8_64] : memref<20x80xf32, #tpu.memory_space<vmem>>, vector<16x64xf32>
    %c12_65 = arith.constant 12 : index
    %c0_66 = arith.constant 0 : index
    %81 = vector.load %arg2[%c12_65, %c0_66] : memref<25x64xf32, #tpu.memory_space<vmem>>, vector<1x64xf32>
    %82 = vector.broadcast %81 : vector<1x64xf32> to vector<16x64xf32>
    %83 = arith.mulf %80, %82 : vector<16x64xf32>
    %84 = arith.addf %79, %83 : vector<16x64xf32>
    %c2_67 = arith.constant 2 : index
    %c12_68 = arith.constant 12 : index
    %85 = vector.load %arg17[%c2_67, %c12_68] : memref<20x80xf32, #tpu.memory_space<vmem>>, vector<16x64xf32>
    %c13 = arith.constant 13 : index
    %c0_69 = arith.constant 0 : index
    %86 = vector.load %arg2[%c13, %c0_69] : memref<25x64xf32, #tpu.memory_space<vmem>>, vector<1x64xf32>
    %87 = vector.broadcast %86 : vector<1x64xf32> to vector<16x64xf32>
    %88 = arith.mulf %85, %87 : vector<16x64xf32>
    %89 = arith.addf %84, %88 : vector<16x64xf32>
    %c2_70 = arith.constant 2 : index
    %c16_71 = arith.constant 16 : index
    %90 = vector.load %arg17[%c2_70, %c16_71] : memref<20x80xf32, #tpu.memory_space<vmem>>, vector<16x64xf32>
    %c14 = arith.constant 14 : index
    %c0_72 = arith.constant 0 : index
    %91 = vector.load %arg2[%c14, %c0_72] : memref<25x64xf32, #tpu.memory_space<vmem>>, vector<1x64xf32>
    %92 = vector.broadcast %91 : vector<1x64xf32> to vector<16x64xf32>
    %93 = arith.mulf %90, %92 : vector<16x64xf32>
    %94 = arith.addf %89, %93 : vector<16x64xf32>
    %c3_73 = arith.constant 3 : index
    %c0_74 = arith.constant 0 : index
    %95 = vector.load %arg17[%c3_73, %c0_74] : memref<20x80xf32, #tpu.memory_space<vmem>>, vector<16x64xf32>
    %c15 = arith.constant 15 : index
    %c0_75 = arith.constant 0 : index
    %96 = vector.load %arg2[%c15, %c0_75] : memref<25x64xf32, #tpu.memory_space<vmem>>, vector<1x64xf32>
    %97 = vector.broadcast %96 : vector<1x64xf32> to vector<16x64xf32>
    %98 = arith.mulf %95, %97 : vector<16x64xf32>
    %99 = arith.addf %94, %98 : vector<16x64xf32>
    %c3_76 = arith.constant 3 : index
    %c4_77 = arith.constant 4 : index
    %100 = vector.load %arg17[%c3_76, %c4_77] : memref<20x80xf32, #tpu.memory_space<vmem>>, vector<16x64xf32>
    %c16_78 = arith.constant 16 : index
    %c0_79 = arith.constant 0 : index
    %101 = vector.load %arg2[%c16_78, %c0_79] : memref<25x64xf32, #tpu.memory_space<vmem>>, vector<1x64xf32>
    %102 = vector.broadcast %101 : vector<1x64xf32> to vector<16x64xf32>
    %103 = arith.mulf %100, %102 : vector<16x64xf32>
    %104 = arith.addf %99, %103 : vector<16x64xf32>
    %c3_80 = arith.constant 3 : index
    %c8_81 = arith.constant 8 : index
    %105 = vector.load %arg17[%c3_80, %c8_81] : memref<20x80xf32, #tpu.memory_space<vmem>>, vector<16x64xf32>
    %c17 = arith.constant 17 : index
    %c0_82 = arith.constant 0 : index
    %106 = vector.load %arg2[%c17, %c0_82] : memref<25x64xf32, #tpu.memory_space<vmem>>, vector<1x64xf32>
    %107 = vector.broadcast %106 : vector<1x64xf32> to vector<16x64xf32>
    %108 = arith.mulf %105, %107 : vector<16x64xf32>
    %109 = arith.addf %104, %108 : vector<16x64xf32>
    %c3_83 = arith.constant 3 : index
    %c12_84 = arith.constant 12 : index
    %110 = vector.load %arg17[%c3_83, %c12_84] : memref<20x80xf32, #tpu.memory_space<vmem>>, vector<16x64xf32>
    %c18 = arith.constant 18 : index
    %c0_85 = arith.constant 0 : index
    %111 = vector.load %arg2[%c18, %c0_85] : memref<25x64xf32, #tpu.memory_space<vmem>>, vector<1x64xf32>
    %112 = vector.broadcast %111 : vector<1x64xf32> to vector<16x64xf32>
    %113 = arith.mulf %110, %112 : vector<16x64xf32>
    %114 = arith.addf %109, %113 : vector<16x64xf32>
    %c3_86 = arith.constant 3 : index
    %c16_87 = arith.constant 16 : index
    %115 = vector.load %arg17[%c3_86, %c16_87] : memref<20x80xf32, #tpu.memory_space<vmem>>, vector<16x64xf32>
    %c19 = arith.constant 19 : index
    %c0_88 = arith.constant 0 : index
    %116 = vector.load %arg2[%c19, %c0_88] : memref<25x64xf32, #tpu.memory_space<vmem>>, vector<1x64xf32>
    %117 = vector.broadcast %116 : vector<1x64xf32> to vector<16x64xf32>
    %118 = arith.mulf %115, %117 : vector<16x64xf32>
    %119 = arith.addf %114, %118 : vector<16x64xf32>
    %c4_89 = arith.constant 4 : index
    %c0_90 = arith.constant 0 : index
    %120 = vector.load %arg17[%c4_89, %c0_90] : memref<20x80xf32, #tpu.memory_space<vmem>>, vector<16x64xf32>
    %c20 = arith.constant 20 : index
    %c0_91 = arith.constant 0 : index
    %121 = vector.load %arg2[%c20, %c0_91] : memref<25x64xf32, #tpu.memory_space<vmem>>, vector<1x64xf32>
    %122 = vector.broadcast %121 : vector<1x64xf32> to vector<16x64xf32>
    %123 = arith.mulf %120, %122 : vector<16x64xf32>
    %124 = arith.addf %119, %123 : vector<16x64xf32>
    %c4_92 = arith.constant 4 : index
    %c4_93 = arith.constant 4 : index
    %125 = vector.load %arg17[%c4_92, %c4_93] : memref<20x80xf32, #tpu.memory_space<vmem>>, vector<16x64xf32>
    %c21 = arith.constant 21 : index
    %c0_94 = arith.constant 0 : index
    %126 = vector.load %arg2[%c21, %c0_94] : memref<25x64xf32, #tpu.memory_space<vmem>>, vector<1x64xf32>
    %127 = vector.broadcast %126 : vector<1x64xf32> to vector<16x64xf32>
    %128 = arith.mulf %125, %127 : vector<16x64xf32>
    %129 = arith.addf %124, %128 : vector<16x64xf32>
    %c4_95 = arith.constant 4 : index
    %c8_96 = arith.constant 8 : index
    %130 = vector.load %arg17[%c4_95, %c8_96] : memref<20x80xf32, #tpu.memory_space<vmem>>, vector<16x64xf32>
    %c22 = arith.constant 22 : index
    %c0_97 = arith.constant 0 : index
    %131 = vector.load %arg2[%c22, %c0_97] : memref<25x64xf32, #tpu.memory_space<vmem>>, vector<1x64xf32>
    %132 = vector.broadcast %131 : vector<1x64xf32> to vector<16x64xf32>
    %133 = arith.mulf %130, %132 : vector<16x64xf32>
    %134 = arith.addf %129, %133 : vector<16x64xf32>
    %c4_98 = arith.constant 4 : index
    %c12_99 = arith.constant 12 : index
    %135 = vector.load %arg17[%c4_98, %c12_99] : memref<20x80xf32, #tpu.memory_space<vmem>>, vector<16x64xf32>
    %c23 = arith.constant 23 : index
    %c0_100 = arith.constant 0 : index
    %136 = vector.load %arg2[%c23, %c0_100] : memref<25x64xf32, #tpu.memory_space<vmem>>, vector<1x64xf32>
    %137 = vector.broadcast %136 : vector<1x64xf32> to vector<16x64xf32>
    %138 = arith.mulf %135, %137 : vector<16x64xf32>
    %139 = arith.addf %134, %138 : vector<16x64xf32>
    %c4_101 = arith.constant 4 : index
    %c16_102 = arith.constant 16 : index
    %140 = vector.load %arg17[%c4_101, %c16_102] : memref<20x80xf32, #tpu.memory_space<vmem>>, vector<16x64xf32>
    %c24 = arith.constant 24 : index
    %c0_103 = arith.constant 0 : index
    %141 = vector.load %arg2[%c24, %c0_103] : memref<25x64xf32, #tpu.memory_space<vmem>>, vector<1x64xf32>
    %142 = vector.broadcast %141 : vector<1x64xf32> to vector<16x64xf32>
    %143 = arith.mulf %140, %142 : vector<16x64xf32>
    %144 = arith.addf %139, %143 : vector<16x64xf32>
    %c0_104 = arith.constant 0 : index
    %c0_105 = arith.constant 0 : index
    %145 = vector.load %arg15[%c0_104, %c0_105] : memref<2x1184xf32, #tpu.memory_space<vmem>>, vector<1x64xf32>
    %c1_106 = arith.constant 1 : index
    %c0_107 = arith.constant 0 : index
    %146 = vector.load %arg15[%c1_106, %c0_107] : memref<2x1184xf32, #tpu.memory_space<vmem>>, vector<1x64xf32>
    %147 = vector.broadcast %145 : vector<1x64xf32> to vector<16x64xf32>
    %148 = arith.mulf %144, %147 : vector<16x64xf32>
    %149 = vector.broadcast %146 : vector<1x64xf32> to vector<16x64xf32>
    %150 = arith.addf %148, %149 : vector<16x64xf32>
    %cst_108 = arith.constant 0.000000e+00 : f32
    %151 = vector.broadcast %cst_108 : f32 to vector<16x64xf32>
    %152 = arith.maximumf %150, %151 : vector<16x64xf32>
    %153 = vector.extract_strided_slice %152 {offsets = [0, 0], sizes = [1, 64], strides = [1, 1]} : vector<16x64xf32> to vector<1x64xf32>
    %154 = vector.extract_strided_slice %152 {offsets = [1, 0], sizes = [1, 64], strides = [1, 1]} : vector<16x64xf32> to vector<1x64xf32>
    %155 = arith.maximumf %153, %154 : vector<1x64xf32>
    %c0_109 = arith.constant 0 : index
    %c0_110 = arith.constant 0 : index
    %156 = vector.load %arg18[%c0_109, %c0_110] : memref<8x192xf32, #tpu.memory_space<vmem>>, vector<1x64xf32>
    tpu.vector_store %arg18[%c0_109, %c0_110], %155 {strides = array<i32>} : memref<8x192xf32, #tpu.memory_space<vmem>>, vector<1x64xf32>,
    %157 = vector.extract_strided_slice %152 {offsets = [2, 0], sizes = [1, 64], strides = [1, 1]} : vector<16x64xf32> to vector<1x64xf32>
    %158 = vector.extract_strided_slice %152 {offsets = [3, 0], sizes = [1, 64], strides = [1, 1]} : vector<16x64xf32> to vector<1x64xf32>
    %159 = arith.maximumf %157, %158 : vector<1x64xf32>
    %c1_111 = arith.constant 1 : index
    %c0_112 = arith.constant 0 : index
    %160 = vector.load %arg18[%c1_111, %c0_112] : memref<8x192xf32, #tpu.memory_space<vmem>>, vector<1x64xf32>
    tpu.vector_store %arg18[%c1_111, %c0_112], %159 {strides = array<i32>} : memref<8x192xf32, #tpu.memory_space<vmem>>, vector<1x64xf32>,
    %161 = vector.extract_strided_slice %152 {offsets = [4, 0], sizes = [1, 64], strides = [1, 1]} : vector<16x64xf32> to vector<1x64xf32>
    %162 = vector.extract_strided_slice %152 {offsets = [5, 0], sizes = [1, 64], strides = [1, 1]} : vector<16x64xf32> to vector<1x64xf32>
    %163 = arith.maximumf %161, %162 : vector<1x64xf32>
    %c2_113 = arith.constant 2 : index
    %c0_114 = arith.constant 0 : index
    %164 = vector.load %arg18[%c2_113, %c0_114] : memref<8x192xf32, #tpu.memory_space<vmem>>, vector<1x64xf32>
    tpu.vector_store %arg18[%c2_113, %c0_114], %163 {strides = array<i32>} : memref<8x192xf32, #tpu.memory_space<vmem>>, vector<1x64xf32>,
    %165 = vector.extract_strided_slice %152 {offsets = [6, 0], sizes = [1, 64], strides = [1, 1]} : vector<16x64xf32> to vector<1x64xf32>
    %166 = vector.extract_strided_slice %152 {offsets = [7, 0], sizes = [1, 64], strides = [1, 1]} : vector<16x64xf32> to vector<1x64xf32>
    %167 = arith.maximumf %165, %166 : vector<1x64xf32>
    %c3_115 = arith.constant 3 : index
    %c0_116 = arith.constant 0 : index
    %168 = vector.load %arg18[%c3_115, %c0_116] : memref<8x192xf32, #tpu.memory_space<vmem>>, vector<1x64xf32>
    tpu.vector_store %arg18[%c3_115, %c0_116], %167 {strides = array<i32>} : memref<8x192xf32, #tpu.memory_space<vmem>>, vector<1x64xf32>,
    %169 = vector.extract_strided_slice %152 {offsets = [8, 0], sizes = [1, 64], strides = [1, 1]} : vector<16x64xf32> to vector<1x64xf32>
    %170 = vector.extract_strided_slice %152 {offsets = [9, 0], sizes = [1, 64], strides = [1, 1]} : vector<16x64xf32> to vector<1x64xf32>
    %171 = arith.maximumf %169, %170 : vector<1x64xf32>
    %c4_117 = arith.constant 4 : index
    %c0_118 = arith.constant 0 : index
    %172 = vector.load %arg18[%c4_117, %c0_118] : memref<8x192xf32, #tpu.memory_space<vmem>>, vector<1x64xf32>
    tpu.vector_store %arg18[%c4_117, %c0_118], %171 {strides = array<i32>} : memref<8x192xf32, #tpu.memory_space<vmem>>, vector<1x64xf32>,
    %173 = vector.extract_strided_slice %152 {offsets = [10, 0], sizes = [1, 64], strides = [1, 1]} : vector<16x64xf32> to vector<1x64xf32>
    %174 = vector.extract_strided_slice %152 {offsets = [11, 0], sizes = [1, 64], strides = [1, 1]} : vector<16x64xf32> to vector<1x64xf32>
    %175 = arith.maximumf %173, %174 : vector<1x64xf32>
    %c5_119 = arith.constant 5 : index
    %c0_120 = arith.constant 0 : index
    %176 = vector.load %arg18[%c5_119, %c0_120] : memref<8x192xf32, #tpu.memory_space<vmem>>, vector<1x64xf32>
    tpu.vector_store %arg18[%c5_119, %c0_120], %175 {strides = array<i32>} : memref<8x192xf32, #tpu.memory_space<vmem>>, vector<1x64xf32>,
    %177 = vector.extract_strided_slice %152 {offsets = [12, 0], sizes = [1, 64], strides = [1, 1]} : vector<16x64xf32> to vector<1x64xf32>
    %178 = vector.extract_strided_slice %152 {offsets = [13, 0], sizes = [1, 64], strides = [1, 1]} : vector<16x64xf32> to vector<1x64xf32>
    %179 = arith.maximumf %177, %178 : vector<1x64xf32>
    %c6_121 = arith.constant 6 : index
    %c0_122 = arith.constant 0 : index
    %180 = vector.load %arg18[%c6_121, %c0_122] : memref<8x192xf32, #tpu.memory_space<vmem>>, vector<1x64xf32>
    tpu.vector_store %arg18[%c6_121, %c0_122], %179 {strides = array<i32>} : memref<8x192xf32, #tpu.memory_space<vmem>>, vector<1x64xf32>,
    %181 = vector.extract_strided_slice %152 {offsets = [14, 0], sizes = [1, 64], strides = [1, 1]} : vector<16x64xf32> to vector<1x64xf32>
    %182 = vector.extract_strided_slice %152 {offsets = [15, 0], sizes = [1, 64], strides = [1, 1]} : vector<16x64xf32> to vector<1x64xf32>
    %183 = arith.maximumf %181, %182 : vector<1x64xf32>
    %c7_123 = arith.constant 7 : index
    %c0_124 = arith.constant 0 : index
    %184 = vector.load %arg18[%c7_123, %c0_124] : memref<8x192xf32, #tpu.memory_space<vmem>>, vector<1x64xf32>
    tpu.vector_store %arg18[%c7_123, %c0_124], %183 {strides = array<i32>} : memref<8x192xf32, #tpu.memory_space<vmem>>, vector<1x64xf32>,
    %c0_125 = arith.constant 0 : index
    %c0_126 = arith.constant 0 : index
    %185 = vector.load %arg18[%c0_125, %c0_126] : memref<8x192xf32, #tpu.memory_space<vmem>>, vector<8x60xf32>
    %c0_127 = arith.constant 0 : index
    %c4_128 = arith.constant 4 : index
    %186 = vector.load %arg18[%c0_127, %c4_128] : memref<8x192xf32, #tpu.memory_space<vmem>>, vector<8x60xf32>
    %187 = arith.maximumf %185, %186 : vector<8x60xf32>
    %188 = arith.truncf %187 : vector<8x60xf32> to vector<8x60xbf16>
    %c0_129 = arith.constant 0 : index
    %c0_130 = arith.constant 0 : index
    %189 = vector.load %arg3[%c0_129, %c0_130] : memref<60x32xbf16, #tpu.memory_space<vmem>>, vector<60x32xbf16>
    %cst_131 = arith.constant dense<0.000000e+00> : vector<8x32xf32>
    %190 = tpu.matmul %188, %189, %cst_131 {dimension_numbers = #tpu.dot_dimension_numbers<[1], [0], [0], [1], [0, 0, 1, 1], [], []>} : vector<8x60xbf16>, vector<60x32xbf16>, vector<8x32xf32> -> vector<8x32xf32>
    %191 = arith.truncf %190 : vector<8x32xf32> to vector<8x32xbf16>
    %c1_132 = arith.constant 1 : index
    %c0_133 = arith.constant 0 : index
    %192 = vector.load %arg19[%c1_132, %c0_133] : memref<10x32xbf16, #tpu.memory_space<vmem>>, vector<8x32xbf16>
    tpu.vector_store %arg19[%c1_132, %c0_133], %191 {strides = array<i32>} : memref<10x32xbf16, #tpu.memory_space<vmem>>, vector<8x32xbf16>,
    %c0_134 = arith.constant 0 : index
    %c64 = arith.constant 64 : index
    %193 = vector.load %arg15[%c0_134, %c64] : memref<2x1184xf32, #tpu.memory_space<vmem>>, vector<1x64xf32>
    %c1_135 = arith.constant 1 : index
    %c64_136 = arith.constant 64 : index
    %194 = vector.load %arg15[%c1_135, %c64_136] : memref<2x1184xf32, #tpu.memory_space<vmem>>, vector<1x64xf32>
    %cst_137 = arith.constant 0.000000e+00 : f32
    %195 = vector.broadcast %cst_137 : f32 to vector<8x64xf32>
    %c0_138 = arith.constant 0 : index
    %c0_139 = arith.constant 0 : index
    %196 = vector.load %arg19[%c0_138, %c0_139] : memref<10x32xbf16, #tpu.memory_space<vmem>>, vector<8x32xbf16>
    %c0_140 = arith.constant 0 : index
    %c0_141 = arith.constant 0 : index
    %c0_142 = arith.constant 0 : index
    %197 = vector.load %arg4[%c0_140, %c0_141, %c0_142] : memref<3x32x64xbf16, #tpu.memory_space<vmem>>, vector<1x32x64xbf16>
    %198 = vector.shape_cast %197 : vector<1x32x64xbf16> to vector<32x64xbf16>
    %cst_143 = arith.constant dense<0.000000e+00> : vector<8x64xf32>
    %199 = tpu.matmul %196, %198, %cst_143 {dimension_numbers = #tpu.dot_dimension_numbers<[1], [0], [0], [1], [0, 0, 1, 1], [], []>} : vector<8x32xbf16>, vector<32x64xbf16>, vector<8x64xf32> -> vector<8x64xf32>
    %200 = arith.addf %195, %199 : vector<8x64xf32>
    %c1_144 = arith.constant 1 : index
    %c0_145 = arith.constant 0 : index
    %201 = vector.load %arg19[%c1_144, %c0_145] : memref<10x32xbf16, #tpu.memory_space<vmem>>, vector<8x32xbf16>
    %c1_146 = arith.constant 1 : index
    %c0_147 = arith.constant 0 : index
    %c0_148 = arith.constant 0 : index
    %202 = vector.load %arg4[%c1_146, %c0_147, %c0_148] : memref<3x32x64xbf16, #tpu.memory_space<vmem>>, vector<1x32x64xbf16>
    %203 = vector.shape_cast %202 : vector<1x32x64xbf16> to vector<32x64xbf16>
    %cst_149 = arith.constant dense<0.000000e+00> : vector<8x64xf32>
    %204 = tpu.matmul %201, %203, %cst_149 {dimension_numbers = #tpu.dot_dimension_numbers<[1], [0], [0], [1], [0, 0, 1, 1], [], []>} : vector<8x32xbf16>, vector<32x64xbf16>, vector<8x64xf32> -> vector<8x64xf32>
    %205 = arith.addf %200, %204 : vector<8x64xf32>
    %c2_150 = arith.constant 2 : index
    %c0_151 = arith.constant 0 : index
    %206 = vector.load %arg19[%c2_150, %c0_151] : memref<10x32xbf16, #tpu.memory_space<vmem>>, vector<8x32xbf16>
    %c2_152 = arith.constant 2 : index
    %c0_153 = arith.constant 0 : index
    %c0_154 = arith.constant 0 : index
    %207 = vector.load %arg4[%c2_152, %c0_153, %c0_154] : memref<3x32x64xbf16, #tpu.memory_space<vmem>>, vector<1x32x64xbf16>
    %208 = vector.shape_cast %207 : vector<1x32x64xbf16> to vector<32x64xbf16>
    %cst_155 = arith.constant dense<0.000000e+00> : vector<8x64xf32>
    %209 = tpu.matmul %206, %208, %cst_155 {dimension_numbers = #tpu.dot_dimension_numbers<[1], [0], [0], [1], [0, 0, 1, 1], [], []>} : vector<8x32xbf16>, vector<32x64xbf16>, vector<8x64xf32> -> vector<8x64xf32>
    %210 = arith.addf %205, %209 : vector<8x64xf32>
    %211 = vector.broadcast %193 : vector<1x64xf32> to vector<8x64xf32>
    %212 = arith.mulf %210, %211 : vector<8x64xf32>
    %213 = vector.broadcast %194 : vector<1x64xf32> to vector<8x64xf32>
    %214 = arith.addf %212, %213 : vector<8x64xf32>
    %cst_156 = arith.constant 0.000000e+00 : f32
    %215 = vector.broadcast %cst_156 : f32 to vector<8x64xf32>
    %216 = arith.maximumf %214, %215 : vector<8x64xf32>
    %217 = vector.extract_strided_slice %216 {offsets = [0, 0], sizes = [1, 64], strides = [1, 1]} : vector<8x64xf32> to vector<1x64xf32>
    %218 = vector.extract_strided_slice %216 {offsets = [1, 0], sizes = [1, 64], strides = [1, 1]} : vector<8x64xf32> to vector<1x64xf32>
    %219 = arith.maximumf %217, %218 : vector<1x64xf32>
    %c0_157 = arith.constant 0 : index
    %c0_158 = arith.constant 0 : index
    %220 = vector.load %arg18[%c0_157, %c0_158] : memref<8x192xf32, #tpu.memory_space<vmem>>, vector<1x64xf32>
    tpu.vector_store %arg18[%c0_157, %c0_158], %219 {strides = array<i32>} : memref<8x192xf32, #tpu.memory_space<vmem>>, vector<1x64xf32>,
    %221 = vector.extract_strided_slice %216 {offsets = [2, 0], sizes = [1, 64], strides = [1, 1]} : vector<8x64xf32> to vector<1x64xf32>
    %222 = vector.extract_strided_slice %216 {offsets = [3, 0], sizes = [1, 64], strides = [1, 1]} : vector<8x64xf32> to vector<1x64xf32>
    %223 = arith.maximumf %221, %222 : vector<1x64xf32>
    %c1_159 = arith.constant 1 : index
    %c0_160 = arith.constant 0 : index
    %224 = vector.load %arg18[%c1_159, %c0_160] : memref<8x192xf32, #tpu.memory_space<vmem>>, vector<1x64xf32>
    tpu.vector_store %arg18[%c1_159, %c0_160], %223 {strides = array<i32>} : memref<8x192xf32, #tpu.memory_space<vmem>>, vector<1x64xf32>,
    %225 = vector.extract_strided_slice %216 {offsets = [4, 0], sizes = [1, 64], strides = [1, 1]} : vector<8x64xf32> to vector<1x64xf32>
    %226 = vector.extract_strided_slice %216 {offsets = [5, 0], sizes = [1, 64], strides = [1, 1]} : vector<8x64xf32> to vector<1x64xf32>
    %227 = arith.maximumf %225, %226 : vector<1x64xf32>
    %c2_161 = arith.constant 2 : index
    %c0_162 = arith.constant 0 : index
    %228 = vector.load %arg18[%c2_161, %c0_162] : memref<8x192xf32, #tpu.memory_space<vmem>>, vector<1x64xf32>
    tpu.vector_store %arg18[%c2_161, %c0_162], %227 {strides = array<i32>} : memref<8x192xf32, #tpu.memory_space<vmem>>, vector<1x64xf32>,
    %229 = vector.extract_strided_slice %216 {offsets = [6, 0], sizes = [1, 64], strides = [1, 1]} : vector<8x64xf32> to vector<1x64xf32>
    %230 = vector.extract_strided_slice %216 {offsets = [7, 0], sizes = [1, 64], strides = [1, 1]} : vector<8x64xf32> to vector<1x64xf32>
    %231 = arith.maximumf %229, %230 : vector<1x64xf32>
    %c3_163 = arith.constant 3 : index
    %c0_164 = arith.constant 0 : index
    %232 = vector.load %arg18[%c3_163, %c0_164] : memref<8x192xf32, #tpu.memory_space<vmem>>, vector<1x64xf32>
    tpu.vector_store %arg18[%c3_163, %c0_164], %231 {strides = array<i32>} : memref<8x192xf32, #tpu.memory_space<vmem>>, vector<1x64xf32>,
    %c0_165 = arith.constant 0 : index
    %c0_166 = arith.constant 0 : index
    %233 = vector.load %arg18[%c0_165, %c0_166] : memref<8x192xf32, #tpu.memory_space<vmem>>, vector<4x56xf32>
    %c0_167 = arith.constant 0 : index
    %c8_168 = arith.constant 8 : index
    %234 = vector.load %arg18[%c0_167, %c8_168] : memref<8x192xf32, #tpu.memory_space<vmem>>, vector<4x56xf32>
    %235 = arith.maximumf %233, %234 : vector<4x56xf32>
    %236 = arith.truncf %235 : vector<4x56xf32> to vector<4x56xbf16>
    %c0_169 = arith.constant 0 : index
    %c0_170 = arith.constant 0 : index
    %237 = vector.load %arg5[%c0_169, %c0_170] : memref<56x32xbf16, #tpu.memory_space<vmem>>, vector<56x32xbf16>
    %cst_171 = arith.constant dense<0.000000e+00> : vector<4x32xf32>
    %238 = tpu.matmul %236, %237, %cst_171 {dimension_numbers = #tpu.dot_dimension_numbers<[1], [0], [0], [1], [0, 0, 1, 1], [], []>} : vector<4x56xbf16>, vector<56x32xbf16>, vector<4x32xf32> -> vector<4x32xf32>
    %239 = arith.truncf %238 : vector<4x32xf32> to vector<4x32xbf16>
    %c1_172 = arith.constant 1 : index
    %c8_173 = arith.constant 8 : index
    %240 = vector.load %arg20[%c1_172, %c8_173] : memref<6x48xbf16, #tpu.memory_space<vmem>>, vector<4x32xbf16>
    tpu.vector_store %arg20[%c1_172, %c8_173], %239 {strides = array<i32>} : memref<6x48xbf16, #tpu.memory_space<vmem>>, vector<4x32xbf16>,
    %c0_174 = arith.constant 0 : index
    %c128 = arith.constant 128 : index
    %241 = vector.load %arg15[%c0_174, %c128] : memref<2x1184xf32, #tpu.memory_space<vmem>>, vector<1x480xf32>
    %c1_175 = arith.constant 1 : index
    %c128_176 = arith.constant 128 : index
    %242 = vector.load %arg15[%c1_175, %c128_176] : memref<2x1184xf32, #tpu.memory_space<vmem>>, vector<1x480xf32>
    %c0_177 = arith.constant 0 : index
    %c0_178 = arith.constant 0 : index
    %243 = vector.load %arg6[%c0_177, %c0_178] : memref<32x480xbf16, #tpu.memory_space<vmem>>, vector<32x480xbf16>
    %cst_179 = arith.constant dense<0.000000e+00> : vector<4x480xf32>
    %244 = tpu.matmul %239, %243, %cst_179 {dimension_numbers = #tpu.dot_dimension_numbers<[1], [0], [0], [1], [0, 0, 1, 1], [], []>} : vector<4x32xbf16>, vector<32x480xbf16>, vector<4x480xf32> -> vector<4x480xf32>
    %245 = vector.broadcast %241 : vector<1x480xf32> to vector<4x480xf32>
    %246 = arith.mulf %244, %245 : vector<4x480xf32>
    %247 = vector.broadcast %242 : vector<1x480xf32> to vector<4x480xf32>
    %248 = arith.addf %246, %247 : vector<4x480xf32>
    %cst_180 = arith.constant 0.000000e+00 : f32
    %249 = vector.broadcast %cst_180 : f32 to vector<4x480xf32>
    %250 = arith.maximumf %248, %249 : vector<4x480xf32>
    %251 = vector.extract_strided_slice %250 {offsets = [0, 0], sizes = [4, 32], strides = [1, 1]} : vector<4x480xf32> to vector<4x32xf32>
    %252 = vector.extract_strided_slice %250 {offsets = [0, 32], sizes = [4, 384], strides = [1, 1]} : vector<4x480xf32> to vector<4x384xf32>
    %253 = arith.truncf %252 : vector<4x384xf32> to vector<4x384xbf16>
    %c1_181 = arith.constant 1 : index
    %c0_182 = arith.constant 0 : index
    %254 = vector.load %arg21[%c1_181, %c0_182] : memref<6x384xbf16, #tpu.memory_space<vmem>>, vector<4x384xbf16>
    tpu.vector_store %arg21[%c1_181, %c0_182], %253 {strides = array<i32>} : memref<6x384xbf16, #tpu.memory_space<vmem>>, vector<4x384xbf16>,
    %255 = vector.extract_strided_slice %250 {offsets = [0, 416], sizes = [4, 64], strides = [1, 1]} : vector<4x480xf32> to vector<4x64xf32>
    %256 = arith.truncf %255 : vector<4x64xf32> to vector<4x64xbf16>
    %c2_183 = arith.constant 2 : index
    %c0_184 = arith.constant 0 : index
    %257 = vector.load %arg22[%c2_183, %c0_184] : memref<8x64xbf16, #tpu.memory_space<vmem>>, vector<4x64xbf16>
    tpu.vector_store %arg22[%c2_183, %c0_184], %256 {strides = array<i32>} : memref<8x64xbf16, #tpu.memory_space<vmem>>, vector<4x64xbf16>,
    %c0_185 = arith.constant 0 : index
    %c608 = arith.constant 608 : index
    %258 = vector.load %arg15[%c0_185, %c608] : memref<2x1184xf32, #tpu.memory_space<vmem>>, vector<1x64xf32>
    %c1_186 = arith.constant 1 : index
    %c608_187 = arith.constant 608 : index
    %259 = vector.load %arg15[%c1_186, %c608_187] : memref<2x1184xf32, #tpu.memory_space<vmem>>, vector<1x64xf32>
    %cst_188 = arith.constant 0.000000e+00 : f32
    %260 = vector.broadcast %cst_188 : f32 to vector<4x64xf32>
    %c0_189 = arith.constant 0 : index
    %c0_190 = arith.constant 0 : index
    %261 = vector.load %arg21[%c0_189, %c0_190] : memref<6x384xbf16, #tpu.memory_space<vmem>>, vector<4x384xbf16>
    %c0_191 = arith.constant 0 : index
    %c0_192 = arith.constant 0 : index
    %c0_193 = arith.constant 0 : index
    %262 = vector.load %arg7[%c0_191, %c0_192, %c0_193] : memref<3x384x64xbf16, #tpu.memory_space<vmem>>, vector<1x384x64xbf16>
    %263 = vector.shape_cast %262 : vector<1x384x64xbf16> to vector<384x64xbf16>
    %cst_194 = arith.constant dense<0.000000e+00> : vector<4x64xf32>
    %264 = tpu.matmul %261, %263, %cst_194 {dimension_numbers = #tpu.dot_dimension_numbers<[1], [0], [0], [1], [0, 0, 1, 1], [], []>} : vector<4x384xbf16>, vector<384x64xbf16>, vector<4x64xf32> -> vector<4x64xf32>
    %265 = arith.addf %260, %264 : vector<4x64xf32>
    %c1_195 = arith.constant 1 : index
    %c0_196 = arith.constant 0 : index
    %266 = vector.load %arg21[%c1_195, %c0_196] : memref<6x384xbf16, #tpu.memory_space<vmem>>, vector<4x384xbf16>
    %c1_197 = arith.constant 1 : index
    %c0_198 = arith.constant 0 : index
    %c0_199 = arith.constant 0 : index
    %267 = vector.load %arg7[%c1_197, %c0_198, %c0_199] : memref<3x384x64xbf16, #tpu.memory_space<vmem>>, vector<1x384x64xbf16>
    %268 = vector.shape_cast %267 : vector<1x384x64xbf16> to vector<384x64xbf16>
    %cst_200 = arith.constant dense<0.000000e+00> : vector<4x64xf32>
    %269 = tpu.matmul %266, %268, %cst_200 {dimension_numbers = #tpu.dot_dimension_numbers<[1], [0], [0], [1], [0, 0, 1, 1], [], []>} : vector<4x384xbf16>, vector<384x64xbf16>, vector<4x64xf32> -> vector<4x64xf32>
    %270 = arith.addf %265, %269 : vector<4x64xf32>
    %c2_201 = arith.constant 2 : index
    %c0_202 = arith.constant 0 : index
    %271 = vector.load %arg21[%c2_201, %c0_202] : memref<6x384xbf16, #tpu.memory_space<vmem>>, vector<4x384xbf16>
    %c2_203 = arith.constant 2 : index
    %c0_204 = arith.constant 0 : index
    %c0_205 = arith.constant 0 : index
    %272 = vector.load %arg7[%c2_203, %c0_204, %c0_205] : memref<3x384x64xbf16, #tpu.memory_space<vmem>>, vector<1x384x64xbf16>
    %273 = vector.shape_cast %272 : vector<1x384x64xbf16> to vector<384x64xbf16>
    %cst_206 = arith.constant dense<0.000000e+00> : vector<4x64xf32>
    %274 = tpu.matmul %271, %273, %cst_206 {dimension_numbers = #tpu.dot_dimension_numbers<[1], [0], [0], [1], [0, 0, 1, 1], [], []>} : vector<4x384xbf16>, vector<384x64xbf16>, vector<4x64xf32> -> vector<4x64xf32>
    %275 = arith.addf %270, %274 : vector<4x64xf32>
    %276 = vector.broadcast %258 : vector<1x64xf32> to vector<4x64xf32>
    %277 = arith.mulf %275, %276 : vector<4x64xf32>
    %278 = vector.broadcast %259 : vector<1x64xf32> to vector<4x64xf32>
    %279 = arith.addf %277, %278 : vector<4x64xf32>
    %cst_207 = arith.constant 0.000000e+00 : f32
    %280 = vector.broadcast %cst_207 : f32 to vector<4x64xf32>
    %281 = arith.maximumf %279, %280 : vector<4x64xf32>
    %c0_208 = arith.constant 0 : index
    %c672 = arith.constant 672 : index
    %282 = vector.load %arg15[%c0_208, %c672] : memref<2x1184xf32, #tpu.memory_space<vmem>>, vector<1x32xf32>
    %c1_209 = arith.constant 1 : index
    %c672_210 = arith.constant 672 : index
    %283 = vector.load %arg15[%c1_209, %c672_210] : memref<2x1184xf32, #tpu.memory_space<vmem>>, vector<1x32xf32>
    %cst_211 = arith.constant 0.000000e+00 : f32
    %284 = vector.broadcast %cst_211 : f32 to vector<4x32xf32>
    %c0_212 = arith.constant 0 : index
    %c0_213 = arith.constant 0 : index
    %285 = vector.load %arg22[%c0_212, %c0_213] : memref<8x64xbf16, #tpu.memory_space<vmem>>, vector<4x64xbf16>
    %c0_214 = arith.constant 0 : index
    %c0_215 = arith.constant 0 : index
    %c0_216 = arith.constant 0 : index
    %286 = vector.load %arg8[%c0_214, %c0_215, %c0_216] : memref<5x64x32xbf16, #tpu.memory_space<vmem>>, vector<1x64x32xbf16>
    %287 = vector.shape_cast %286 : vector<1x64x32xbf16> to vector<64x32xbf16>
    %cst_217 = arith.constant dense<0.000000e+00> : vector<4x32xf32>
    %288 = tpu.matmul %285, %287, %cst_217 {dimension_numbers = #tpu.dot_dimension_numbers<[1], [0], [0], [1], [0, 0, 1, 1], [], []>} : vector<4x64xbf16>, vector<64x32xbf16>, vector<4x32xf32> -> vector<4x32xf32>
    %289 = arith.addf %284, %288 : vector<4x32xf32>
    %c1_218 = arith.constant 1 : index
    %c0_219 = arith.constant 0 : index
    %290 = vector.load %arg22[%c1_218, %c0_219] : memref<8x64xbf16, #tpu.memory_space<vmem>>, vector<4x64xbf16>
    %c1_220 = arith.constant 1 : index
    %c0_221 = arith.constant 0 : index
    %c0_222 = arith.constant 0 : index
    %291 = vector.load %arg8[%c1_220, %c0_221, %c0_222] : memref<5x64x32xbf16, #tpu.memory_space<vmem>>, vector<1x64x32xbf16>
    %292 = vector.shape_cast %291 : vector<1x64x32xbf16> to vector<64x32xbf16>
    %cst_223 = arith.constant dense<0.000000e+00> : vector<4x32xf32>
    %293 = tpu.matmul %290, %292, %cst_223 {dimension_numbers = #tpu.dot_dimension_numbers<[1], [0], [0], [1], [0, 0, 1, 1], [], []>} : vector<4x64xbf16>, vector<64x32xbf16>, vector<4x32xf32> -> vector<4x32xf32>
    %294 = arith.addf %289, %293 : vector<4x32xf32>
    %c2_224 = arith.constant 2 : index
    %c0_225 = arith.constant 0 : index
    %295 = vector.load %arg22[%c2_224, %c0_225] : memref<8x64xbf16, #tpu.memory_space<vmem>>, vector<4x64xbf16>
    %c2_226 = arith.constant 2 : index
    %c0_227 = arith.constant 0 : index
    %c0_228 = arith.constant 0 : index
    %296 = vector.load %arg8[%c2_226, %c0_227, %c0_228] : memref<5x64x32xbf16, #tpu.memory_space<vmem>>, vector<1x64x32xbf16>
    %297 = vector.shape_cast %296 : vector<1x64x32xbf16> to vector<64x32xbf16>
    %cst_229 = arith.constant dense<0.000000e+00> : vector<4x32xf32>
    %298 = tpu.matmul %295, %297, %cst_229 {dimension_numbers = #tpu.dot_dimension_numbers<[1], [0], [0], [1], [0, 0, 1, 1], [], []>} : vector<4x64xbf16>, vector<64x32xbf16>, vector<4x32xf32> -> vector<4x32xf32>
    %299 = arith.addf %294, %298 : vector<4x32xf32>
    %c3_230 = arith.constant 3 : index
    %c0_231 = arith.constant 0 : index
    %300 = vector.load %arg22[%c3_230, %c0_231] : memref<8x64xbf16, #tpu.memory_space<vmem>>, vector<4x64xbf16>
    %c3_232 = arith.constant 3 : index
    %c0_233 = arith.constant 0 : index
    %c0_234 = arith.constant 0 : index
    %301 = vector.load %arg8[%c3_232, %c0_233, %c0_234] : memref<5x64x32xbf16, #tpu.memory_space<vmem>>, vector<1x64x32xbf16>
    %302 = vector.shape_cast %301 : vector<1x64x32xbf16> to vector<64x32xbf16>
    %cst_235 = arith.constant dense<0.000000e+00> : vector<4x32xf32>
    %303 = tpu.matmul %300, %302, %cst_235 {dimension_numbers = #tpu.dot_dimension_numbers<[1], [0], [0], [1], [0, 0, 1, 1], [], []>} : vector<4x64xbf16>, vector<64x32xbf16>, vector<4x32xf32> -> vector<4x32xf32>
    %304 = arith.addf %299, %303 : vector<4x32xf32>
    %c4_236 = arith.constant 4 : index
    %c0_237 = arith.constant 0 : index
    %305 = vector.load %arg22[%c4_236, %c0_237] : memref<8x64xbf16, #tpu.memory_space<vmem>>, vector<4x64xbf16>
    %c4_238 = arith.constant 4 : index
    %c0_239 = arith.constant 0 : index
    %c0_240 = arith.constant 0 : index
    %306 = vector.load %arg8[%c4_238, %c0_239, %c0_240] : memref<5x64x32xbf16, #tpu.memory_space<vmem>>, vector<1x64x32xbf16>
    %307 = vector.shape_cast %306 : vector<1x64x32xbf16> to vector<64x32xbf16>
    %cst_241 = arith.constant dense<0.000000e+00> : vector<4x32xf32>
    %308 = tpu.matmul %305, %307, %cst_241 {dimension_numbers = #tpu.dot_dimension_numbers<[1], [0], [0], [1], [0, 0, 1, 1], [], []>} : vector<4x64xbf16>, vector<64x32xbf16>, vector<4x32xf32> -> vector<4x32xf32>
    %309 = arith.addf %304, %308 : vector<4x32xf32>
    %310 = vector.broadcast %282 : vector<1x32xf32> to vector<4x32xf32>
    %311 = arith.mulf %309, %310 : vector<4x32xf32>
    %312 = vector.broadcast %283 : vector<1x32xf32> to vector<4x32xf32>
    %313 = arith.addf %311, %312 : vector<4x32xf32>
    %cst_242 = arith.constant 0.000000e+00 : f32
    %314 = vector.broadcast %cst_242 : f32 to vector<4x32xf32>
    %315 = arith.maximumf %313, %314 : vector<4x32xf32>
    %c1_243 = arith.constant 1 : index
    %c8_244 = arith.constant 8 : index
    %316 = vector.load %arg20[%c1_243, %c8_244] : memref<6x48xbf16, #tpu.memory_space<vmem>>, vector<4x32xbf16>
    %c0_245 = arith.constant 0 : index
    %c0_246 = arith.constant 0 : index
    %317 = vector.load %arg20[%c0_245, %c0_246] : memref<6x48xbf16, #tpu.memory_space<vmem>>, vector<4x32xbf16>
    %318 = arith.maximumf %316, %317 : vector<4x32xbf16>
    %c0_247 = arith.constant 0 : index
    %c8_248 = arith.constant 8 : index
    %319 = vector.load %arg20[%c0_247, %c8_248] : memref<6x48xbf16, #tpu.memory_space<vmem>>, vector<4x32xbf16>
    %320 = arith.maximumf %318, %319 : vector<4x32xbf16>
    %c0_249 = arith.constant 0 : index
    %c16_250 = arith.constant 16 : index
    %321 = vector.load %arg20[%c0_249, %c16_250] : memref<6x48xbf16, #tpu.memory_space<vmem>>, vector<4x32xbf16>
    %322 = arith.maximumf %320, %321 : vector<4x32xbf16>
    %c1_251 = arith.constant 1 : index
    %c0_252 = arith.constant 0 : index
    %323 = vector.load %arg20[%c1_251, %c0_252] : memref<6x48xbf16, #tpu.memory_space<vmem>>, vector<4x32xbf16>
    %324 = arith.maximumf %322, %323 : vector<4x32xbf16>
    %c1_253 = arith.constant 1 : index
    %c16_254 = arith.constant 16 : index
    %325 = vector.load %arg20[%c1_253, %c16_254] : memref<6x48xbf16, #tpu.memory_space<vmem>>, vector<4x32xbf16>
    %326 = arith.maximumf %324, %325 : vector<4x32xbf16>
    %c2_255 = arith.constant 2 : index
    %c0_256 = arith.constant 0 : index
    %327 = vector.load %arg20[%c2_255, %c0_256] : memref<6x48xbf16, #tpu.memory_space<vmem>>, vector<4x32xbf16>
    %328 = arith.maximumf %326, %327 : vector<4x32xbf16>
    %c2_257 = arith.constant 2 : index
    %c8_258 = arith.constant 8 : index
    %329 = vector.load %arg20[%c2_257, %c8_258] : memref<6x48xbf16, #tpu.memory_space<vmem>>, vector<4x32xbf16>
    %330 = arith.maximumf %328, %329 : vector<4x32xbf16>
    %c2_259 = arith.constant 2 : index
    %c16_260 = arith.constant 16 : index
    %331 = vector.load %arg20[%c2_259, %c16_260] : memref<6x48xbf16, #tpu.memory_space<vmem>>, vector<4x32xbf16>
    %332 = arith.maximumf %330, %331 : vector<4x32xbf16>
    %c0_261 = arith.constant 0 : index
    %c704 = arith.constant 704 : index
    %333 = vector.load %arg15[%c0_261, %c704] : memref<2x1184xf32, #tpu.memory_space<vmem>>, vector<1x64xf32>
    %c1_262 = arith.constant 1 : index
    %c704_263 = arith.constant 704 : index
    %334 = vector.load %arg15[%c1_262, %c704_263] : memref<2x1184xf32, #tpu.memory_space<vmem>>, vector<1x64xf32>
    %c0_264 = arith.constant 0 : index
    %c0_265 = arith.constant 0 : index
    %335 = vector.load %arg9[%c0_264, %c0_265] : memref<32x64xbf16, #tpu.memory_space<vmem>>, vector<32x64xbf16>
    %cst_266 = arith.constant dense<0.000000e+00> : vector<4x64xf32>
    %336 = tpu.matmul %332, %335, %cst_266 {dimension_numbers = #tpu.dot_dimension_numbers<[1], [0], [0], [1], [0, 0, 1, 1], [], []>} : vector<4x32xbf16>, vector<32x64xbf16>, vector<4x64xf32> -> vector<4x64xf32>
    %337 = vector.broadcast %333 : vector<1x64xf32> to vector<4x64xf32>
    %338 = arith.mulf %336, %337 : vector<4x64xf32>
    %339 = vector.broadcast %334 : vector<1x64xf32> to vector<4x64xf32>
    %340 = arith.addf %338, %339 : vector<4x64xf32>
    %cst_267 = arith.constant 0.000000e+00 : f32
    %341 = vector.broadcast %cst_267 : f32 to vector<4x64xf32>
    %342 = arith.maximumf %340, %341 : vector<4x64xf32>
    %343 = vector.extract_strided_slice %251 {offsets = [0, 0], sizes = [1, 32], strides = [1, 1]} : vector<4x32xf32> to vector<1x32xf32>
    %344 = vector.extract_strided_slice %251 {offsets = [1, 0], sizes = [1, 32], strides = [1, 1]} : vector<4x32xf32> to vector<1x32xf32>
    %345 = arith.maximumf %343, %344 : vector<1x32xf32>
    %c0_268 = arith.constant 0 : index
    %c0_269 = arith.constant 0 : index
    %346 = vector.load %arg18[%c0_268, %c0_269] : memref<8x192xf32, #tpu.memory_space<vmem>>, vector<1x32xf32>
    tpu.vector_store %arg18[%c0_268, %c0_269], %345 {strides = array<i32>} : memref<8x192xf32, #tpu.memory_space<vmem>>, vector<1x32xf32>,
    %347 = vector.extract_strided_slice %251 {offsets = [2, 0], sizes = [1, 32], strides = [1, 1]} : vector<4x32xf32> to vector<1x32xf32>
    %348 = vector.extract_strided_slice %251 {offsets = [3, 0], sizes = [1, 32], strides = [1, 1]} : vector<4x32xf32> to vector<1x32xf32>
    %349 = arith.maximumf %347, %348 : vector<1x32xf32>
    %c1_270 = arith.constant 1 : index
    %c0_271 = arith.constant 0 : index
    %350 = vector.load %arg18[%c1_270, %c0_271] : memref<8x192xf32, #tpu.memory_space<vmem>>, vector<1x32xf32>
    tpu.vector_store %arg18[%c1_270, %c0_271], %349 {strides = array<i32>} : memref<8x192xf32, #tpu.memory_space<vmem>>, vector<1x32xf32>,
    %351 = vector.extract_strided_slice %281 {offsets = [0, 0], sizes = [1, 64], strides = [1, 1]} : vector<4x64xf32> to vector<1x64xf32>
    %352 = vector.extract_strided_slice %281 {offsets = [1, 0], sizes = [1, 64], strides = [1, 1]} : vector<4x64xf32> to vector<1x64xf32>
    %353 = arith.maximumf %351, %352 : vector<1x64xf32>
    %c0_272 = arith.constant 0 : index
    %c32 = arith.constant 32 : index
    %354 = vector.load %arg18[%c0_272, %c32] : memref<8x192xf32, #tpu.memory_space<vmem>>, vector<1x64xf32>
    tpu.vector_store %arg18[%c0_272, %c32], %353 {strides = array<i32>} : memref<8x192xf32, #tpu.memory_space<vmem>>, vector<1x64xf32>,
    %355 = vector.extract_strided_slice %281 {offsets = [2, 0], sizes = [1, 64], strides = [1, 1]} : vector<4x64xf32> to vector<1x64xf32>
    %356 = vector.extract_strided_slice %281 {offsets = [3, 0], sizes = [1, 64], strides = [1, 1]} : vector<4x64xf32> to vector<1x64xf32>
    %357 = arith.maximumf %355, %356 : vector<1x64xf32>
    %c1_273 = arith.constant 1 : index
    %c32_274 = arith.constant 32 : index
    %358 = vector.load %arg18[%c1_273, %c32_274] : memref<8x192xf32, #tpu.memory_space<vmem>>, vector<1x64xf32>
    tpu.vector_store %arg18[%c1_273, %c32_274], %357 {strides = array<i32>} : memref<8x192xf32, #tpu.memory_space<vmem>>, vector<1x64xf32>,
    %359 = vector.extract_strided_slice %315 {offsets = [0, 0], sizes = [1, 32], strides = [1, 1]} : vector<4x32xf32> to vector<1x32xf32>
    %360 = vector.extract_strided_slice %315 {offsets = [1, 0], sizes = [1, 32], strides = [1, 1]} : vector<4x32xf32> to vector<1x32xf32>
    %361 = arith.maximumf %359, %360 : vector<1x32xf32>
    %c0_275 = arith.constant 0 : index
    %c96 = arith.constant 96 : index
    %362 = vector.load %arg18[%c0_275, %c96] : memref<8x192xf32, #tpu.memory_space<vmem>>, vector<1x32xf32>
    tpu.vector_store %arg18[%c0_275, %c96], %361 {strides = array<i32>} : memref<8x192xf32, #tpu.memory_space<vmem>>, vector<1x32xf32>,
    %363 = vector.extract_strided_slice %315 {offsets = [2, 0], sizes = [1, 32], strides = [1, 1]} : vector<4x32xf32> to vector<1x32xf32>
    %364 = vector.extract_strided_slice %315 {offsets = [3, 0], sizes = [1, 32], strides = [1, 1]} : vector<4x32xf32> to vector<1x32xf32>
    %365 = arith.maximumf %363, %364 : vector<1x32xf32>
    %c1_276 = arith.constant 1 : index
    %c96_277 = arith.constant 96 : index
    %366 = vector.load %arg18[%c1_276, %c96_277] : memref<8x192xf32, #tpu.memory_space<vmem>>, vector<1x32xf32>
    tpu.vector_store %arg18[%c1_276, %c96_277], %365 {strides = array<i32>} : memref<8x192xf32, #tpu.memory_space<vmem>>, vector<1x32xf32>,
    %367 = vector.extract_strided_slice %342 {offsets = [0, 0], sizes = [1, 64], strides = [1, 1]} : vector<4x64xf32> to vector<1x64xf32>
    %368 = vector.extract_strided_slice %342 {offsets = [1, 0], sizes = [1, 64], strides = [1, 1]} : vector<4x64xf32> to vector<1x64xf32>
    %369 = arith.maximumf %367, %368 : vector<1x64xf32>
    %c0_278 = arith.constant 0 : index
    %c128_279 = arith.constant 128 : index
    %370 = vector.load %arg18[%c0_278, %c128_279] : memref<8x192xf32, #tpu.memory_space<vmem>>, vector<1x64xf32>
    tpu.vector_store %arg18[%c0_278, %c128_279], %369 {strides = array<i32>} : memref<8x192xf32, #tpu.memory_space<vmem>>, vector<1x64xf32>,
    %371 = vector.extract_strided_slice %342 {offsets = [2, 0], sizes = [1, 64], strides = [1, 1]} : vector<4x64xf32> to vector<1x64xf32>
    %372 = vector.extract_strided_slice %342 {offsets = [3, 0], sizes = [1, 64], strides = [1, 1]} : vector<4x64xf32> to vector<1x64xf32>
    %373 = arith.maximumf %371, %372 : vector<1x64xf32>
    %c1_280 = arith.constant 1 : index
    %c128_281 = arith.constant 128 : index
    %374 = vector.load %arg18[%c1_280, %c128_281] : memref<8x192xf32, #tpu.memory_space<vmem>>, vector<1x64xf32>
    tpu.vector_store %arg18[%c1_280, %c128_281], %373 {strides = array<i32>} : memref<8x192xf32, #tpu.memory_space<vmem>>, vector<1x64xf32>,
    %c0_282 = arith.constant 0 : index
    %c0_283 = arith.constant 0 : index
    %375 = vector.load %arg18[%c0_282, %c0_283] : memref<8x192xf32, #tpu.memory_space<vmem>>, vector<2x24xf32>
    %c0_284 = arith.constant 0 : index
    %c8_285 = arith.constant 8 : index
    %376 = vector.load %arg18[%c0_284, %c8_285] : memref<8x192xf32, #tpu.memory_space<vmem>>, vector<2x24xf32>
    %377 = arith.maximumf %375, %376 : vector<2x24xf32>
    %378 = arith.truncf %377 : vector<2x24xf32> to vector<2x24xbf16>
    %c0_286 = arith.constant 0 : index
    %c0_287 = arith.constant 0 : index
    %379 = vector.load %arg10[%c0_286, %c0_287] : memref<144x96xbf16, #tpu.memory_space<vmem>>, vector<24x96xbf16>
    %cst_288 = arith.constant dense<0.000000e+00> : vector<2x96xf32>
    %380 = tpu.matmul %378, %379, %cst_288 {dimension_numbers = #tpu.dot_dimension_numbers<[1], [0], [0], [1], [0, 0, 1, 1], [], []>} : vector<2x24xbf16>, vector<24x96xbf16>, vector<2x96xf32> -> vector<2x96xf32>
    %c0_289 = arith.constant 0 : index
    %c32_290 = arith.constant 32 : index
    %381 = vector.load %arg18[%c0_289, %c32_290] : memref<8x192xf32, #tpu.memory_space<vmem>>, vector<2x48xf32>
    %c0_291 = arith.constant 0 : index
    %c48 = arith.constant 48 : index
    %382 = vector.load %arg18[%c0_291, %c48] : memref<8x192xf32, #tpu.memory_space<vmem>>, vector<2x48xf32>
    %383 = arith.maximumf %381, %382 : vector<2x48xf32>
    %384 = arith.truncf %383 : vector<2x48xf32> to vector<2x48xbf16>
    %c24_292 = arith.constant 24 : index
    %c0_293 = arith.constant 0 : index
    %385 = vector.load %arg10[%c24_292, %c0_293] : memref<144x96xbf16, #tpu.memory_space<vmem>>, vector<48x96xbf16>
    %cst_294 = arith.constant dense<0.000000e+00> : vector<2x96xf32>
    %386 = tpu.matmul %384, %385, %cst_294 {dimension_numbers = #tpu.dot_dimension_numbers<[1], [0], [0], [1], [0, 0, 1, 1], [], []>} : vector<2x48xbf16>, vector<48x96xbf16>, vector<2x96xf32> -> vector<2x96xf32>
    %387 = arith.addf %380, %386 : vector<2x96xf32>
    %c0_295 = arith.constant 0 : index
    %c96_296 = arith.constant 96 : index
    %388 = vector.load %arg18[%c0_295, %c96_296] : memref<8x192xf32, #tpu.memory_space<vmem>>, vector<2x24xf32>
    %c0_297 = arith.constant 0 : index
    %c104 = arith.constant 104 : index
    %389 = vector.load %arg18[%c0_297, %c104] : memref<8x192xf32, #tpu.memory_space<vmem>>, vector<2x24xf32>
    %390 = arith.maximumf %388, %389 : vector<2x24xf32>
    %391 = arith.truncf %390 : vector<2x24xf32> to vector<2x24xbf16>
    %c72 = arith.constant 72 : index
    %c0_298 = arith.constant 0 : index
    %392 = vector.load %arg10[%c72, %c0_298] : memref<144x96xbf16, #tpu.memory_space<vmem>>, vector<24x96xbf16>
    %cst_299 = arith.constant dense<0.000000e+00> : vector<2x96xf32>
    %393 = tpu.matmul %391, %392, %cst_299 {dimension_numbers = #tpu.dot_dimension_numbers<[1], [0], [0], [1], [0, 0, 1, 1], [], []>} : vector<2x24xbf16>, vector<24x96xbf16>, vector<2x96xf32> -> vector<2x96xf32>
    %394 = arith.addf %387, %393 : vector<2x96xf32>
    %c0_300 = arith.constant 0 : index
    %c128_301 = arith.constant 128 : index
    %395 = vector.load %arg18[%c0_300, %c128_301] : memref<8x192xf32, #tpu.memory_space<vmem>>, vector<2x48xf32>
    %c0_302 = arith.constant 0 : index
    %c144 = arith.constant 144 : index
    %396 = vector.load %arg18[%c0_302, %c144] : memref<8x192xf32, #tpu.memory_space<vmem>>, vector<2x48xf32>
    %397 = arith.maximumf %395, %396 : vector<2x48xf32>
    %398 = arith.truncf %397 : vector<2x48xf32> to vector<2x48xbf16>
    %c96_303 = arith.constant 96 : index
    %c0_304 = arith.constant 0 : index
    %399 = vector.load %arg10[%c96_303, %c0_304] : memref<144x96xbf16, #tpu.memory_space<vmem>>, vector<48x96xbf16>
    %cst_305 = arith.constant dense<0.000000e+00> : vector<2x96xf32>
    %400 = tpu.matmul %398, %399, %cst_305 {dimension_numbers = #tpu.dot_dimension_numbers<[1], [0], [0], [1], [0, 0, 1, 1], [], []>} : vector<2x48xbf16>, vector<48x96xbf16>, vector<2x96xf32> -> vector<2x96xf32>
    %401 = arith.addf %394, %400 : vector<2x96xf32>
    %402 = arith.truncf %401 : vector<2x96xf32> to vector<2x96xbf16>
    %c1_306 = arith.constant 1 : index
    %c48_307 = arith.constant 48 : index
    %403 = vector.load %arg23[%c1_306, %c48_307] : memref<4x192xbf16, #tpu.memory_space<vmem>>, vector<2x96xbf16>
    tpu.vector_store %arg23[%c1_306, %c48_307], %402 {strides = array<i32>} : memref<4x192xbf16, #tpu.memory_space<vmem>>, vector<2x96xbf16>,
    %c0_308 = arith.constant 0 : index
    %c768 = arith.constant 768 : index
    %404 = vector.load %arg15[%c0_308, %c768] : memref<2x1184xf32, #tpu.memory_space<vmem>>, vector<1x256xf32>
    %c1_309 = arith.constant 1 : index
    %c768_310 = arith.constant 768 : index
    %405 = vector.load %arg15[%c1_309, %c768_310] : memref<2x1184xf32, #tpu.memory_space<vmem>>, vector<1x256xf32>
    %c0_311 = arith.constant 0 : index
    %c0_312 = arith.constant 0 : index
    %406 = vector.load %arg11[%c0_311, %c0_312] : memref<96x256xbf16, #tpu.memory_space<vmem>>, vector<96x256xbf16>
    %cst_313 = arith.constant dense<0.000000e+00> : vector<2x256xf32>
    %407 = tpu.matmul %402, %406, %cst_313 {dimension_numbers = #tpu.dot_dimension_numbers<[1], [0], [0], [1], [0, 0, 1, 1], [], []>} : vector<2x96xbf16>, vector<96x256xbf16>, vector<2x256xf32> -> vector<2x256xf32>
    %408 = vector.broadcast %404 : vector<1x256xf32> to vector<2x256xf32>
    %409 = arith.mulf %407, %408 : vector<2x256xf32>
    %410 = vector.broadcast %405 : vector<1x256xf32> to vector<2x256xf32>
    %411 = arith.addf %409, %410 : vector<2x256xf32>
    %cst_314 = arith.constant 0.000000e+00 : f32
    %412 = vector.broadcast %cst_314 : f32 to vector<2x256xf32>
    %413 = arith.maximumf %411, %412 : vector<2x256xf32>
    %414 = vector.extract_strided_slice %413 {offsets = [0, 0], sizes = [2, 32], strides = [1, 1]} : vector<2x256xf32> to vector<2x32xf32>
    %415 = vector.extract_strided_slice %413 {offsets = [0, 32], sizes = [2, 192], strides = [1, 1]} : vector<2x256xf32> to vector<2x192xf32>
    %416 = arith.truncf %415 : vector<2x192xf32> to vector<2x192xbf16>
    %c1_315 = arith.constant 1 : index
    %c0_316 = arith.constant 0 : index
    %417 = vector.load %arg24[%c1_315, %c0_316] : memref<4x192xbf16, #tpu.memory_space<vmem>>, vector<2x192xbf16>
    tpu.vector_store %arg24[%c1_315, %c0_316], %416 {strides = array<i32>} : memref<4x192xbf16, #tpu.memory_space<vmem>>, vector<2x192xbf16>,
    %418 = vector.extract_strided_slice %413 {offsets = [0, 224], sizes = [2, 32], strides = [1, 1]} : vector<2x256xf32> to vector<2x32xf32>
    %419 = arith.truncf %418 : vector<2x32xf32> to vector<2x32xbf16>
    %c2_317 = arith.constant 2 : index
    %c0_318 = arith.constant 0 : index
    %420 = vector.load %arg25[%c2_317, %c0_318] : memref<6x32xbf16, #tpu.memory_space<vmem>>, vector<2x32xbf16>
    tpu.vector_store %arg25[%c2_317, %c0_318], %419 {strides = array<i32>} : memref<6x32xbf16, #tpu.memory_space<vmem>>, vector<2x32xbf16>,
    %c0_319 = arith.constant 0 : index
    %c1024 = arith.constant 1024 : index
    %421 = vector.load %arg15[%c0_319, %c1024] : memref<2x1184xf32, #tpu.memory_space<vmem>>, vector<1x64xf32>
    %c1_320 = arith.constant 1 : index
    %c1024_321 = arith.constant 1024 : index
    %422 = vector.load %arg15[%c1_320, %c1024_321] : memref<2x1184xf32, #tpu.memory_space<vmem>>, vector<1x64xf32>
    %cst_322 = arith.constant 0.000000e+00 : f32
    %423 = vector.broadcast %cst_322 : f32 to vector<2x64xf32>
    %c0_323 = arith.constant 0 : index
    %c0_324 = arith.constant 0 : index
    %424 = vector.load %arg24[%c0_323, %c0_324] : memref<4x192xbf16, #tpu.memory_space<vmem>>, vector<2x192xbf16>
    %c0_325 = arith.constant 0 : index
    %c0_326 = arith.constant 0 : index
    %c0_327 = arith.constant 0 : index
    %425 = vector.load %arg12[%c0_325, %c0_326, %c0_327] : memref<3x192x64xbf16, #tpu.memory_space<vmem>>, vector<1x192x64xbf16>
    %426 = vector.shape_cast %425 : vector<1x192x64xbf16> to vector<192x64xbf16>
    %cst_328 = arith.constant dense<0.000000e+00> : vector<2x64xf32>
    %427 = tpu.matmul %424, %426, %cst_328 {dimension_numbers = #tpu.dot_dimension_numbers<[1], [0], [0], [1], [0, 0, 1, 1], [], []>} : vector<2x192xbf16>, vector<192x64xbf16>, vector<2x64xf32> -> vector<2x64xf32>
    %428 = arith.addf %423, %427 : vector<2x64xf32>
    %c1_329 = arith.constant 1 : index
    %c0_330 = arith.constant 0 : index
    %429 = vector.load %arg24[%c1_329, %c0_330] : memref<4x192xbf16, #tpu.memory_space<vmem>>, vector<2x192xbf16>
    %c1_331 = arith.constant 1 : index
    %c0_332 = arith.constant 0 : index
    %c0_333 = arith.constant 0 : index
    %430 = vector.load %arg12[%c1_331, %c0_332, %c0_333] : memref<3x192x64xbf16, #tpu.memory_space<vmem>>, vector<1x192x64xbf16>
    %431 = vector.shape_cast %430 : vector<1x192x64xbf16> to vector<192x64xbf16>
    %cst_334 = arith.constant dense<0.000000e+00> : vector<2x64xf32>
    %432 = tpu.matmul %429, %431, %cst_334 {dimension_numbers = #tpu.dot_dimension_numbers<[1], [0], [0], [1], [0, 0, 1, 1], [], []>} : vector<2x192xbf16>, vector<192x64xbf16>, vector<2x64xf32> -> vector<2x64xf32>
    %433 = arith.addf %428, %432 : vector<2x64xf32>
    %c2_335 = arith.constant 2 : index
    %c0_336 = arith.constant 0 : index
    %434 = vector.load %arg24[%c2_335, %c0_336] : memref<4x192xbf16, #tpu.memory_space<vmem>>, vector<2x192xbf16>
    %c2_337 = arith.constant 2 : index
    %c0_338 = arith.constant 0 : index
    %c0_339 = arith.constant 0 : index
    %435 = vector.load %arg12[%c2_337, %c0_338, %c0_339] : memref<3x192x64xbf16, #tpu.memory_space<vmem>>, vector<1x192x64xbf16>
    %436 = vector.shape_cast %435 : vector<1x192x64xbf16> to vector<192x64xbf16>
    %cst_340 = arith.constant dense<0.000000e+00> : vector<2x64xf32>
    %437 = tpu.matmul %434, %436, %cst_340 {dimension_numbers = #tpu.dot_dimension_numbers<[1], [0], [0], [1], [0, 0, 1, 1], [], []>} : vector<2x192xbf16>, vector<192x64xbf16>, vector<2x64xf32> -> vector<2x64xf32>
    %438 = arith.addf %433, %437 : vector<2x64xf32>
    %439 = vector.broadcast %421 : vector<1x64xf32> to vector<2x64xf32>
    %440 = arith.mulf %438, %439 : vector<2x64xf32>
    %441 = vector.broadcast %422 : vector<1x64xf32> to vector<2x64xf32>
    %442 = arith.addf %440, %441 : vector<2x64xf32>
    %cst_341 = arith.constant 0.000000e+00 : f32
    %443 = vector.broadcast %cst_341 : f32 to vector<2x64xf32>
    %444 = arith.maximumf %442, %443 : vector<2x64xf32>
    %c0_342 = arith.constant 0 : index
    %c1088 = arith.constant 1088 : index
    %445 = vector.load %arg15[%c0_342, %c1088] : memref<2x1184xf32, #tpu.memory_space<vmem>>, vector<1x32xf32>
    %c1_343 = arith.constant 1 : index
    %c1088_344 = arith.constant 1088 : index
    %446 = vector.load %arg15[%c1_343, %c1088_344] : memref<2x1184xf32, #tpu.memory_space<vmem>>, vector<1x32xf32>
    %cst_345 = arith.constant 0.000000e+00 : f32
    %447 = vector.broadcast %cst_345 : f32 to vector<2x32xf32>
    %c0_346 = arith.constant 0 : index
    %c0_347 = arith.constant 0 : index
    %448 = vector.load %arg25[%c0_346, %c0_347] : memref<6x32xbf16, #tpu.memory_space<vmem>>, vector<2x32xbf16>
    %c0_348 = arith.constant 0 : index
    %c0_349 = arith.constant 0 : index
    %c0_350 = arith.constant 0 : index
    %449 = vector.load %arg13[%c0_348, %c0_349, %c0_350] : memref<5x32x32xbf16, #tpu.memory_space<vmem>>, vector<1x32x32xbf16>
    %450 = vector.shape_cast %449 : vector<1x32x32xbf16> to vector<32x32xbf16>
    %cst_351 = arith.constant dense<0.000000e+00> : vector<2x32xf32>
    %451 = tpu.matmul %448, %450, %cst_351 {dimension_numbers = #tpu.dot_dimension_numbers<[1], [0], [0], [1], [0, 0, 1, 1], [], []>} : vector<2x32xbf16>, vector<32x32xbf16>, vector<2x32xf32> -> vector<2x32xf32>
    %452 = arith.addf %447, %451 : vector<2x32xf32>
    %c1_352 = arith.constant 1 : index
    %c0_353 = arith.constant 0 : index
    %453 = vector.load %arg25[%c1_352, %c0_353] : memref<6x32xbf16, #tpu.memory_space<vmem>>, vector<2x32xbf16>
    %c1_354 = arith.constant 1 : index
    %c0_355 = arith.constant 0 : index
    %c0_356 = arith.constant 0 : index
    %454 = vector.load %arg13[%c1_354, %c0_355, %c0_356] : memref<5x32x32xbf16, #tpu.memory_space<vmem>>, vector<1x32x32xbf16>
    %455 = vector.shape_cast %454 : vector<1x32x32xbf16> to vector<32x32xbf16>
    %cst_357 = arith.constant dense<0.000000e+00> : vector<2x32xf32>
    %456 = tpu.matmul %453, %455, %cst_357 {dimension_numbers = #tpu.dot_dimension_numbers<[1], [0], [0], [1], [0, 0, 1, 1], [], []>} : vector<2x32xbf16>, vector<32x32xbf16>, vector<2x32xf32> -> vector<2x32xf32>
    %457 = arith.addf %452, %456 : vector<2x32xf32>
    %c2_358 = arith.constant 2 : index
    %c0_359 = arith.constant 0 : index
    %458 = vector.load %arg25[%c2_358, %c0_359] : memref<6x32xbf16, #tpu.memory_space<vmem>>, vector<2x32xbf16>
    %c2_360 = arith.constant 2 : index
    %c0_361 = arith.constant 0 : index
    %c0_362 = arith.constant 0 : index
    %459 = vector.load %arg13[%c2_360, %c0_361, %c0_362] : memref<5x32x32xbf16, #tpu.memory_space<vmem>>, vector<1x32x32xbf16>
    %460 = vector.shape_cast %459 : vector<1x32x32xbf16> to vector<32x32xbf16>
    %cst_363 = arith.constant dense<0.000000e+00> : vector<2x32xf32>
    %461 = tpu.matmul %458, %460, %cst_363 {dimension_numbers = #tpu.dot_dimension_numbers<[1], [0], [0], [1], [0, 0, 1, 1], [], []>} : vector<2x32xbf16>, vector<32x32xbf16>, vector<2x32xf32> -> vector<2x32xf32>
    %462 = arith.addf %457, %461 : vector<2x32xf32>
    %c3_364 = arith.constant 3 : index
    %c0_365 = arith.constant 0 : index
    %463 = vector.load %arg25[%c3_364, %c0_365] : memref<6x32xbf16, #tpu.memory_space<vmem>>, vector<2x32xbf16>
    %c3_366 = arith.constant 3 : index
    %c0_367 = arith.constant 0 : index
    %c0_368 = arith.constant 0 : index
    %464 = vector.load %arg13[%c3_366, %c0_367, %c0_368] : memref<5x32x32xbf16, #tpu.memory_space<vmem>>, vector<1x32x32xbf16>
    %465 = vector.shape_cast %464 : vector<1x32x32xbf16> to vector<32x32xbf16>
    %cst_369 = arith.constant dense<0.000000e+00> : vector<2x32xf32>
    %466 = tpu.matmul %463, %465, %cst_369 {dimension_numbers = #tpu.dot_dimension_numbers<[1], [0], [0], [1], [0, 0, 1, 1], [], []>} : vector<2x32xbf16>, vector<32x32xbf16>, vector<2x32xf32> -> vector<2x32xf32>
    %467 = arith.addf %462, %466 : vector<2x32xf32>
    %c4_370 = arith.constant 4 : index
    %c0_371 = arith.constant 0 : index
    %468 = vector.load %arg25[%c4_370, %c0_371] : memref<6x32xbf16, #tpu.memory_space<vmem>>, vector<2x32xbf16>
    %c4_372 = arith.constant 4 : index
    %c0_373 = arith.constant 0 : index
    %c0_374 = arith.constant 0 : index
    %469 = vector.load %arg13[%c4_372, %c0_373, %c0_374] : memref<5x32x32xbf16, #tpu.memory_space<vmem>>, vector<1x32x32xbf16>
    %470 = vector.shape_cast %469 : vector<1x32x32xbf16> to vector<32x32xbf16>
    %cst_375 = arith.constant dense<0.000000e+00> : vector<2x32xf32>
    %471 = tpu.matmul %468, %470, %cst_375 {dimension_numbers = #tpu.dot_dimension_numbers<[1], [0], [0], [1], [0, 0, 1, 1], [], []>} : vector<2x32xbf16>, vector<32x32xbf16>, vector<2x32xf32> -> vector<2x32xf32>
    %472 = arith.addf %467, %471 : vector<2x32xf32>
    %473 = vector.broadcast %445 : vector<1x32xf32> to vector<2x32xf32>
    %474 = arith.mulf %472, %473 : vector<2x32xf32>
    %475 = vector.broadcast %446 : vector<1x32xf32> to vector<2x32xf32>
    %476 = arith.addf %474, %475 : vector<2x32xf32>
    %cst_376 = arith.constant 0.000000e+00 : f32
    %477 = vector.broadcast %cst_376 : f32 to vector<2x32xf32>
    %478 = arith.maximumf %476, %477 : vector<2x32xf32>
    %c1_377 = arith.constant 1 : index
    %c48_378 = arith.constant 48 : index
    %479 = vector.load %arg23[%c1_377, %c48_378] : memref<4x192xbf16, #tpu.memory_space<vmem>>, vector<2x96xbf16>
    %c0_379 = arith.constant 0 : index
    %c0_380 = arith.constant 0 : index
    %480 = vector.load %arg23[%c0_379, %c0_380] : memref<4x192xbf16, #tpu.memory_space<vmem>>, vector<2x96xbf16>
    %481 = arith.maximumf %479, %480 : vector<2x96xbf16>
    %c0_381 = arith.constant 0 : index
    %c48_382 = arith.constant 48 : index
    %482 = vector.load %arg23[%c0_381, %c48_382] : memref<4x192xbf16, #tpu.memory_space<vmem>>, vector<2x96xbf16>
    %483 = arith.maximumf %481, %482 : vector<2x96xbf16>
    %c0_383 = arith.constant 0 : index
    %c96_384 = arith.constant 96 : index
    %484 = vector.load %arg23[%c0_383, %c96_384] : memref<4x192xbf16, #tpu.memory_space<vmem>>, vector<2x96xbf16>
    %485 = arith.maximumf %483, %484 : vector<2x96xbf16>
    %c1_385 = arith.constant 1 : index
    %c0_386 = arith.constant 0 : index
    %486 = vector.load %arg23[%c1_385, %c0_386] : memref<4x192xbf16, #tpu.memory_space<vmem>>, vector<2x96xbf16>
    %487 = arith.maximumf %485, %486 : vector<2x96xbf16>
    %c1_387 = arith.constant 1 : index
    %c96_388 = arith.constant 96 : index
    %488 = vector.load %arg23[%c1_387, %c96_388] : memref<4x192xbf16, #tpu.memory_space<vmem>>, vector<2x96xbf16>
    %489 = arith.maximumf %487, %488 : vector<2x96xbf16>
    %c2_389 = arith.constant 2 : index
    %c0_390 = arith.constant 0 : index
    %490 = vector.load %arg23[%c2_389, %c0_390] : memref<4x192xbf16, #tpu.memory_space<vmem>>, vector<2x96xbf16>
    %491 = arith.maximumf %489, %490 : vector<2x96xbf16>
    %c2_391 = arith.constant 2 : index
    %c48_392 = arith.constant 48 : index
    %492 = vector.load %arg23[%c2_391, %c48_392] : memref<4x192xbf16, #tpu.memory_space<vmem>>, vector<2x96xbf16>
    %493 = arith.maximumf %491, %492 : vector<2x96xbf16>
    %c2_393 = arith.constant 2 : index
    %c96_394 = arith.constant 96 : index
    %494 = vector.load %arg23[%c2_393, %c96_394] : memref<4x192xbf16, #tpu.memory_space<vmem>>, vector<2x96xbf16>
    %495 = arith.maximumf %493, %494 : vector<2x96xbf16>
    %c0_395 = arith.constant 0 : index
    %c1120 = arith.constant 1120 : index
    %496 = vector.load %arg15[%c0_395, %c1120] : memref<2x1184xf32, #tpu.memory_space<vmem>>, vector<1x64xf32>
    %c1_396 = arith.constant 1 : index
    %c1120_397 = arith.constant 1120 : index
    %497 = vector.load %arg15[%c1_396, %c1120_397] : memref<2x1184xf32, #tpu.memory_space<vmem>>, vector<1x64xf32>
    %c0_398 = arith.constant 0 : index
    %c0_399 = arith.constant 0 : index
    %498 = vector.load %arg14[%c0_398, %c0_399] : memref<96x64xbf16, #tpu.memory_space<vmem>>, vector<96x64xbf16>
    %cst_400 = arith.constant dense<0.000000e+00> : vector<2x64xf32>
    %499 = tpu.matmul %495, %498, %cst_400 {dimension_numbers = #tpu.dot_dimension_numbers<[1], [0], [0], [1], [0, 0, 1, 1], [], []>} : vector<2x96xbf16>, vector<96x64xbf16>, vector<2x64xf32> -> vector<2x64xf32>
    %500 = vector.broadcast %496 : vector<1x64xf32> to vector<2x64xf32>
    %501 = arith.mulf %499, %500 : vector<2x64xf32>
    %502 = vector.broadcast %497 : vector<1x64xf32> to vector<2x64xf32>
    %503 = arith.addf %501, %502 : vector<2x64xf32>
    %cst_401 = arith.constant 0.000000e+00 : f32
    %504 = vector.broadcast %cst_401 : f32 to vector<2x64xf32>
    %505 = arith.maximumf %503, %504 : vector<2x64xf32>
    %506 = vector.extract_strided_slice %414 {offsets = [0, 0], sizes = [1, 16], strides = [1, 1]} : vector<2x32xf32> to vector<1x16xf32>
    %507 = vector.extract_strided_slice %414 {offsets = [0, 16], sizes = [1, 16], strides = [1, 1]} : vector<2x32xf32> to vector<1x16xf32>
    %508 = arith.addf %506, %507 : vector<1x16xf32>
    %509 = vector.extract_strided_slice %414 {offsets = [1, 0], sizes = [1, 16], strides = [1, 1]} : vector<2x32xf32> to vector<1x16xf32>
    %510 = arith.addf %508, %509 : vector<1x16xf32>
    %511 = vector.extract_strided_slice %414 {offsets = [1, 16], sizes = [1, 16], strides = [1, 1]} : vector<2x32xf32> to vector<1x16xf32>
    %512 = arith.addf %510, %511 : vector<1x16xf32>
    %cst_402 = arith.constant 2.500000e-01 : f32
    %513 = vector.broadcast %cst_402 : f32 to vector<1x16xf32>
    %514 = arith.mulf %513, %512 : vector<1x16xf32>
    %c0_403 = arith.constant 0 : index
    %c0_404 = arith.constant 0 : index
    %c0_405 = arith.constant 0 : index
    %515 = vector.load %arg16[%c0_403, %c0_404, %c0_405] : memref<1x1x96xf32, #tpu.memory_space<vmem>>, vector<1x1x16xf32>
    %516 = vector.shape_cast %515 : vector<1x1x16xf32> to vector<1x16xf32>
    %517 = vector.shape_cast %514 : vector<1x16xf32> to vector<1x1x16xf32>
    tpu.vector_store %arg16[%c0_403, %c0_404, %c0_405], %517 {strides = array<i32>} : memref<1x1x96xf32, #tpu.memory_space<vmem>>, vector<1x1x16xf32>,
    %518 = vector.extract_strided_slice %444 {offsets = [0, 0], sizes = [1, 32], strides = [1, 1]} : vector<2x64xf32> to vector<1x32xf32>
    %519 = vector.extract_strided_slice %444 {offsets = [0, 32], sizes = [1, 32], strides = [1, 1]} : vector<2x64xf32> to vector<1x32xf32>
    %520 = arith.addf %518, %519 : vector<1x32xf32>
    %521 = vector.extract_strided_slice %444 {offsets = [1, 0], sizes = [1, 32], strides = [1, 1]} : vector<2x64xf32> to vector<1x32xf32>
    %522 = arith.addf %520, %521 : vector<1x32xf32>
    %523 = vector.extract_strided_slice %444 {offsets = [1, 32], sizes = [1, 32], strides = [1, 1]} : vector<2x64xf32> to vector<1x32xf32>
    %524 = arith.addf %522, %523 : vector<1x32xf32>
    %cst_406 = arith.constant 2.500000e-01 : f32
    %525 = vector.broadcast %cst_406 : f32 to vector<1x32xf32>
    %526 = arith.mulf %525, %524 : vector<1x32xf32>
    %c0_407 = arith.constant 0 : index
    %c0_408 = arith.constant 0 : index
    %c16_409 = arith.constant 16 : index
    %527 = vector.load %arg16[%c0_407, %c0_408, %c16_409] : memref<1x1x96xf32, #tpu.memory_space<vmem>>, vector<1x1x32xf32>
    %528 = vector.shape_cast %527 : vector<1x1x32xf32> to vector<1x32xf32>
    %529 = vector.shape_cast %526 : vector<1x32xf32> to vector<1x1x32xf32>
    tpu.vector_store %arg16[%c0_407, %c0_408, %c16_409], %529 {strides = array<i32>} : memref<1x1x96xf32, #tpu.memory_space<vmem>>, vector<1x1x32xf32>,
    %530 = vector.extract_strided_slice %478 {offsets = [0, 0], sizes = [1, 16], strides = [1, 1]} : vector<2x32xf32> to vector<1x16xf32>
    %531 = vector.extract_strided_slice %478 {offsets = [0, 16], sizes = [1, 16], strides = [1, 1]} : vector<2x32xf32> to vector<1x16xf32>
    %532 = arith.addf %530, %531 : vector<1x16xf32>
    %533 = vector.extract_strided_slice %478 {offsets = [1, 0], sizes = [1, 16], strides = [1, 1]} : vector<2x32xf32> to vector<1x16xf32>
    %534 = arith.addf %532, %533 : vector<1x16xf32>
    %535 = vector.extract_strided_slice %478 {offsets = [1, 16], sizes = [1, 16], strides = [1, 1]} : vector<2x32xf32> to vector<1x16xf32>
    %536 = arith.addf %534, %535 : vector<1x16xf32>
    %cst_410 = arith.constant 2.500000e-01 : f32
    %537 = vector.broadcast %cst_410 : f32 to vector<1x16xf32>
    %538 = arith.mulf %537, %536 : vector<1x16xf32>
    %c0_411 = arith.constant 0 : index
    %c0_412 = arith.constant 0 : index
    %c48_413 = arith.constant 48 : index
    %539 = vector.load %arg16[%c0_411, %c0_412, %c48_413] : memref<1x1x96xf32, #tpu.memory_space<vmem>>, vector<1x1x16xf32>
    %540 = vector.shape_cast %539 : vector<1x1x16xf32> to vector<1x16xf32>
    %541 = vector.shape_cast %538 : vector<1x16xf32> to vector<1x1x16xf32>
    tpu.vector_store %arg16[%c0_411, %c0_412, %c48_413], %541 {strides = array<i32>} : memref<1x1x96xf32, #tpu.memory_space<vmem>>, vector<1x1x16xf32>,
    %542 = vector.extract_strided_slice %505 {offsets = [0, 0], sizes = [1, 32], strides = [1, 1]} : vector<2x64xf32> to vector<1x32xf32>
    %543 = vector.extract_strided_slice %505 {offsets = [0, 32], sizes = [1, 32], strides = [1, 1]} : vector<2x64xf32> to vector<1x32xf32>
    %544 = arith.addf %542, %543 : vector<1x32xf32>
    %545 = vector.extract_strided_slice %505 {offsets = [1, 0], sizes = [1, 32], strides = [1, 1]} : vector<2x64xf32> to vector<1x32xf32>
    %546 = arith.addf %544, %545 : vector<1x32xf32>
    %547 = vector.extract_strided_slice %505 {offsets = [1, 32], sizes = [1, 32], strides = [1, 1]} : vector<2x64xf32> to vector<1x32xf32>
    %548 = arith.addf %546, %547 : vector<1x32xf32>
    %cst_414 = arith.constant 2.500000e-01 : f32
    %549 = vector.broadcast %cst_414 : f32 to vector<1x32xf32>
    %550 = arith.mulf %549, %548 : vector<1x32xf32>
    %c0_415 = arith.constant 0 : index
    %c0_416 = arith.constant 0 : index
    %c64_417 = arith.constant 64 : index
    %551 = vector.load %arg16[%c0_415, %c0_416, %c64_417] : memref<1x1x96xf32, #tpu.memory_space<vmem>>, vector<1x1x32xf32>
    %552 = vector.shape_cast %551 : vector<1x1x32xf32> to vector<1x32xf32>
    %553 = vector.shape_cast %550 : vector<1x32xf32> to vector<1x1x32xf32>
    tpu.vector_store %arg16[%c0_415, %c0_416, %c64_417], %553 {strides = array<i32>} : memref<1x1x96xf32, #tpu.memory_space<vmem>>, vector<1x1x32xf32>,
    return
  }
  func.func @transform_0(%arg0: i32) -> (i32, i32, i32) {
    %c0_i32 = arith.constant 0 : i32
    %c0_i32_0 = arith.constant 0 : i32
    %c0_i32_1 = arith.constant 0 : i32
    return %arg0, %c0_i32, %c0_i32_0 : i32, i32, i32
  }
  func.func @transform_1(%arg0: i32) -> (i32, i32) {
    %c0_i32 = arith.constant 0 : i32
    %c0_i32_0 = arith.constant 0 : i32
    %c0_i32_1 = arith.constant 0 : i32
    return %c0_i32, %c0_i32_0 : i32, i32
  }
  func.func @transform_2(%arg0: i32) -> (i32, i32) {
    %c0_i32 = arith.constant 0 : i32
    %c0_i32_0 = arith.constant 0 : i32
    %c0_i32_1 = arith.constant 0 : i32
    return %c0_i32, %c0_i32_0 : i32, i32
  }
  func.func @transform_3(%arg0: i32) -> (i32, i32, i32) {
    %c0_i32 = arith.constant 0 : i32
    %c0_i32_0 = arith.constant 0 : i32
    %c0_i32_1 = arith.constant 0 : i32
    %c0_i32_2 = arith.constant 0 : i32
    return %c0_i32, %c0_i32_0, %c0_i32_1 : i32, i32, i32
  }
  func.func @transform_4(%arg0: i32) -> (i32, i32) {
    %c0_i32 = arith.constant 0 : i32
    %c0_i32_0 = arith.constant 0 : i32
    %c0_i32_1 = arith.constant 0 : i32
    return %c0_i32, %c0_i32_0 : i32, i32
  }
  func.func @transform_5(%arg0: i32) -> (i32, i32) {
    %c0_i32 = arith.constant 0 : i32
    %c0_i32_0 = arith.constant 0 : i32
    %c0_i32_1 = arith.constant 0 : i32
    return %c0_i32, %c0_i32_0 : i32, i32
  }
  func.func @transform_6(%arg0: i32) -> (i32, i32, i32) {
    %c0_i32 = arith.constant 0 : i32
    %c0_i32_0 = arith.constant 0 : i32
    %c0_i32_1 = arith.constant 0 : i32
    %c0_i32_2 = arith.constant 0 : i32
    return %c0_i32, %c0_i32_0, %c0_i32_1 : i32, i32, i32
  }
  func.func @transform_7(%arg0: i32) -> (i32, i32, i32) {
    %c0_i32 = arith.constant 0 : i32
    %c0_i32_0 = arith.constant 0 : i32
    %c0_i32_1 = arith.constant 0 : i32
    %c0_i32_2 = arith.constant 0 : i32
    return %c0_i32, %c0_i32_0, %c0_i32_1 : i32, i32, i32
  }
  func.func @transform_8(%arg0: i32) -> (i32, i32) {
    %c0_i32 = arith.constant 0 : i32
    %c0_i32_0 = arith.constant 0 : i32
    %c0_i32_1 = arith.constant 0 : i32
    return %c0_i32, %c0_i32_0 : i32, i32
  }
  func.func @transform_9(%arg0: i32) -> (i32, i32) {
    %c0_i32 = arith.constant 0 : i32
    %c0_i32_0 = arith.constant 0 : i32
    %c0_i32_1 = arith.constant 0 : i32
    return %c0_i32, %c0_i32_0 : i32, i32
  }
  func.func @transform_10(%arg0: i32) -> (i32, i32) {
    %c0_i32 = arith.constant 0 : i32
    %c0_i32_0 = arith.constant 0 : i32
    %c0_i32_1 = arith.constant 0 : i32
    return %c0_i32, %c0_i32_0 : i32, i32
  }
  func.func @transform_11(%arg0: i32) -> (i32, i32, i32) {
    %c0_i32 = arith.constant 0 : i32
    %c0_i32_0 = arith.constant 0 : i32
    %c0_i32_1 = arith.constant 0 : i32
    %c0_i32_2 = arith.constant 0 : i32
    return %c0_i32, %c0_i32_0, %c0_i32_1 : i32, i32, i32
  }
  func.func @transform_12(%arg0: i32) -> (i32, i32, i32) {
    %c0_i32 = arith.constant 0 : i32
    %c0_i32_0 = arith.constant 0 : i32
    %c0_i32_1 = arith.constant 0 : i32
    %c0_i32_2 = arith.constant 0 : i32
    return %c0_i32, %c0_i32_0, %c0_i32_1 : i32, i32, i32
  }
  func.func @transform_13(%arg0: i32) -> (i32, i32) {
    %c0_i32 = arith.constant 0 : i32
    %c0_i32_0 = arith.constant 0 : i32
    %c0_i32_1 = arith.constant 0 : i32
    return %c0_i32, %c0_i32_0 : i32, i32
  }
  func.func @transform_14(%arg0: i32) -> (i32, i32) {
    %c0_i32 = arith.constant 0 : i32
    %c0_i32_0 = arith.constant 0 : i32
    %c0_i32_1 = arith.constant 0 : i32
    return %c0_i32, %c0_i32_0 : i32, i32
  }
  func.func @transform_15(%arg0: i32) -> (i32, i32, i32) {
    %c0_i32 = arith.constant 0 : i32
    %c0_i32_0 = arith.constant 0 : i32
    %c0_i32_1 = arith.constant 0 : i32
    return %arg0, %c0_i32, %c0_i32_0 : i32, i32, i32
  }
}

</mosaic_0001>

<llo_original>
// kernel: apply_fn.1
$region0: #{apply_fn.1}
  #allocation0 [shape = 'u32[]', space=smem, size = 0x4, offset = 0x4, fixed_abs, tag = 'smem constant byte address 0x4 - core index']
  #allocation1 [shape = 'u32[144,128]{1,0:T(1,128)}', space=vmem, size = 0x12000, scoped, tag = 'internal scratch']
  #allocation2 [shape = 'f32[20,80]{1,0:T(8,128)}', space=vmem, size = 0x3000, scoped, tag = 'scratch operand']
  #allocation3 [shape = 'f32[8,192]{1,0:T(8,128)}', space=vmem, size = 0x2000, scoped, tag = 'scratch operand']
  #allocation4 [shape = 'bf16[10,32]{1,0:T(8,128)(2,1)}', space=vmem, size = 0x1000, scoped, tag = 'scratch operand']
  #allocation5 [shape = 'bf16[6,48]{1,0:T(8,128)(2,1)}', space=vmem, size = 0x800, scoped, tag = 'scratch operand']
  #allocation6 [shape = 'bf16[6,384]{1,0:T(8,128)(2,1)}', space=vmem, size = 0x1800, scoped, tag = 'scratch operand']
  #allocation7 [shape = 'bf16[8,64]{1,0:T(8,128)(2,1)}', space=vmem, size = 0x800, scoped, tag = 'scratch operand']
  #allocation8 [shape = 'bf16[4,192]{1,0:T(4,128)(2,1)}', space=vmem, size = 0x800, scoped, tag = 'scratch operand']
  #allocation9 [shape = 'bf16[4,192]{1,0:T(4,128)(2,1)}', space=vmem, size = 0x800, scoped, tag = 'scratch operand']
  #allocation10 [shape = 'bf16[6,32]{1,0:T(8,128)(2,1)}', space=vmem, size = 0x800, scoped, tag = 'scratch operand']
  %s0 = inlined_call_operand.vmem [shape: f32[2,16,64], index: 0, kind: input, shape index: {}]
  %s1 = inlined_call_operand.vmem [shape: f32[25,64], index: 1, kind: input, shape index: {}]
  %s2 = inlined_call_operand.vmem [shape: bf16[60,32], index: 2, kind: input, shape index: {}]
  %s3 = inlined_call_operand.vmem [shape: bf16[3,32,64], index: 3, kind: input, shape index: {}]
  %s4 = inlined_call_operand.vmem [shape: bf16[56,32], index: 4, kind: input, shape index: {}]
  %s5 = inlined_call_operand.vmem [shape: bf16[32,480], index: 5, kind: input, shape index: {}]
  %s6 = inlined_call_operand.vmem [shape: bf16[3,384,64], index: 6, kind: input, shape index: {}]
  %s7 = inlined_call_operand.vmem [shape: bf16[5,64,32], index: 7, kind: input, shape index: {}]
  %s8 = inlined_call_operand.vmem [shape: bf16[32,64], index: 8, kind: input, shape index: {}]
  %s9 = inlined_call_operand.vmem [shape: bf16[144,96], index: 9, kind: input, shape index: {}]
  %s10 = inlined_call_operand.vmem [shape: bf16[96,256], index: 10, kind: input, shape index: {}]
  %s11 = inlined_call_operand.vmem [shape: bf16[3,192,64], index: 11, kind: input, shape index: {}]
  %s12 = inlined_call_operand.vmem [shape: bf16[5,32,32], index: 12, kind: input, shape index: {}]
  %s13 = inlined_call_operand.vmem [shape: bf16[96,64], index: 13, kind: input, shape index: {}]
  %s14 = inlined_call_operand.vmem [shape: f32[2,1184], index: 14, kind: input, shape index: {}]
  %s15 = inlined_call_operand.hbm [shape: f32[2,1,96], index: 15, kind: output, shape index: {}]
  %s16 = sld [smem:[#allocation0]]
  $region93: #{apply_fn.1} parent=0
    _
  %s18 = ssub.s32 1, %s16
  %s19 = scalar_select 0, %s18, %s16
  $region1: #{apply_fn.1} parent=0
    #allocation11 [shape = 'u8[1024]{0}', space=vmem, size = 0x400, scoped, tag = 'output window, operand 0']
    #allocation12 [shape = 's32[2]{0}', space=sflag, size = 0x8, scoped, tag = 'scoped memory for apply_fn.1']
    %20 = vsyncpa [#allocation12], 0
    %s21 = scalar_lea.sflag [#allocation12], 1
    %22 = vsyncpa %s21, 0
    loop: start=0, step=1, limit=4
    $region2: #{apply_fn.1} parent=1 // loop_pre_header
      _
    $region3: #{apply_fn.1} parent=1 // loop_header
      %s24 = sphi 0, %s28
      %p25 = scmp.ge.s32.totalorder %s24, 4
      %s34 = sphi 0, %s36
      %s37 = sphi 0, %s34
      %s38 = sphi 0, %s37
      %s54 = sphi 0, %s38
      %s58 = sphi 0, %s58
      %s60 = sphi 0, %s58
      %s61 = sphi 0, %s60
      %s75 = sphi 0, %s61
      %s79 = sphi 0, %s79
      %s81 = sphi 0, %s79
      %s82 = sphi 0, %s81
      %s96 = sphi 0, %s82
      %s100 = sphi 0, %s100
      %s102 = sphi 0, %s100
      %s103 = sphi 0, %s102
      %s117 = sphi 0, %s103
      %s121 = sphi 0, %s121
      %s123 = sphi 0, %s121
      %s124 = sphi 0, %s123
      %s138 = sphi 0, %s124
      %s142 = sphi 0, %s142
      %s144 = sphi 0, %s142
      %s145 = sphi 0, %s144
      %s159 = sphi 0, %s145
      %s163 = sphi 0, %s163
      %s165 = sphi 0, %s163
      %s166 = sphi 0, %s165
      %s180 = sphi 0, %s166
      %s184 = sphi 0, %s184
      %s186 = sphi 0, %s184
      %s187 = sphi 0, %s186
      %s201 = sphi 0, %s187
      %s205 = sphi 0, %s205
      %s207 = sphi 0, %s205
      %s208 = sphi 0, %s207
      %s222 = sphi 0, %s208
      %s226 = sphi 0, %s226
      %s228 = sphi 0, %s226
      %s229 = sphi 0, %s228
      %s243 = sphi 0, %s229
      %s247 = sphi 0, %s247
      %s249 = sphi 0, %s247
      %s250 = sphi 0, %s249
      %s264 = sphi 0, %s250
      %s268 = sphi 0, %s268
      %s270 = sphi 0, %s268
      %s271 = sphi 0, %s270
      %s285 = sphi 0, %s271
      %s289 = sphi 0, %s289
      %s291 = sphi 0, %s289
      %s292 = sphi 0, %s291
      %s306 = sphi 0, %s292
      %s310 = sphi 0, %s310
      %s312 = sphi 0, %s310
      %s313 = sphi 0, %s312
      %s327 = sphi 0, %s313
      %s331 = sphi 0, %s331
      %s333 = sphi 0, %s331
      %s334 = sphi 0, %s333
      %s348 = sphi 0, %s334
      %s354 = sphi 0, %s356
      %s357 = sphi 0, %s354
      %s358 = sphi 0, %s357
      %s374 = sphi 0, %s358
    $region4: #{apply_fn.1} parent=1 // loop_header_branch
      %27 = sbr.rel (%p25) target = $region8
    $region5: #{apply_fn.1} parent=1 // loop_body
      %s29 = ssub.s32 %s24, 1
      %s30 = ssub.s32 %s24, 2
      %s31 = sadd.s32 %s24, 1
      %s32 = ssub.s32 %s24, %s31
      %p33 = scmp.eq.s32.totalorder %s32, 0
      %s35 = sadd.s32 %s34, 1
      %s36 = scalar_select %p33, %s34, %s35
      %p39 = pneg %p33
      %p40 = scmp.eq.s32.totalorder %s24, 1
      %p41 = por %p39, %p40
      %p42 = scmp.ne.s32.totalorder %s34, %s37
      %p43 = scmp.eq.s32.totalorder %s24, 0
      %p44 = por %p42, %p43
      %p45 = scmp.ne.s32.totalorder %s34, %s37
      %p46 = scmp.eq.s32.totalorder %s29, 1
      %p47 = por %p45, %p46
      %p48 = scmp.ne.s32.totalorder %s37, %s38
      %p49 = scmp.eq.s32.totalorder %s29, 0
      %p50 = por %p48, %p49
      %p51 = scmp.ne.s32.totalorder %s37, %s38
      %p52 = scmp.eq.s32.totalorder %s30, 1
      %p53 = por %p51, %p52
      %p55 = scmp.ne.s32.totalorder %s38, %s54
      %p56 = scmp.eq.s32.totalorder %s30, 0
      %p57 = por %p55, %p56
      %s59 = sadd.s32 %s58, 1
      %p62 = scmp.eq.s32.totalorder %s24, 1
      %p63 = scmp.ne.s32.totalorder %s58, %s60
      %p64 = scmp.eq.s32.totalorder %s24, 0
      %p65 = por %p63, %p64
      %p66 = scmp.ne.s32.totalorder %s58, %s60
      %p67 = scmp.eq.s32.totalorder %s29, 1
      %p68 = por %p66, %p67
      %p69 = scmp.ne.s32.totalorder %s60, %s61
      %p70 = scmp.eq.s32.totalorder %s29, 0
      %p71 = por %p69, %p70
      %p72 = scmp.ne.s32.totalorder %s60, %s61
      %p73 = scmp.eq.s32.totalorder %s30, 1
      %p74 = por %p72, %p73
      %p76 = scmp.ne.s32.totalorder %s61, %s75
      %p77 = scmp.eq.s32.totalorder %s30, 0
      %p78 = por %p76, %p77
      %s80 = sadd.s32 %s79, 1
      %p83 = scmp.eq.s32.totalorder %s24, 1
      %p84 = scmp.ne.s32.totalorder %s79, %s81
      %p85 = scmp.eq.s32.totalorder %s24, 0
      %p86 = por %p84, %p85
      %p87 = scmp.ne.s32.totalorder %s79, %s81
      %p88 = scmp.eq.s32.totalorder %s29, 1
      %p89 = por %p87, %p88
      %p90 = scmp.ne.s32.totalorder %s81, %s82
      %p91 = scmp.eq.s32.totalorder %s29, 0
      %p92 = por %p90, %p91
      %p93 = scmp.ne.s32.totalorder %s81, %s82
      %p94 = scmp.eq.s32.totalorder %s30, 1
      %p95 = por %p93, %p94
      %p97 = scmp.ne.s32.totalorder %s82, %s96
      %p98 = scmp.eq.s32.totalorder %s30, 0
      %p99 = por %p97, %p98
      %s101 = sadd.s32 %s100, 1
      %p104 = scmp.eq.s32.totalorder %s24, 1
      %p105 = scmp.ne.s32.totalorder %s100, %s102
      %p106 = scmp.eq.s32.totalorder %s24, 0
      %p107 = por %p105, %p106
      %p108 = scmp.ne.s32.totalorder %s100, %s102
      %p109 = scmp.eq.s32.totalorder %s29, 1
      %p110 = por %p108, %p109
      %p111 = scmp.ne.s32.totalorder %s102, %s103
      %p112 = scmp.eq.s32.totalorder %s29, 0
      %p113 = por %p111, %p112
      %p114 = scmp.ne.s32.totalorder %s102, %s103
      %p115 = scmp.eq.s32.totalorder %s30, 1
      %p116 = por %p114, %p115
      %p118 = scmp.ne.s32.totalorder %s103, %s117
      %p119 = scmp.eq.s32.totalorder %s30, 0
      %p120 = por %p118, %p119
      %s122 = sadd.s32 %s121, 1
      %p125 = scmp.eq.s32.totalorder %s24, 1
      %p126 = scmp.ne.s32.totalorder %s121, %s123
      %p127 = scmp.eq.s32.totalorder %s24, 0
      %p128 = por %p126, %p127
      %p129 = scmp.ne.s32.totalorder %s121, %s123
      %p130 = scmp.eq.s32.totalorder %s29, 1
      %p131 = por %p129, %p130
      %p132 = scmp.ne.s32.totalorder %s123, %s124
      %p133 = scmp.eq.s32.totalorder %s29, 0
      %p134 = por %p132, %p133
      %p135 = scmp.ne.s32.totalorder %s123, %s124
      %p136 = scmp.eq.s32.totalorder %s30, 1
      %p137 = por %p135, %p136
      %p139 = scmp.ne.s32.totalorder %s124, %s138
      %p140 = scmp.eq.s32.totalorder %s30, 0
      %p141 = por %p139, %p140
      %s143 = sadd.s32 %s142, 1
      %p146 = scmp.eq.s32.totalorder %s24, 1
      %p147 = scmp.ne.s32.totalorder %s142, %s144
      %p148 = scmp.eq.s32.totalorder %s24, 0
      %p149 = por %p147, %p148
      %p150 = scmp.ne.s32.totalorder %s142, %s144
      %p151 = scmp.eq.s32.totalorder %s29, 1
      %p152 = por %p150, %p151
      %p153 = scmp.ne.s32.totalorder %s144, %s145
      %p154 = scmp.eq.s32.totalorder %s29, 0
      %p155 = por %p153, %p154
      %p156 = scmp.ne.s32.totalorder %s144, %s145
      %p157 = scmp.eq.s32.totalorder %s30, 1
      %p158 = por %p156, %p157
      %p160 = scmp.ne.s32.totalorder %s145, %s159
      %p161 = scmp.eq.s32.totalorder %s30, 0
      %p162 = por %p160, %p161
      %s164 = sadd.s32 %s163, 1
      %p167 = scmp.eq.s32.totalorder %s24, 1
      %p168 = scmp.ne.s32.totalorder %s163, %s165
      %p169 = scmp.eq.s32.totalorder %s24, 0
      %p170 = por %p168, %p169
      %p171 = scmp.ne.s32.totalorder %s163, %s165
      %p172 = scmp.eq.s32.totalorder %s29, 1
      %p173 = por %p171, %p172
      %p174 = scmp.ne.s32.totalorder %s165, %s166
      %p175 = scmp.eq.s32.totalorder %s29, 0
      %p176 = por %p174, %p175
      %p177 = scmp.ne.s32.totalorder %s165, %s166
      %p178 = scmp.eq.s32.totalorder %s30, 1
      %p179 = por %p177, %p178
      %p181 = scmp.ne.s32.totalorder %s166, %s180
      %p182 = scmp.eq.s32.totalorder %s30, 0
      %p183 = por %p181, %p182
      %s185 = sadd.s32 %s184, 1
      %p188 = scmp.eq.s32.totalorder %s24, 1
      %p189 = scmp.ne.s32.totalorder %s184, %s186
      %p190 = scmp.eq.s32.totalorder %s24, 0
      %p191 = por %p189, %p190
      %p192 = scmp.ne.s32.totalorder %s184, %s186
      %p193 = scmp.eq.s32.totalorder %s29, 1
      %p194 = por %p192, %p193
      %p195 = scmp.ne.s32.totalorder %s186, %s187
      %p196 = scmp.eq.s32.totalorder %s29, 0
      %p197 = por %p195, %p196
      %p198 = scmp.ne.s32.totalorder %s186, %s187
      %p199 = scmp.eq.s32.totalorder %s30, 1
      %p200 = por %p198, %p199
      %p202 = scmp.ne.s32.totalorder %s187, %s201
      %p203 = scmp.eq.s32.totalorder %s30, 0
      %p204 = por %p202, %p203
      %s206 = sadd.s32 %s205, 1
      %p209 = scmp.eq.s32.totalorder %s24, 1
      %p210 = scmp.ne.s32.totalorder %s205, %s207
      %p211 = scmp.eq.s32.totalorder %s24, 0
      %p212 = por %p210, %p211
      %p213 = scmp.ne.s32.totalorder %s205, %s207
      %p214 = scmp.eq.s32.totalorder %s29, 1
      %p215 = por %p213, %p214
      %p216 = scmp.ne.s32.totalorder %s207, %s208
      %p217 = scmp.eq.s32.totalorder %s29, 0
      %p218 = por %p216, %p217
      %p219 = scmp.ne.s32.totalorder %s207, %s208
      %p220 = scmp.eq.s32.totalorder %s30, 1
      %p221 = por %p219, %p220
      %p223 = scmp.ne.s32.totalorder %s208, %s222
      %p224 = scmp.eq.s32.totalorder %s30, 0
      %p225 = por %p223, %p224
      %s227 = sadd.s32 %s226, 1
      %p230 = scmp.eq.s32.totalorder %s24, 1
      %p231 = scmp.ne.s32.totalorder %s226, %s228
      %p232 = scmp.eq.s32.totalorder %s24, 0
      %p233 = por %p231, %p232
      %p234 = scmp.ne.s32.totalorder %s226, %s228
      %p235 = scmp.eq.s32.totalorder %s29, 1
      %p236 = por %p234, %p235
      %p237 = scmp.ne.s32.totalorder %s228, %s229
      %p238 = scmp.eq.s32.totalorder %s29, 0
      %p239 = por %p237, %p238
      %p240 = scmp.ne.s32.totalorder %s228, %s229
      %p241 = scmp.eq.s32.totalorder %s30, 1
      %p242 = por %p240, %p241
      %p244 = scmp.ne.s32.totalorder %s229, %s243
      %p245 = scmp.eq.s32.totalorder %s30, 0
      %p246 = por %p244, %p245
      %s248 = sadd.s32 %s247, 1
      %p251 = scmp.eq.s32.totalorder %s24, 1
      %p252 = scmp.ne.s32.totalorder %s247, %s249
      %p253 = scmp.eq.s32.totalorder %s24, 0
      %p254 = por %p252, %p253
      %p255 = scmp.ne.s32.totalorder %s247, %s249
      %p256 = scmp.eq.s32.totalorder %s29, 1
      %p257 = por %p255, %p256
      %p258 = scmp.ne.s32.totalorder %s249, %s250
      %p259 = scmp.eq.s32.totalorder %s29, 0
      %p260 = por %p258, %p259
      %p261 = scmp.ne.s32.totalorder %s249, %s250
      %p262 = scmp.eq.s32.totalorder %s30, 1
      %p263 = por %p261, %p262
      %p265 = scmp.ne.s32.totalorder %s250, %s264
      %p266 = scmp.eq.s32.totalorder %s30, 0
      %p267 = por %p265, %p266
      %s269 = sadd.s32 %s268, 1
      %p272 = scmp.eq.s32.totalorder %s24, 1
      %p273 = scmp.ne.s32.totalorder %s268, %s270
      %p274 = scmp.eq.s32.totalorder %s24, 0
      %p275 = por %p273, %p274
      %p276 = scmp.ne.s32.totalorder %s268, %s270
      %p277 = scmp.eq.s32.totalorder %s29, 1
      %p278 = por %p276, %p277
      %p279 = scmp.ne.s32.totalorder %s270, %s271
      %p280 = scmp.eq.s32.totalorder %s29, 0
      %p281 = por %p279, %p280
      %p282 = scmp.ne.s32.totalorder %s270, %s271
      %p283 = scmp.eq.s32.totalorder %s30, 1
      %p284 = por %p282, %p283
      %p286 = scmp.ne.s32.totalorder %s271, %s285
      %p287 = scmp.eq.s32.totalorder %s30, 0
      %p288 = por %p286, %p287
      %s290 = sadd.s32 %s289, 1
      %p293 = scmp.eq.s32.totalorder %s24, 1
      %p294 = scmp.ne.s32.totalorder %s289, %s291
      %p295 = scmp.eq.s32.totalorder %s24, 0
      %p296 = por %p294, %p295
      %p297 = scmp.ne.s32.totalorder %s289, %s291
      %p298 = scmp.eq.s32.totalorder %s29, 1
      %p299 = por %p297, %p298
      %p300 = scmp.ne.s32.totalorder %s291, %s292
      %p301 = scmp.eq.s32.totalorder %s29, 0
      %p302 = por %p300, %p301
      %p303 = scmp.ne.s32.totalorder %s291, %s292
      %p304 = scmp.eq.s32.totalorder %s30, 1
      %p305 = por %p303, %p304
      %p307 = scmp.ne.s32.totalorder %s292, %s306
      %p308 = scmp.eq.s32.totalorder %s30, 0
      %p309 = por %p307, %p308
      %s311 = sadd.s32 %s310, 1
      %p314 = scmp.eq.s32.totalorder %s24, 1
      %p315 = scmp.ne.s32.totalorder %s310, %s312
      %p316 = scmp.eq.s32.totalorder %s24, 0
      %p317 = por %p315, %p316
      %p318 = scmp.ne.s32.totalorder %s310, %s312
      %p319 = scmp.eq.s32.totalorder %s29, 1
      %p320 = por %p318, %p319
      %p321 = scmp.ne.s32.totalorder %s312, %s313
      %p322 = scmp.eq.s32.totalorder %s29, 0
      %p323 = por %p321, %p322
      %p324 = scmp.ne.s32.totalorder %s312, %s313
      %p325 = scmp.eq.s32.totalorder %s30, 1
      %p326 = por %p324, %p325
      %p328 = scmp.ne.s32.totalorder %s313, %s327
      %p329 = scmp.eq.s32.totalorder %s30, 0
      %p330 = por %p328, %p329
      %s332 = sadd.s32 %s331, 1
      %p335 = scmp.eq.s32.totalorder %s24, 1
      %p336 = scmp.ne.s32.totalorder %s331, %s333
      %p337 = scmp.eq.s32.totalorder %s24, 0
      %p338 = por %p336, %p337
      %p339 = scmp.ne.s32.totalorder %s331, %s333
      %p340 = scmp.eq.s32.totalorder %s29, 1
      %p341 = por %p339, %p340
      %p342 = scmp.ne.s32.totalorder %s333, %s334
      %p343 = scmp.eq.s32.totalorder %s29, 0
      %p344 = por %p342, %p343
      %p345 = scmp.ne.s32.totalorder %s333, %s334
      %p346 = scmp.eq.s32.totalorder %s30, 1
      %p347 = por %p345, %p346
      %p349 = scmp.ne.s32.totalorder %s334, %s348
      %p350 = scmp.eq.s32.totalorder %s30, 0
      %p351 = por %p349, %p350
      %s352 = ssub.s32 %s24, %s31
      %p353 = scmp.eq.s32.totalorder %s352, 0
      %s355 = sadd.s32 %s354, 1
      %s356 = scalar_select %p353, %s354, %s355
      %p359 = pneg %p353
      %p360 = scmp.eq.s32.totalorder %s24, 1
      %p361 = por %p359, %p360
      %p362 = scmp.ne.s32.totalorder %s354, %s357
      %p363 = scmp.eq.s32.totalorder %s24, 0
      %p364 = por %p362, %p363
      %p365 = scmp.ne.s32.totalorder %s354, %s357
      %p366 = scmp.eq.s32.totalorder %s29, 1
      %p367 = por %p365, %p366
      %p368 = scmp.ne.s32.totalorder %s357, %s358
      %p369 = scmp.eq.s32.totalorder %s29, 0
      %p370 = por %p368, %p369
      %p371 = scmp.ne.s32.totalorder %s357, %s358
      %p372 = scmp.eq.s32.totalorder %s30, 1
      %p373 = por %p371, %p372
      %p375 = scmp.ne.s32.totalorder %s358, %s374
      %p376 = scmp.eq.s32.totalorder %s30, 0
      %p377 = por %p375, %p376
      %p378 = scmp.le.s32.totalorder 1, %s24
      %p379 = scmp.lt.s32.totalorder %s24, 3
      %p380 = pnand %p378, %p379
      %p381 = pneg %p380
      // Predicated region
      $region9: #{apply_fn.1} parent=5 // pred_check
        _
      $region10: #{apply_fn.1} parent=5 // pred_check_branch
        %383 = sbr.rel (%p380) target = $region12
      $region11: #{apply_fn.1} parent=5 // pred_region
        %s384 = ssub.s32 %s24, 1
        // Predicated region
        $region13: #{apply_fn.1} parent=11 // pred_check
          %p385 = pneg %p71
        $region14: #{apply_fn.1} parent=11 // pred_check_branch
          %387 = sbr.rel (%p385) target = $region16
        $region15: #{apply_fn.1} parent=11 // pred_region
          _
        $region16: #{apply_fn.1} parent=11 // pred_fallthru
          _
        // Predicated region
        $region17: #{apply_fn.1} parent=11 // pred_check
          %p388 = pneg %p92
        $region18: #{apply_fn.1} parent=11 // pred_check_branch
          %390 = sbr.rel (%p388) target = $region20
        $region19: #{apply_fn.1} parent=11 // pred_region
          _
        $region20: #{apply_fn.1} parent=11 // pred_fallthru
          _
        // Predicated region
        $region21: #{apply_fn.1} parent=11 // pred_check
          %p391 = pneg %p113
        $region22: #{apply_fn.1} parent=11 // pred_check_branch
          %393 = sbr.rel (%p391) target = $region24
        $region23: #{apply_fn.1} parent=11 // pred_region
          _
        $region24: #{apply_fn.1} parent=11 // pred_fallthru
          _
        // Predicated region
        $region25: #{apply_fn.1} parent=11 // pred_check
          %p394 = pneg %p134
        $region26: #{apply_fn.1} parent=11 // pred_check_branch
          %396 = sbr.rel (%p394) target = $region28
        $region27: #{apply_fn.1} parent=11 // pred_region
          _
        $region28: #{apply_fn.1} parent=11 // pred_fallthru
          _
        // Predicated region
        $region29: #{apply_fn.1} parent=11 // pred_check
          %p397 = pneg %p155
        $region30: #{apply_fn.1} parent=11 // pred_check_branch
          %399 = sbr.rel (%p397) target = $region32
        $region31: #{apply_fn.1} parent=11 // pred_region
          _
        $region32: #{apply_fn.1} parent=11 // pred_fallthru
          _
        // Predicated region
        $region33: #{apply_fn.1} parent=11 // pred_check
          %p400 = pneg %p176
        $region34: #{apply_fn.1} parent=11 // pred_check_branch
          %402 = sbr.rel (%p400) target = $region36
        $region35: #{apply_fn.1} parent=11 // pred_region
          _
        $region36: #{apply_fn.1} parent=11 // pred_fallthru
          _
        // Predicated region
        $region37: #{apply_fn.1} parent=11 // pred_check
          %p403 = pneg %p197
        $region38: #{apply_fn.1} parent=11 // pred_check_branch
          %405 = sbr.rel (%p403) target = $region40
        $region39: #{apply_fn.1} parent=11 // pred_region
          _
        $region40: #{apply_fn.1} parent=11 // pred_fallthru
          _
        // Predicated region
        $region41: #{apply_fn.1} parent=11 // pred_check
          %p406 = pneg %p218
        $region42: #{apply_fn.1} parent=11 // pred_check_branch
          %408 = sbr.rel (%p406) target = $region44
        $region43: #{apply_fn.1} parent=11 // pred_region
          _
        $region44: #{apply_fn.1} parent=11 // pred_fallthru
          _
        // Predicated region
        $region45: #{apply_fn.1} parent=11 // pred_check
          %p409 = pneg %p239
        $region46: #{apply_fn.1} parent=11 // pred_check_branch
          %411 = sbr.rel (%p409) target = $region48
        $region47: #{apply_fn.1} parent=11 // pred_region
          _
        $region48: #{apply_fn.1} parent=11 // pred_fallthru
          _
        // Predicated region
        $region49: #{apply_fn.1} parent=11 // pred_check
          %p412 = pneg %p260
        $region50: #{apply_fn.1} parent=11 // pred_check_branch
          %414 = sbr.rel (%p412) target = $region52
        $region51: #{apply_fn.1} parent=11 // pred_region
          _
        $region52: #{apply_fn.1} parent=11 // pred_fallthru
          _
        // Predicated region
        $region53: #{apply_fn.1} parent=11 // pred_check
          %p415 = pneg %p281
        $region54: #{apply_fn.1} parent=11 // pred_check_branch
          %417 = sbr.rel (%p415) target = $region56
        $region55: #{apply_fn.1} parent=11 // pred_region
          _
        $region56: #{apply_fn.1} parent=11 // pred_fallthru
          _
        // Predicated region
        $region57: #{apply_fn.1} parent=11 // pred_check
          %p418 = pneg %p302
        $region58: #{apply_fn.1} parent=11 // pred_check_branch
          %420 = sbr.rel (%p418) target = $region60
        $region59: #{apply_fn.1} parent=11 // pred_region
          _
        $region60: #{apply_fn.1} parent=11 // pred_fallthru
          _
        // Predicated region
        $region61: #{apply_fn.1} parent=11 // pred_check
          %p421 = pneg %p323
        $region62: #{apply_fn.1} parent=11 // pred_check_branch
          %423 = sbr.rel (%p421) target = $region64
        $region63: #{apply_fn.1} parent=11 // pred_region
          _
        $region64: #{apply_fn.1} parent=11 // pred_fallthru
          _
        // Predicated region
        $region65: #{apply_fn.1} parent=11 // pred_check
          %p424 = pneg %p344
        $region66: #{apply_fn.1} parent=11 // pred_check_branch
          %426 = sbr.rel (%p424) target = $region68
        $region67: #{apply_fn.1} parent=11 // pred_region
          _
        $region68: #{apply_fn.1} parent=11 // pred_fallthru
          _
      $region12: #{apply_fn.1} parent=5 // pred_fallthru
        _
      %p427 = scmp.lt.s32.totalorder %s24, 2
      // Predicated region
      $region69: #{apply_fn.1} parent=5 // pred_check
        %p428 = pneg %p427
      $region70: #{apply_fn.1} parent=5 // pred_check_branch
        %430 = sbr.rel (%p428) target = $region72
      $region71: #{apply_fn.1} parent=5 // pred_region
        // Predicated region
        $region73: #{apply_fn.1} parent=71 // pred_check
          %p431 = pneg %p44
        $region74: #{apply_fn.1} parent=71 // pred_check_branch
          %433 = sbr.rel (%p431) target = $region76
        $region75: #{apply_fn.1} parent=71 // pred_region
          %p434 = scmp.lt.s32.totalorder %s24, 1
          %s435 = scalar_select %p434, %s24, 1
          %s436 = smul.addr %s435, 2
          %s437 = smul.addr %s436, 8
          %s438 = scalar_lea.vmem %s0, %s437
        $region76: #{apply_fn.1} parent=71 // pred_fallthru
          _
      $region72: #{apply_fn.1} parent=5 // pred_fallthru
        _
      %p439 = scmp.le.s32.totalorder 1, %s24
      %p440 = scmp.lt.s32.totalorder %s24, 3
      %p441 = pnand %p439, %p440
      %p442 = pneg %p441
      // Predicated region
      $region77: #{apply_fn.1} parent=5 // pred_check
        _
      $region78: #{apply_fn.1} parent=5 // pred_check_branch
        %444 = sbr.rel (%p441) target = $region80
      $region79: #{apply_fn.1} parent=5 // pred_region
        %s445 = ssub.s32 %s24, 1
        %p446 = scmp.lt.s32.totalorder %s29, 1
        %s447 = scalar_select %p446, %s29, 1
        %s448 = smul.addr %s447, 2
        %s449 = smul.addr %s448, 8
        %s450 = scalar_lea.vmem %s0, %s449
        %p451 = pneg %p50
        %p452 = pneg %p47
        %p453 = pneg %p71
        %p454 = pneg %p68
        %p455 = pneg %p92
        %p456 = pneg %p89
        %p457 = pneg %p113
        %p458 = pneg %p110
        %p459 = pneg %p134
        %p460 = pneg %p131
        %p461 = pneg %p155
        %p462 = pneg %p152
        %p463 = pneg %p176
        %p464 = pneg %p173
        %p465 = pneg %p197
        %p466 = pneg %p194
        %p467 = pneg %p218
        %p468 = pneg %p215
        %p469 = pneg %p239
        %p470 = pneg %p236
        %p471 = pneg %p260
        %p472 = pneg %p257
        %p473 = pneg %p281
        %p474 = pneg %p278
        %p475 = pneg %p302
        %p476 = pneg %p299
        %p477 = pneg %p323
        %p478 = pneg %p320
        %p479 = pneg %p344
        %p480 = pneg %p341
        %p481 = pneg %p370
        %p482 = pneg %p367
        %s483 = sand.u32 %s357, 1
        %s484 = scalar_lea.sflag [#allocation12], %s483
        %s485 = sand.u32 %s357, 1
        %s486 = scalar_lea.vmem [#allocation11], %s485
        %p487 = scmp.lt.s32.totalorder %s29, 1
        %s488 = scalar_select %p487, %s29, 1
        %s489 = smul.addr %s488, 2
        %s490 = smul.addr %s489, 8
        %s491 = scalar_lea.vmem %s0, %s490
        %vm493 = vcmask 654336
        %494 = vst.msk [vmem:[#allocation2] sm:$0xff] %vm493, 0.0
        %495 = vst.msk [vmem:[#allocation2 + $0x8] sm:$0xff] %vm493, 0.0
        %vm496 = vcmask 650240
        %497 = vst.msk [vmem:[#allocation2 + $0x10] sm:$0xf] %vm496, 0.0
        %vm498 = vcmask 257024
        %499 = vst.msk [vmem:[#allocation4] sm:$0xf] %vm498, 0
        %vm500 = vcmask 253952
        %501 = vst.msk [vmem:[#allocation4 + $0x4] sm:$0x1] %vm500, 0
        %vm502 = vcmask 387072
        %503 = vst.msk [vmem:[#allocation5] sm:$0x7] %vm502, 0
        %504 = vst [vmem:[#allocation6] sm:$0x77] 0
        %505 = vst [vmem:[#allocation6 + $0x8] sm:$0x7] 0
        %vm506 = vcmask 519168
        %507 = vst.msk [vmem:[#allocation7] sm:$0xf] %vm506, 0
        %vm508 = vcmask 1041408
        %vm509 = vcmask 519170
        %vm510 = vmor %vm509, %vm508
        %511 = vst.msk [vmem:[#allocation8] sm:$0xf] %vm510, 0
        %512 = vst.msk [vmem:[#allocation9] sm:$0xf] %vm510, 0
        %vm513 = vcmask 256000
        %514 = vst.msk [vmem:[#allocation10] sm:$0x7] %vm513, 0
        %v515 = vld [vmem:[%s491] sm:$0xff]
        %v516 = vld [vmem:[%s491 + $0x8] sm:$0xff]
        %519 = vrot.lane.b32.xlu0 %v515, 8
        %v520 = vpop.permute.xlu0 %519
        %521 = vrot.lane.b32.xlu0 %v516, 8
        %v522 = vpop.permute.xlu0 %521
        %vm525 = vcmask 588864
        %526 = vst.msk [vmem:[#allocation2 + $0x2] sm:$0xff] %vm525, %v520
        %527 = vst.msk [vmem:[#allocation2 + $0xa] sm:$0xff] %vm525, %v522
        %v528 = vld [vmem:[#allocation2] sm:$0xff]
        %v529 = vld [vmem:[#allocation2 + $0x8] sm:$0xff]
        %v530 = vld [vmem:[%s1] sm:$0x1]
        %v531 = vlaneseq
        %v532 = vshrl.u32 %v531, 7
        %v533 = vsub.s32 0, %v532
        %v534 = vrot.slane %v530, %v533
        %v535 = vmul.f32 %v528, %v534
        %v536 = vmul.f32 %v529, %v534
        %v537 = vadd.f32 %v535, 0.0
        %v538 = vadd.f32 %v536, 0.0
        %v539 = vld [vmem:[%s1 + $0x1] sm:$0x1]
        %v540 = vlaneseq
        %v541 = vshrl.u32 %v540, 7
        %v542 = vsub.s32 0, %v541
        %v543 = vrot.slane %v539, %v542
        %545 = vrot.lane.b32.xlu0 %v543, 4
        %v546 = vpop.permute.xlu0 %545
        %v548 = vmul.f32 %v528, %v546
        %v549 = vmul.f32 %v529, %v546
        %552 = vrot.lane.b32.xlu0 %v548, 124
        %v553 = vpop.permute.xlu0 %552
        %554 = vrot.lane.b32.xlu0 %v549, 124
        %v555 = vpop.permute.xlu0 %554
        %v558 = vadd.f32 %v537, %v553
        %v559 = vadd.f32 %v538, %v555
        %v560 = vld [vmem:[%s1 + $0x2] sm:$0x1]
        %v561 = vlaneseq
        %v562 = vshrl.u32 %v561, 7
        %v563 = vsub.s32 0, %v562
        %v564 = vrot.slane %v560, %v563
        %566 = vrot.lane.b32.xlu0 %v564, 8
        %v567 = vpop.permute.xlu0 %566
        %v569 = vmul.f32 %v528, %v567
        %v570 = vmul.f32 %v529, %v567
        %573 = vrot.lane.b32.xlu0 %v569, 120
        %v574 = vpop.permute.xlu0 %573
        %575 = vrot.lane.b32.xlu0 %v570, 120
        %v576 = vpop.permute.xlu0 %575
        %v579 = vadd.f32 %v558, %v574
        %v580 = vadd.f32 %v559, %v576
        %v581 = vld [vmem:[%s1 + $0x3] sm:$0x1]
        %v582 = vlaneseq
        %v583 = vshrl.u32 %v582, 7
        %v584 = vsub.s32 0, %v583
        %v585 = vrot.slane %v581, %v584
        %587 = vrot.lane.b32.xlu0 %v585, 12
        %v588 = vpop.permute.xlu0 %587
        %v590 = vmul.f32 %v528, %v588
        %v591 = vmul.f32 %v529, %v588
        %594 = vrot.lane.b32.xlu0 %v590, 116
        %v595 = vpop.permute.xlu0 %594
        %596 = vrot.lane.b32.xlu0 %v591, 116
        %v597 = vpop.permute.xlu0 %596
        %v600 = vadd.f32 %v579, %v595
        %v601 = vadd.f32 %v580, %v597
        %v602 = vld [vmem:[%s1 + $0x4] sm:$0x1]
        %v603 = vlaneseq
        %v604 = vshrl.u32 %v603, 7
        %v605 = vsub.s32 0, %v604
        %v606 = vrot.slane %v602, %v605
        %608 = vrot.lane.b32.xlu0 %v606, 16
        %v609 = vpop.permute.xlu0 %608
        %v611 = vmul.f32 %v528, %v609
        %v612 = vmul.f32 %v529, %v609
        %615 = vrot.lane.b32.xlu0 %v611, 112
        %v616 = vpop.permute.xlu0 %615
        %617 = vrot.lane.b32.xlu0 %v612, 112
        %v618 = vpop.permute.xlu0 %617
        %v621 = vadd.f32 %v600, %v616
        %v622 = vadd.f32 %v601, %v618
        %v623 = vld [vmem:[#allocation2 + $0x1] sm:$0xff]
        %v624 = vld [vmem:[#allocation2 + $0x9] sm:$0xff]
        %v625 = vld [vmem:[%s1 + $0x5] sm:$0x1]
        %v626 = vlaneseq
        %v627 = vshrl.u32 %v626, 7
        %v628 = vsub.s32 0, %v627
        %v629 = vrot.slane %v625, %v628
        %v630 = vmul.f32 %v623, %v629
        %v631 = vmul.f32 %v624, %v629
        %v632 = vadd.f32 %v621, %v630
        %v633 = vadd.f32 %v622, %v631
        %v634 = vld [vmem:[%s1 + $0x6] sm:$0x1]
        %v635 = vlaneseq
        %v636 = vshrl.u32 %v635, 7
        %v637 = vsub.s32 0, %v636
        %v638 = vrot.slane %v634, %v637
        %640 = vrot.lane.b32.xlu0 %v638, 4
        %v641 = vpop.permute.xlu0 %640
        %v643 = vmul.f32 %v623, %v641
        %v644 = vmul.f32 %v624, %v641
        %647 = vrot.lane.b32.xlu0 %v643, 124
        %v648 = vpop.permute.xlu0 %647
        %649 = vrot.lane.b32.xlu0 %v644, 124
        %v650 = vpop.permute.xlu0 %649
        %v653 = vadd.f32 %v632, %v648
        %v654 = vadd.f32 %v633, %v650
        %v655 = vld [vmem:[%s1 + $0x7] sm:$0x1]
        %v656 = vlaneseq
        %v657 = vshrl.u32 %v656, 7
        %v658 = vsub.s32 0, %v657
        %v659 = vrot.slane %v655, %v658
        %661 = vrot.lane.b32.xlu0 %v659, 8
        %v662 = vpop.permute.xlu0 %661
        %v664 = vmul.f32 %v623, %v662
        %v665 = vmul.f32 %v624, %v662
        %668 = vrot.lane.b32.xlu0 %v664, 120
        %v669 = vpop.permute.xlu0 %668
        %670 = vrot.lane.b32.xlu0 %v665, 120
        %v671 = vpop.permute.xlu0 %670
        %v674 = vadd.f32 %v653, %v669
        %v675 = vadd.f32 %v654, %v671
        %v676 = vld [vmem:[%s1 + $0x8] sm:$0x1]
        %v677 = vlaneseq
        %v678 = vshrl.u32 %v677, 7
        %v679 = vsub.s32 0, %v678
        %v680 = vrot.slane %v676, %v679
        %682 = vrot.lane.b32.xlu0 %v680, 12
        %v683 = vpop.permute.xlu0 %682
        %v685 = vmul.f32 %v623, %v683
        %v686 = vmul.f32 %v624, %v683
        %689 = vrot.lane.b32.xlu0 %v685, 116
        %v690 = vpop.permute.xlu0 %689
        %691 = vrot.lane.b32.xlu0 %v686, 116
        %v692 = vpop.permute.xlu0 %691
        %v695 = vadd.f32 %v674, %v690
        %v696 = vadd.f32 %v675, %v692
        %v697 = vld [vmem:[%s1 + $0x9] sm:$0x1]
        %v698 = vlaneseq
        %v699 = vshrl.u32 %v698, 7
        %v700 = vsub.s32 0, %v699
        %v701 = vrot.slane %v697, %v700
        %703 = vrot.lane.b32.xlu0 %v701, 16
        %v704 = vpop.permute.xlu0 %703
        %v706 = vmul.f32 %v623, %v704
        %v707 = vmul.f32 %v624, %v704
        %710 = vrot.lane.b32.xlu0 %v706, 112
        %v711 = vpop.permute.xlu0 %710
        %712 = vrot.lane.b32.xlu0 %v707, 112
        %v713 = vpop.permute.xlu0 %712
        %v716 = vadd.f32 %v695, %v711
        %v717 = vadd.f32 %v696, %v713
        %v718 = vld [vmem:[#allocation2 + $0x2] sm:$0xff]
        %v719 = vld [vmem:[#allocation2 + $0xa] sm:$0xff]
        %v720 = vld [vmem:[%s1 + $0xa] sm:$0x1]
        %v721 = vlaneseq
        %v722 = vshrl.u32 %v721, 7
        %v723 = vsub.s32 0, %v722
        %v724 = vrot.slane %v720, %v723
        %v725 = vmul.f32 %v718, %v724
        %v726 = vmul.f32 %v719, %v724
        %v727 = vadd.f32 %v716, %v725
        %v728 = vadd.f32 %v717, %v726
        %v729 = vld [vmem:[%s1 + $0xb] sm:$0x1]
        %v730 = vlaneseq
        %v731 = vshrl.u32 %v730, 7
        %v732 = vsub.s32 0, %v731
        %v733 = vrot.slane %v729, %v732
        %735 = vrot.lane.b32.xlu0 %v733, 4
        %v736 = vpop.permute.xlu0 %735
        %v738 = vmul.f32 %v718, %v736
        %v739 = vmul.f32 %v719, %v736
        %742 = vrot.lane.b32.xlu0 %v738, 124
        %v743 = vpop.permute.xlu0 %742
        %744 = vrot.lane.b32.xlu0 %v739, 124
        %v745 = vpop.permute.xlu0 %744
        %v748 = vadd.f32 %v727, %v743
        %v749 = vadd.f32 %v728, %v745
        %v750 = vld [vmem:[%s1 + $0xc] sm:$0x1]
        %v751 = vlaneseq
        %v752 = vshrl.u32 %v751, 7
        %v753 = vsub.s32 0, %v752
        %v754 = vrot.slane %v750, %v753
        %756 = vrot.lane.b32.xlu0 %v754, 8
        %v757 = vpop.permute.xlu0 %756
        %v759 = vmul.f32 %v718, %v757
        %v760 = vmul.f32 %v719, %v757
        %763 = vrot.lane.b32.xlu0 %v759, 120
        %v764 = vpop.permute.xlu0 %763
        %765 = vrot.lane.b32.xlu0 %v760, 120
        %v766 = vpop.permute.xlu0 %765
        %v769 = vadd.f32 %v748, %v764
        %v770 = vadd.f32 %v749, %v766
        %v771 = vld [vmem:[%s1 + $0xd] sm:$0x1]
        %v772 = vlaneseq
        %v773 = vshrl.u32 %v772, 7
        %v774 = vsub.s32 0, %v773
        %v775 = vrot.slane %v771, %v774
        %777 = vrot.lane.b32.xlu0 %v775, 12
        %v778 = vpop.permute.xlu0 %777
        %v780 = vmul.f32 %v718, %v778
        %v781 = vmul.f32 %v719, %v778
        %784 = vrot.lane.b32.xlu0 %v780, 116
        %v785 = vpop.permute.xlu0 %784
        %786 = vrot.lane.b32.xlu0 %v781, 116
        %v787 = vpop.permute.xlu0 %786
        %v790 = vadd.f32 %v769, %v785
        %v791 = vadd.f32 %v770, %v787
        %v792 = vld [vmem:[%s1 + $0xe] sm:$0x1]
        %v793 = vlaneseq
        %v794 = vshrl.u32 %v793, 7
        %v795 = vsub.s32 0, %v794
        %v796 = vrot.slane %v792, %v795
        %798 = vrot.lane.b32.xlu0 %v796, 16
        %v799 = vpop.permute.xlu0 %798
        %v801 = vmul.f32 %v718, %v799
        %v802 = vmul.f32 %v719, %v799
        %805 = vrot.lane.b32.xlu0 %v801, 112
        %v806 = vpop.permute.xlu0 %805
        %807 = vrot.lane.b32.xlu0 %v802, 112
        %v808 = vpop.permute.xlu0 %807
        %v811 = vadd.f32 %v790, %v806
        %v812 = vadd.f32 %v791, %v808
        %v813 = vld [vmem:[#allocation2 + $0x3] sm:$0xff]
        %v814 = vld [vmem:[#allocation2 + $0xb] sm:$0xff]
        %v815 = vld [vmem:[%s1 + $0xf] sm:$0x1]
        %v816 = vlaneseq
        %v817 = vshrl.u32 %v816, 7
        %v818 = vsub.s32 0, %v817
        %v819 = vrot.slane %v815, %v818
        %v820 = vmul.f32 %v813, %v819
        %v821 = vmul.f32 %v814, %v819
        %v822 = vadd.f32 %v811, %v820
        %v823 = vadd.f32 %v812, %v821
        %v824 = vld [vmem:[%s1 + $0x10] sm:$0x1]
        %v825 = vlaneseq
        %v826 = vshrl.u32 %v825, 7
        %v827 = vsub.s32 0, %v826
        %v828 = vrot.slane %v824, %v827
        %830 = vrot.lane.b32.xlu0 %v828, 4
        %v831 = vpop.permute.xlu0 %830
        %v833 = vmul.f32 %v813, %v831
        %v834 = vmul.f32 %v814, %v831
        %837 = vrot.lane.b32.xlu0 %v833, 124
        %v838 = vpop.permute.xlu0 %837
        %839 = vrot.lane.b32.xlu0 %v834, 124
        %v840 = vpop.permute.xlu0 %839
        %v843 = vadd.f32 %v822, %v838
        %v844 = vadd.f32 %v823, %v840
        %v845 = vld [vmem:[%s1 + $0x11] sm:$0x1]
        %v846 = vlaneseq
        %v847 = vshrl.u32 %v846, 7
        %v848 = vsub.s32 0, %v847
        %v849 = vrot.slane %v845, %v848
        %851 = vrot.lane.b32.xlu0 %v849, 8
        %v852 = vpop.permute.xlu0 %851
        %v854 = vmul.f32 %v813, %v852
        %v855 = vmul.f32 %v814, %v852
        %858 = vrot.lane.b32.xlu0 %v854, 120
        %v859 = vpop.permute.xlu0 %858
        %860 = vrot.lane.b32.xlu0 %v855, 120
        %v861 = vpop.permute.xlu0 %860
        %v864 = vadd.f32 %v843, %v859
        %v865 = vadd.f32 %v844, %v861
        %v866 = vld [vmem:[%s1 + $0x12] sm:$0x1]
        %v867 = vlaneseq
        %v868 = vshrl.u32 %v867, 7
        %v869 = vsub.s32 0, %v868
        %v870 = vrot.slane %v866, %v869
        %872 = vrot.lane.b32.xlu0 %v870, 12
        %v873 = vpop.permute.xlu0 %872
        %v875 = vmul.f32 %v813, %v873
        %v876 = vmul.f32 %v814, %v873
        %879 = vrot.lane.b32.xlu0 %v875, 116
        %v880 = vpop.permute.xlu0 %879
        %881 = vrot.lane.b32.xlu0 %v876, 116
        %v882 = vpop.permute.xlu0 %881
        %v885 = vadd.f32 %v864, %v880
        %v886 = vadd.f32 %v865, %v882
        %v887 = vld [vmem:[%s1 + $0x13] sm:$0x1]
        %v888 = vlaneseq
        %v889 = vshrl.u32 %v888, 7
        %v890 = vsub.s32 0, %v889
        %v891 = vrot.slane %v887, %v890
        %893 = vrot.lane.b32.xlu0 %v891, 16
        %v894 = vpop.permute.xlu0 %893
        %v896 = vmul.f32 %v813, %v894
        %v897 = vmul.f32 %v814, %v894
        %900 = vrot.lane.b32.xlu0 %v896, 112
        %v901 = vpop.permute.xlu0 %900
        %902 = vrot.lane.b32.xlu0 %v897, 112
        %v903 = vpop.permute.xlu0 %902
        %v906 = vadd.f32 %v885, %v901
        %v907 = vadd.f32 %v886, %v903
        %v908 = vld [vmem:[#allocation2 + $0x4] sm:$0xff]
        %v909 = vld [vmem:[#allocation2 + $0xc] sm:$0xff]
        %v910 = vld [vmem:[%s1 + $0x14] sm:$0x1]
        %v911 = vlaneseq
        %v912 = vshrl.u32 %v911, 7
        %v913 = vsub.s32 0, %v912
        %v914 = vrot.slane %v910, %v913
        %v915 = vmul.f32 %v908, %v914
        %v916 = vmul.f32 %v909, %v914
        %v917 = vadd.f32 %v906, %v915
        %v918 = vadd.f32 %v907, %v916
        %v919 = vld [vmem:[%s1 + $0x15] sm:$0x1]
        %v920 = vlaneseq
        %v921 = vshrl.u32 %v920, 7
        %v922 = vsub.s32 0, %v921
        %v923 = vrot.slane %v919, %v922
        %925 = vrot.lane.b32.xlu0 %v923, 4
        %v926 = vpop.permute.xlu0 %925
        %v928 = vmul.f32 %v908, %v926
        %v929 = vmul.f32 %v909, %v926
        %932 = vrot.lane.b32.xlu0 %v928, 124
        %v933 = vpop.permute.xlu0 %932
        %934 = vrot.lane.b32.xlu0 %v929, 124
        %v935 = vpop.permute.xlu0 %934
        %v938 = vadd.f32 %v917, %v933
        %v939 = vadd.f32 %v918, %v935
        %v940 = vld [vmem:[%s1 + $0x16] sm:$0x1]
        %v941 = vlaneseq
        %v942 = vshrl.u32 %v941, 7
        %v943 = vsub.s32 0, %v942
        %v944 = vrot.slane %v940, %v943
        %946 = vrot.lane.b32.xlu0 %v944, 8
        %v947 = vpop.permute.xlu0 %946
        %v949 = vmul.f32 %v908, %v947
        %v950 = vmul.f32 %v909, %v947
        %953 = vrot.lane.b32.xlu0 %v949, 120
        %v954 = vpop.permute.xlu0 %953
        %955 = vrot.lane.b32.xlu0 %v950, 120
        %v956 = vpop.permute.xlu0 %955
        %v959 = vadd.f32 %v938, %v954
        %v960 = vadd.f32 %v939, %v956
        %v961 = vld [vmem:[%s1 + $0x17] sm:$0x1]
        %v962 = vlaneseq
        %v963 = vshrl.u32 %v962, 7
        %v964 = vsub.s32 0, %v963
        %v965 = vrot.slane %v961, %v964
        %967 = vrot.lane.b32.xlu0 %v965, 12
        %v968 = vpop.permute.xlu0 %967
        %v970 = vmul.f32 %v908, %v968
        %v971 = vmul.f32 %v909, %v968
        %974 = vrot.lane.b32.xlu0 %v970, 116
        %v975 = vpop.permute.xlu0 %974
        %976 = vrot.lane.b32.xlu0 %v971, 116
        %v977 = vpop.permute.xlu0 %976
        %v980 = vadd.f32 %v959, %v975
        %v981 = vadd.f32 %v960, %v977
        %v982 = vld [vmem:[%s1 + $0x18] sm:$0x1]
        %v983 = vlaneseq
        %v984 = vshrl.u32 %v983, 7
        %v985 = vsub.s32 0, %v984
        %v986 = vrot.slane %v982, %v985
        %988 = vrot.lane.b32.xlu0 %v986, 16
        %v989 = vpop.permute.xlu0 %988
        %v991 = vmul.f32 %v908, %v989
        %v992 = vmul.f32 %v909, %v989
        %995 = vrot.lane.b32.xlu0 %v991, 112
        %v996 = vpop.permute.xlu0 %995
        %997 = vrot.lane.b32.xlu0 %v992, 112
        %v998 = vpop.permute.xlu0 %997
        %v1001 = vadd.f32 %v980, %v996
        %v1002 = vadd.f32 %v981, %v998
        %v1003 = vld [vmem:[%s14] sm:$0x1]
        %v1004 = vld [vmem:[%s14 + $0x1] sm:$0x1]
        %v1005 = vlaneseq
        %v1006 = vshrl.u32 %v1005, 7
        %v1007 = vsub.s32 0, %v1006
        %v1008 = vrot.slane %v1003, %v1007
        %v1009 = vmul.f32 %v1001, %v1008
        %v1010 = vmul.f32 %v1002, %v1008
        %v1011 = vlaneseq
        %v1012 = vshrl.u32 %v1011, 7
        %v1013 = vsub.s32 0, %v1012
        %v1014 = vrot.slane %v1004, %v1013
        %v1015 = vadd.f32 %v1009, %v1014
        %v1016 = vadd.f32 %v1010, %v1014
        %v1017 = vmax.f32 %v1015, 0.0
        %v1018 = vmax.f32 %v1016, 0.0
        %v1020 = vrot.slane %v1017, 1
        %v1022 = vmax.f32 %v1017, %v1020
        %vm1023 = vcmask 516096
        %1024 = vst.msk [vmem:[#allocation3] sm:$0x1] %vm1023, %v1022
        %v1026 = vrot.slane %v1022, 2
        %1028 = vst.msk [vmem:[#allocation3 + $0x1] sm:$0x1] %vm1023, %v1026
        %v1029 = vrot.slane %v1022, 4
        %1031 = vst.msk [vmem:[#allocation3 + $0x2] sm:$0x1] %vm1023, %v1029
        %v1032 = vrot.slane %v1022, 6
        %1034 = vst.msk [vmem:[#allocation3 + $0x3] sm:$0x1] %vm1023, %v1032
        %v1036 = vrot.slane %v1018, 1
        %v1038 = vmax.f32 %v1018, %v1036
        %1039 = vst.msk [vmem:[#allocation3 + $0x4] sm:$0x1] %vm1023, %v1038
        %v1041 = vrot.slane %v1038, 2
        %1043 = vst.msk [vmem:[#allocation3 + $0x5] sm:$0x1] %vm1023, %v1041
        %v1044 = vrot.slane %v1038, 4
        %1046 = vst.msk [vmem:[#allocation3 + $0x6] sm:$0x1] %vm1023, %v1044
        %v1047 = vrot.slane %v1038, 6
        %1049 = vst.msk [vmem:[#allocation3 + $0x7] sm:$0x1] %vm1023, %v1047
        %v1050 = vld [vmem:[#allocation3] sm:$0xff]
        %1052 = vrot.lane.b32.xlu0 %v1050, 124
        %v1053 = vpop.permute.xlu0 %1052
        %v1055 = vmax.f32 %v1050, %v1053
        %v1056 = vpack.c.bf16 %v1055, %v1055
        %v1057 = vld [vmem:[%s2] sm:$0xf]
        %v1058 = vld [vmem:[%s2 + $0x4] sm:$0xf]
        %v1059 = vld [vmem:[%s2 + $0x8] sm:$0xf]
        %v1060 = vld [vmem:[%s2 + $0xc] sm:$0xf]
        %v1061 = vld [vmem:[%s2 + $0x10] sm:$0xf]
        %v1062 = vld [vmem:[%s2 + $0x14] sm:$0xf]
        %v1063 = vld [vmem:[%s2 + $0x18] sm:$0xf]
        %v1064 = vld [vmem:[%s2 + $0x1c] sm:$0x3]
        %v1073 = vunpack.c.l.b16 %v1057
        %v1074 = vunpack.c.l.b16 %v1058
        %v1075 = vunpack.c.l.b16 %v1059
        %v1076 = vunpack.c.l.b16 %v1060
        %v1077 = vunpack.c.l.b16 %v1061
        %v1078 = vunpack.c.l.b16 %v1062
        %v1079 = vunpack.c.l.b16 %v1063
        %v1080 = vunpack.c.l.b16 %v1064
        %v1081 = vpack.c.b16 %v1074, %v1073
        %v1082 = vpack.c.b16 %v1076, %v1075
        %v1083 = vpack.c.b16 %v1078, %v1077
        %v1084 = vpack.c.b16 %v1080, %v1079
        %vm1088 = vcmask 490496
        %v1090 = vsel %vm1088, %v1056, 0
        %vm1092 = vcmask 1045504
        %v1094 = vsel %vm1092, %v1084, 0
        %1096 = vmatprep.subr.bf16.mxu0 0
        %1097 = vmatpush1.bf16.msra.mxu0 %v1081
        %1098 = vmatprep.subr.bf16.mxu0 0
        %1099 = vmatpush1.bf16.msra.mxu0 %v1082
        %1100 = vmatprep.subr.bf16.mxu0 0
        %1101 = vmatpush1.bf16.msra.mxu0 %v1083
        %1102 = vmatprep.subr.bf16.mxu0 0
        %1103 = vmatpush1.bf16.msra.mxu0 %v1094
        %1104 = vmatprep.subr.bf16.mxu0 0
        %1105 = vmatpush1.bf16.msra.mxu0 0
        %1106 = vmatprep.subr.bf16.mxu0 0
        %1107 = vmatpush1.bf16.msra.mxu0 0
        %1108 = vmatprep.subr.bf16.mxu0 0
        %1109 = vmatpush1.bf16.msra.mxu0 0
        %1110 = vmatprep.subr.bf16.mxu0 0
        %1111 = vmatpush1.bf16.msra.mxu0 0
        %1112 = vmatprep.subr.bf16.mxu0 0
        %1113 = vmatpush1.bf16.msra.mxu0 0
        %1114 = vmatprep.subr.bf16.mxu0 0
        %1115 = vmatpush1.bf16.msra.mxu0 0
        %1116 = vmatprep.subr.bf16.mxu0 0
        %1117 = vmatpush1.bf16.msra.mxu0 0
        %1118 = vmatprep.subr.bf16.mxu0 0
        %1119 = vmatpush1.bf16.msra.mxu0 0
        %1120 = vmatprep.subr.bf16.mxu0 0
        %1121 = vmatpush1.bf16.msra.mxu0 0
        %1122 = vmatprep.subr.bf16.mxu0 0
        %1123 = vmatpush1.bf16.msra.mxu0 0
        %1124 = vmatprep.subr.bf16.mxu0 0
        %1125 = vmatpush1.bf16.msra.mxu0 0
        %1126 = vmatprep.subr.bf16.mxu0 0
        %1127 = vmatpush1.bf16.msra.mxu0 0
        %1128 = vmatprep.mubr.bf16.mxu0 0
        %1129 = vmatmul.mubr.bf16.gmra.mrb[0].mxu0 %v1090
        %v1130 = vpop.f32.mrb[0].mxu0
        %v1131 = vadd.f32 0.0, %v1130
        %v1132 = vpop.f32.mrb[0].mxu0
        %v1133 = vpop.f32.mrb[0].mxu0
        %v1134 = vpop.f32.mrb[0].mxu0
        %1135 = vdwg.mxu0
        %v1136 = vpack.c.bf16 %v1131, %v1131
        %v1138 = vunpack.c.l.b16 %v1136
        %v1139 = vpack.c.b16 %v1138, %v1138
        %v1141 = vshrl.u32 %v1139, 16
        %v1143 = vrot.slane %v1141, 7
        %v1144 = vshll.u32 %v1139, 16
        %v1146 = vor.u32 %v1143, %v1144
        %v1147 = vrot.slane %v1143, 4
        %vm1150 = vcmask 257024
        %vm1151 = vsmask.f32 7938
        %vm1152 = vmand %vm1150, %vm1151
        %v1153 = vld [vmem:[#allocation4] sm:$0xf]
        %v1154 = vsel %vm1152, %v1146, %v1153
        %1155 = vst [vmem:[#allocation4] sm:$0xf] %v1154
        %vm1156 = vcmask 253952
        %vm1157 = vsmask.f32 256
        %vm1158 = vmand %vm1156, %vm1157
        %v1159 = vld [vmem:[#allocation4 + $0x4] sm:$0x1]
        %v1160 = vsel %vm1158, %v1147, %v1159
        %1161 = vst [vmem:[#allocation4 + $0x4] sm:$0x1] %v1160
        %v1162 = vld [vmem:[%s14] sm:$0x1]
        %v1163 = vld [vmem:[%s14 + $0x1] sm:$0x1]
        %v1164 = vld [vmem:[#allocation4] sm:$0xf]
        %v1165 = vld [vmem:[%s3] sm:$0xf]
        %v1166 = vld [vmem:[%s3 + $0x4] sm:$0xf]
        %v1167 = vld [vmem:[%s3 + $0x8] sm:$0xf]
        %v1168 = vld [vmem:[%s3 + $0xc] sm:$0xf]
        %v1169 = vld [vmem:[#allocation4 + $0x4] sm:$0x1]
        %s1170 = scalar_lea.vmem %s3, 16
        %v1171 = vld [vmem:[%s1170] sm:$0xf]
        %v1172 = vld [vmem:[%s1170 + $0x4] sm:$0xf]
        %v1173 = vld [vmem:[%s1170 + $0x8] sm:$0xf]
        %v1174 = vld [vmem:[%s1170 + $0xc] sm:$0xf]
        %v1177 = vunpack.c.l.b16 %v1164
        %v1178 = vunpack.c.l.b16 %v1169
        %v1179 = vpack.c.b16 %v1178, %v1177
        %v1181 = vshrl.u32 %v1179, 16
        %v1183 = vshll.u32 %v1179, 16
        %v1185 = vrot.slane %v1183, 1
        %v1186 = vor.u32 %v1181, %v1185
        %v1191 = vunpack.c.l.b16 %v1171
        %v1192 = vunpack.c.l.b16 %v1172
        %v1193 = vunpack.c.l.b16 %v1173
        %v1194 = vunpack.c.l.b16 %v1174
        %v1195 = vpack.c.b16 %v1192, %v1191
        %v1196 = vpack.c.b16 %v1194, %v1193
        %vm1199 = vcmask 261120
        %v1201 = vsel %vm1199, %v1186, 0
        %1203 = vmatprep.subr.bf16.mxu0 0
        %1204 = vmatpush1.bf16.msra.mxu0 %v1195
        %1205 = vmatprep.subr.bf16.mxu0 0
        %1206 = vmatpush1.bf16.msra.mxu0 %v1196
        %1207 = vmatprep.subr.bf16.mxu0 0
        %1208 = vmatpush1.bf16.msra.mxu0 0
        %1209 = vmatprep.subr.bf16.mxu0 0
        %1210 = vmatpush1.bf16.msra.mxu0 0
        %1211 = vmatprep.subr.bf16.mxu0 0
        %1212 = vmatpush1.bf16.msra.mxu0 0
        %1213 = vmatprep.subr.bf16.mxu0 0
        %1214 = vmatpush1.bf16.msra.mxu0 0
        %1215 = vmatprep.subr.bf16.mxu0 0
        %1216 = vmatpush1.bf16.msra.mxu0 0
        %1217 = vmatprep.subr.bf16.mxu0 0
        %1218 = vmatpush1.bf16.msra.mxu0 0
        %1219 = vmatprep.subr.bf16.mxu0 0
        %1220 = vmatpush1.bf16.msra.mxu0 0
        %1221 = vmatprep.subr.bf16.mxu0 0
        %1222 = vmatpush1.bf16.msra.mxu0 0
        %1223 = vmatprep.subr.bf16.mxu0 0
        %1224 = vmatpush1.bf16.msra.mxu0 0
        %1225 = vmatprep.subr.bf16.mxu0 0
        %1226 = vmatpush1.bf16.msra.mxu0 0
        %1227 = vmatprep.subr.bf16.mxu0 0
        %1228 = vmatpush1.bf16.msra.mxu0 0
        %1229 = vmatprep.subr.bf16.mxu0 0
        %1230 = vmatpush1.bf16.msra.mxu0 0
        %1231 = vmatprep.subr.bf16.mxu0 0
        %1232 = vmatpush1.bf16.msra.mxu0 0
        %1233 = vmatprep.subr.bf16.mxu0 0
        %1234 = vmatpush1.bf16.msra.mxu0 0
        %1235 = vmatprep.mubr.bf16.mxu0 0
        %1236 = vmatmul.mubr.bf16.gmra.mrb[0].mxu0 %v1201
        %v1237 = vpop.f32.mrb[0].mxu0
        %v1238 = vadd.f32 0.0, %v1237
        %v1239 = vpop.f32.mrb[0].mxu0
        %v1240 = vpop.f32.mrb[0].mxu0
        %v1241 = vpop.f32.mrb[0].mxu0
        %1242 = vdwg.mxu0
        %v1247 = vunpack.c.l.b16 %v1165
        %v1248 = vunpack.c.l.b16 %v1166
        %v1249 = vunpack.c.l.b16 %v1167
        %v1250 = vunpack.c.l.b16 %v1168
        %v1251 = vpack.c.b16 %v1248, %v1247
        %v1252 = vpack.c.b16 %v1250, %v1249
        %v1256 = vsel %vm1199, %v1164, 0
        %1258 = vmatprep.subr.bf16.mxu0 0
        %1259 = vmatpush1.bf16.msra.mxu0 %v1251
        %1260 = vmatprep.subr.bf16.mxu0 0
        %1261 = vmatpush1.bf16.msra.mxu0 %v1252
        %1262 = vmatprep.subr.bf16.mxu0 0
        %1263 = vmatpush1.bf16.msra.mxu0 0
        %1264 = vmatprep.subr.bf16.mxu0 0
        %1265 = vmatpush1.bf16.msra.mxu0 0
        %1266 = vmatprep.subr.bf16.mxu0 0
        %1267 = vmatpush1.bf16.msra.mxu0 0
        %1268 = vmatprep.subr.bf16.mxu0 0
        %1269 = vmatpush1.bf16.msra.mxu0 0
        %1270 = vmatprep.subr.bf16.mxu0 0
        %1271 = vmatpush1.bf16.msra.mxu0 0
        %1272 = vmatprep.subr.bf16.mxu0 0
        %1273 = vmatpush1.bf16.msra.mxu0 0
        %1274 = vmatprep.subr.bf16.mxu0 0
        %1275 = vmatpush1.bf16.msra.mxu0 0
        %1276 = vmatprep.subr.bf16.mxu0 0
        %1277 = vmatpush1.bf16.msra.mxu0 0
        %1278 = vmatprep.subr.bf16.mxu0 0
        %1279 = vmatpush1.bf16.msra.mxu0 0
        %1280 = vmatprep.subr.bf16.mxu0 0
        %1281 = vmatpush1.bf16.msra.mxu0 0
        %1282 = vmatprep.subr.bf16.mxu0 0
        %1283 = vmatpush1.bf16.msra.mxu0 0
        %1284 = vmatprep.subr.bf16.mxu0 0
        %1285 = vmatpush1.bf16.msra.mxu0 0
        %1286 = vmatprep.subr.bf16.mxu0 0
        %1287 = vmatpush1.bf16.msra.mxu0 0
        %1288 = vmatprep.subr.bf16.mxu0 0
        %1289 = vmatpush1.bf16.msra.mxu0 0
        %1290 = vmatprep.mubr.bf16.mxu0 0
        %1291 = vmatmul.mubr.bf16.gmra.mrb[0].mxu0 %v1256
        %v1292 = vpop.f32.mrb[0].mxu0
        %v1293 = vadd.f32 %v1238, %v1292
        %v1294 = vpop.f32.mrb[0].mxu0
        %v1295 = vpop.f32.mrb[0].mxu0
        %v1296 = vpop.f32.mrb[0].mxu0
        %1297 = vdwg.mxu0
        %v1298 = vld [vmem:[#allocation4] sm:$0xe]
        %s1299 = scalar_lea.vmem %s3, 32
        %v1300 = vld [vmem:[%s1299] sm:$0xf]
        %v1301 = vld [vmem:[%s1299 + $0x4] sm:$0xf]
        %v1302 = vld [vmem:[%s1299 + $0x8] sm:$0xf]
        %v1303 = vld [vmem:[%s1299 + $0xc] sm:$0xf]
        %v1305 = vunpack.c.l.b16 %v1298
        %v1306 = vpack.c.b16 %v1178, %v1305
        %v1307 = vrot.slane %v1306, 1
        %v1312 = vunpack.c.l.b16 %v1300
        %v1313 = vunpack.c.l.b16 %v1301
        %v1314 = vunpack.c.l.b16 %v1302
        %v1315 = vunpack.c.l.b16 %v1303
        %v1316 = vpack.c.b16 %v1313, %v1312
        %v1317 = vpack.c.b16 %v1315, %v1314
        %v1321 = vsel %vm1199, %v1307, 0
        %1323 = vmatprep.subr.bf16.mxu0 0
        %1324 = vmatpush1.bf16.msra.mxu0 %v1316
        %1325 = vmatprep.subr.bf16.mxu0 0
        %1326 = vmatpush1.bf16.msra.mxu0 %v1317
        %1327 = vmatprep.subr.bf16.mxu0 0
        %1328 = vmatpush1.bf16.msra.mxu0 0
        %1329 = vmatprep.subr.bf16.mxu0 0
        %1330 = vmatpush1.bf16.msra.mxu0 0
        %1331 = vmatprep.subr.bf16.mxu0 0
        %1332 = vmatpush1.bf16.msra.mxu0 0
        %1333 = vmatprep.subr.bf16.mxu0 0
        %1334 = vmatpush1.bf16.msra.mxu0 0
        %1335 = vmatprep.subr.bf16.mxu0 0
        %1336 = vmatpush1.bf16.msra.mxu0 0
        %1337 = vmatprep.subr.bf16.mxu0 0
        %1338 = vmatpush1.bf16.msra.mxu0 0
        %1339 = vmatprep.subr.bf16.mxu0 0
        %1340 = vmatpush1.bf16.msra.mxu0 0
        %1341 = vmatprep.subr.bf16.mxu0 0
        %1342 = vmatpush1.bf16.msra.mxu0 0
        %1343 = vmatprep.subr.bf16.mxu0 0
        %1344 = vmatpush1.bf16.msra.mxu0 0
        %1345 = vmatprep.subr.bf16.mxu0 0
        %1346 = vmatpush1.bf16.msra.mxu0 0
        %1347 = vmatprep.subr.bf16.mxu0 0
        %1348 = vmatpush1.bf16.msra.mxu0 0
        %1349 = vmatprep.subr.bf16.mxu0 0
        %1350 = vmatpush1.bf16.msra.mxu0 0
        %1351 = vmatprep.subr.bf16.mxu0 0
        %1352 = vmatpush1.bf16.msra.mxu0 0
        %1353 = vmatprep.subr.bf16.mxu0 0
        %1354 = vmatpush1.bf16.msra.mxu0 0
        %1355 = vmatprep.mubr.bf16.mxu0 0
        %1356 = vmatmul.mubr.bf16.gmra.mrb[0].mxu0 %v1321
        %v1357 = vpop.f32.mrb[0].mxu0
        %v1358 = vadd.f32 0.0, %v1357
        %v1359 = vpop.f32.mrb[0].mxu0
        %v1360 = vpop.f32.mrb[0].mxu0
        %v1361 = vpop.f32.mrb[0].mxu0
        %1362 = vdwg.mxu0
        %v1363 = vadd.f32 %v1293, %v1358
        %v1364 = vlaneseq
        %v1365 = vshrl.u32 %v1364, 7
        %v1366 = vsub.s32 0, %v1365
        %v1367 = vrot.slane %v1162, %v1366
        %1369 = vrot.lane.b32.xlu0 %v1367, 64
        %v1370 = vpop.permute.xlu0 %1369
        %v1372 = vmul.f32 %v1363, %v1370
        %v1373 = vlaneseq
        %v1374 = vshrl.u32 %v1373, 7
        %v1375 = vsub.s32 0, %v1374
        %v1376 = vrot.slane %v1163, %v1375
        %1378 = vrot.lane.b32.xlu0 %v1376, 64
        %v1379 = vpop.permute.xlu0 %1378
        %v1381 = vadd.f32 %v1372, %v1379
        %v1382 = vmax.f32 %v1381, 0.0
        %v1384 = vrot.slane %v1382, 1
        %v1386 = vmax.f32 %v1382, %v1384
        %1387 = vst.msk [vmem:[#allocation3] sm:$0x1] %vm1023, %v1386
        %v1389 = vrot.slane %v1386, 2
        %1391 = vst.msk [vmem:[#allocation3 + $0x1] sm:$0x1] %vm1023, %v1389
        %v1392 = vrot.slane %v1386, 4
        %1394 = vst.msk [vmem:[#allocation3 + $0x2] sm:$0x1] %vm1023, %v1392
        %v1395 = vrot.slane %v1386, 6
        %1397 = vst.msk [vmem:[#allocation3 + $0x3] sm:$0x1] %vm1023, %v1395
        %v1398 = vld [vmem:[#allocation3] sm:$0xf]
        %1400 = vrot.lane.b32.xlu0 %v1398, 120
        %v1401 = vpop.permute.xlu0 %1400
        %v1403 = vmax.f32 %v1398, %v1401
        %v1404 = vpack.c.bf16 %v1403, %v1403
        %v1405 = vld [vmem:[%s4] sm:$0xf]
        %v1406 = vld [vmem:[%s4 + $0x4] sm:$0xf]
        %v1407 = vld [vmem:[%s4 + $0x8] sm:$0xf]
        %v1408 = vld [vmem:[%s4 + $0xc] sm:$0xf]
        %v1409 = vld [vmem:[%s4 + $0x10] sm:$0xf]
        %v1410 = vld [vmem:[%s4 + $0x14] sm:$0xf]
        %v1411 = vld [vmem:[%s4 + $0x18] sm:$0xf]
        %v1419 = vunpack.c.l.b16 %v1405
        %v1420 = vunpack.c.l.b16 %v1406
        %v1421 = vunpack.c.l.b16 %v1407
        %v1422 = vunpack.c.l.b16 %v1408
        %v1423 = vunpack.c.l.b16 %v1409
        %v1424 = vunpack.c.l.b16 %v1410
        %v1425 = vunpack.c.l.b16 %v1411
        %v1426 = vpack.c.b16 %v1420, %v1419
        %v1427 = vpack.c.b16 %v1422, %v1421
        %v1428 = vpack.c.b16 %v1424, %v1423
        %v1429 = vpack.c.b16 %v1425, %v1425
        %vm1433 = vcmask 457728
        %v1435 = vsel %vm1433, %v1404, 0
        %vm1437 = vcmask 1043456
        %v1439 = vsel %vm1437, %v1429, 0
        %1441 = vmatprep.subr.bf16.mxu0 0
        %1442 = vmatpush1.bf16.msra.mxu0 %v1426
        %1443 = vmatprep.subr.bf16.mxu0 0
        %1444 = vmatpush1.bf16.msra.mxu0 %v1427
        %1445 = vmatprep.subr.bf16.mxu0 0
        %1446 = vmatpush1.bf16.msra.mxu0 %v1428
        %1447 = vmatprep.subr.bf16.mxu0 0
        %1448 = vmatpush1.bf16.msra.mxu0 %v1439
        %1449 = vmatprep.subr.bf16.mxu0 0
        %1450 = vmatpush1.bf16.msra.mxu0 0
        %1451 = vmatprep.subr.bf16.mxu0 0
        %1452 = vmatpush1.bf16.msra.mxu0 0
        %1453 = vmatprep.subr.bf16.mxu0 0
        %1454 = vmatpush1.bf16.msra.mxu0 0
        %1455 = vmatprep.subr.bf16.mxu0 0
        %1456 = vmatpush1.bf16.msra.mxu0 0
        %1457 = vmatprep.subr.bf16.mxu0 0
        %1458 = vmatpush1.bf16.msra.mxu0 0
        %1459 = vmatprep.subr.bf16.mxu0 0
        %1460 = vmatpush1.bf16.msra.mxu0 0
        %1461 = vmatprep.subr.bf16.mxu0 0
        %1462 = vmatpush1.bf16.msra.mxu0 0
        %1463 = vmatprep.subr.bf16.mxu0 0
        %1464 = vmatpush1.bf16.msra.mxu0 0
        %1465 = vmatprep.subr.bf16.mxu0 0
        %1466 = vmatpush1.bf16.msra.mxu0 0
        %1467 = vmatprep.subr.bf16.mxu0 0
        %1468 = vmatpush1.bf16.msra.mxu0 0
        %1469 = vmatprep.subr.bf16.mxu0 0
        %1470 = vmatpush1.bf16.msra.mxu0 0
        %1471 = vmatprep.subr.bf16.mxu0 0
        %1472 = vmatpush1.bf16.msra.mxu0 0
        %1473 = vmatprep.mubr.bf16.mxu0 0
        %1474 = vmatmul.mubr.bf16.gmra.mrb[0].mxu0 %v1435
        %v1475 = vpop.f32.mrb[0].mxu0
        %v1476 = vadd.f32 0.0, %v1475
        %v1477 = vpop.f32.mrb[0].mxu0
        %v1478 = vpop.f32.mrb[0].mxu0
        %v1479 = vpop.f32.mrb[0].mxu0
        %1480 = vdwg.mxu0
        %v1481 = vpack.c.bf16 %v1476, %v1476
        %v1483 = vunpack.c.l.b16 %v1481
        %v1484 = vpack.c.b16 %v1483, %v1483
        %v1486 = vshrl.u32 %v1484, 16
        %v1488 = vrot.slane %v1486, 7
        %v1489 = vshll.u32 %v1484, 16
        %v1491 = vor.u32 %v1488, %v1489
        %1492 = vrot.lane.b32.xlu0 %v1491, 8
        %v1493 = vpop.permute.xlu0 %1492
        %vm1495 = vcmask 321600
        %vm1496 = vsmask.f32 2306
        %vm1497 = vmand %vm1495, %vm1496
        %v1498 = vld [vmem:[#allocation5] sm:$0x7]
        %v1499 = vsel %vm1497, %v1493, %v1498
        %1500 = vst [vmem:[#allocation5] sm:$0x7] %v1499
        %s1501 = scalar_lea.vmem %s14, 2
        %v1502 = vld [vmem:[%s1501] ss:$2 sm:$0xf]
        %s1503 = scalar_lea.vmem %s14, 3
        %v1504 = vld [vmem:[%s1503] ss:$2 sm:$0xf]
        %v1505 = vld [vmem:[%s5] sm:$0xff]
        %v1506 = vld [vmem:[%s5 + $0x8] sm:$0xff]
        %v1507 = vld [vmem:[%s5 + $0x10] sm:$0xff]
        %v1508 = vld [vmem:[%s5 + $0x18] sm:$0xff]
        %v1509 = vld [vmem:[%s5 + $0x20] sm:$0xff]
        %v1510 = vld [vmem:[%s5 + $0x28] sm:$0xff]
        %v1511 = vld [vmem:[%s5 + $0x30] sm:$0xff]
        %v1512 = vld [vmem:[%s5 + $0x38] sm:$0xff]
        %v1521 = vunpack.c.l.b16 %v1505
        %v1522 = vunpack.c.h.b16 %v1505
        %v1523 = vunpack.c.l.b16 %v1506
        %v1524 = vunpack.c.h.b16 %v1506
        %v1525 = vunpack.c.l.b16 %v1507
        %v1526 = vunpack.c.h.b16 %v1507
        %v1527 = vunpack.c.l.b16 %v1508
        %v1528 = vunpack.c.h.b16 %v1508
        %v1529 = vunpack.c.l.b16 %v1509
        %v1530 = vunpack.c.h.b16 %v1509
        %v1531 = vunpack.c.l.b16 %v1510
        %v1532 = vunpack.c.h.b16 %v1510
        %v1533 = vunpack.c.l.b16 %v1511
        %v1534 = vunpack.c.h.b16 %v1511
        %v1535 = vunpack.c.l.b16 %v1512
        %v1536 = vunpack.c.h.b16 %v1512
        %v1537 = vpack.c.b16 %v1525, %v1521
        %v1538 = vpack.c.b16 %v1526, %v1522
        %v1539 = vpack.c.b16 %v1527, %v1523
        %v1540 = vpack.c.b16 %v1528, %v1524
        %v1541 = vpack.c.b16 %v1533, %v1529
        %v1542 = vpack.c.b16 %v1534, %v1530
        %v1543 = vpack.c.b16 %v1535, %v1531
        %v1544 = vpack.c.b16 %v1536, %v1532
        %v1554 = vsel %vm1199, %v1481, 0
        %1556 = vmatprep.subr.bf16.mxu0 %v1538
        %1557 = vmatpush1.bf16.msra.mxu0 %v1537
        %1558 = vmatprep.subr.bf16.mxu0 %v1542
        %1559 = vmatpush1.bf16.msra.mxu0 %v1541
        %1560 = vmatprep.subr.bf16.mxu0 0
        %1561 = vmatpush1.bf16.msra.mxu0 0
        %1562 = vmatprep.subr.bf16.mxu0 0
        %1563 = vmatpush1.bf16.msra.mxu0 0
        %1564 = vmatprep.subr.bf16.mxu0 0
        %1565 = vmatpush1.bf16.msra.mxu0 0
        %1566 = vmatprep.subr.bf16.mxu0 0
        %1567 = vmatpush1.bf16.msra.mxu0 0
        %1568 = vmatprep.subr.bf16.mxu0 0
        %1569 = vmatpush1.bf16.msra.mxu0 0
        %1570 = vmatprep.subr.bf16.mxu0 0
        %1571 = vmatpush1.bf16.msra.mxu0 0
        %1572 = vmatprep.subr.bf16.mxu0 0
        %1573 = vmatpush1.bf16.msra.mxu0 0
        %1574 = vmatprep.subr.bf16.mxu0 0
        %1575 = vmatpush1.bf16.msra.mxu0 0
        %1576 = vmatprep.subr.bf16.mxu0 0
        %1577 = vmatpush1.bf16.msra.mxu0 0
        %1578 = vmatprep.subr.bf16.mxu0 0
        %1579 = vmatpush1.bf16.msra.mxu0 0
        %1580 = vmatprep.subr.bf16.mxu0 0
        %1581 = vmatpush1.bf16.msra.mxu0 0
        %1582 = vmatprep.subr.bf16.mxu0 0
        %1583 = vmatpush1.bf16.msra.mxu0 0
        %1584 = vmatprep.subr.bf16.mxu0 0
        %1585 = vmatpush1.bf16.msra.mxu0 0
        %1586 = vmatprep.subr.bf16.mxu0 0
        %1587 = vmatpush1.bf16.msra.mxu0 0
        %1588 = vmatprep.mubr.bf16.mxu0 0
        %1589 = vmatmul.mubr.bf16.gmra.mrb[0].mxu0 %v1554
        %v1590 = vpop.f32.mrb[0].mxu0
        %v1591 = vadd.f32 0.0, %v1590
        %v1592 = vpop.f32.mrb[0].mxu0
        %v1593 = vadd.f32 0.0, %v1592
        %v1594 = vpop.f32.mrb[0].mxu0
        %v1595 = vpop.f32.mrb[0].mxu0
        %1596 = vdwg.mxu0
        %1597 = vmatprep.subr.bf16.mxu0 %v1540
        %1598 = vmatpush1.bf16.msra.mxu0 %v1539
        %1599 = vmatprep.subr.bf16.mxu0 %v1544
        %1600 = vmatpush1.bf16.msra.mxu0 %v1543
        %1601 = vmatprep.subr.bf16.mxu0 0
        %1602 = vmatpush1.bf16.msra.mxu0 0
        %1603 = vmatprep.subr.bf16.mxu0 0
        %1604 = vmatpush1.bf16.msra.mxu0 0
        %1605 = vmatprep.subr.bf16.mxu0 0
        %1606 = vmatpush1.bf16.msra.mxu0 0
        %1607 = vmatprep.subr.bf16.mxu0 0
        %1608 = vmatpush1.bf16.msra.mxu0 0
        %1609 = vmatprep.subr.bf16.mxu0 0
        %1610 = vmatpush1.bf16.msra.mxu0 0
        %1611 = vmatprep.subr.bf16.mxu0 0
        %1612 = vmatpush1.bf16.msra.mxu0 0
        %1613 = vmatprep.subr.bf16.mxu0 0
        %1614 = vmatpush1.bf16.msra.mxu0 0
        %1615 = vmatprep.subr.bf16.mxu0 0
        %1616 = vmatpush1.bf16.msra.mxu0 0
        %1617 = vmatprep.subr.bf16.mxu0 0
        %1618 = vmatpush1.bf16.msra.mxu0 0
        %1619 = vmatprep.subr.bf16.mxu0 0
        %1620 = vmatpush1.bf16.msra.mxu0 0
        %1621 = vmatprep.subr.bf16.mxu0 0
        %1622 = vmatpush1.bf16.msra.mxu0 0
        %1623 = vmatprep.subr.bf16.mxu0 0
        %1624 = vmatpush1.bf16.msra.mxu0 0
        %1625 = vmatprep.subr.bf16.mxu0 0
        %1626 = vmatpush1.bf16.msra.mxu0 0
        %1627 = vmatprep.subr.bf16.mxu0 0
        %1628 = vmatpush1.bf16.msra.mxu0 0
        %1629 = vmatprep.mubr.bf16.mxu0 0
        %1630 = vmatmul.mubr.bf16.gmra.mrb[0].mxu0 %v1554
        %v1631 = vpop.f32.mrb[0].mxu0
        %v1632 = vadd.f32 0.0, %v1631
        %v1633 = vpop.f32.mrb[0].mxu0
        %v1634 = vadd.f32 0.0, %v1633
        %v1635 = vpop.f32.mrb[0].mxu0
        %v1636 = vpop.f32.mrb[0].mxu0
        %1637 = vdwg.mxu0
        %v1639 = vlaneseq
        %v1640 = vshrl.u32 %v1639, 7
        %v1641 = vsub.s32 0, %v1640
        %v1642 = vrot.slane %v1502, %v1641
        %v1643 = vlaneseq
        %v1644 = vshrl.u32 %v1643, 7
        %v1645 = vsub.s32 1, %v1644
        %v1646 = vrot.slane %v1502, %v1645
        %v1647 = vlaneseq
        %v1648 = vshrl.u32 %v1647, 7
        %v1649 = vsub.s32 2, %v1648
        %v1650 = vrot.slane %v1502, %v1649
        %v1651 = vlaneseq
        %v1652 = vshrl.u32 %v1651, 7
        %v1653 = vsub.s32 3, %v1652
        %v1654 = vrot.slane %v1502, %v1653
        %v1659 = vmul.f32 %v1591, %v1642
        %v1660 = vmul.f32 %v1593, %v1646
        %v1661 = vmul.f32 %v1632, %v1650
        %v1662 = vmul.f32 %v1634, %v1654
        %v1664 = vlaneseq
        %v1665 = vshrl.u32 %v1664, 7
        %v1666 = vsub.s32 0, %v1665
        %v1667 = vrot.slane %v1504, %v1666
        %v1668 = vlaneseq
        %v1669 = vshrl.u32 %v1668, 7
        %v1670 = vsub.s32 1, %v1669
        %v1671 = vrot.slane %v1504, %v1670
        %v1672 = vlaneseq
        %v1673 = vshrl.u32 %v1672, 7
        %v1674 = vsub.s32 2, %v1673
        %v1675 = vrot.slane %v1504, %v1674
        %v1676 = vlaneseq
        %v1677 = vshrl.u32 %v1676, 7
        %v1678 = vsub.s32 3, %v1677
        %v1679 = vrot.slane %v1504, %v1678
        %v1684 = vadd.f32 %v1659, %v1667
        %v1685 = vadd.f32 %v1660, %v1671
        %v1686 = vadd.f32 %v1661, %v1675
        %v1687 = vadd.f32 %v1662, %v1679
        %v1688 = vmax.f32 %v1684, 0.0
        %v1689 = vmax.f32 %v1685, 0.0
        %v1690 = vmax.f32 %v1686, 0.0
        %v1691 = vmax.f32 %v1687, 0.0
        %v1692 = vpack.c.bf16 %v1688, %v1688
        %v1693 = vpack.c.bf16 %v1689, %v1689
        %v1694 = vpack.c.bf16 %v1690, %v1690
        %v1695 = vpack.c.bf16 %v1691, %v1691
        %v1700 = vunpack.c.l.b16 %v1692
        %v1701 = vunpack.c.l.b16 %v1693
        %v1702 = vunpack.c.l.b16 %v1694
        %v1703 = vunpack.c.l.b16 %v1695
        %v1704 = vpack.c.b16 %v1701, %v1700
        %v1705 = vpack.c.b16 %v1703, %v1702
        %v1707 = vshrl.u32 %v1704, 16
        %v1709 = vrot.slane %v1707, 7
        %v1710 = vshll.u32 %v1704, 16
        %v1712 = vor.u32 %v1709, %v1710
        %v1714 = vshrl.u32 %v1705, 16
        %v1716 = vrot.slane %v1714, 7
        %v1717 = vshll.u32 %v1705, 16
        %v1719 = vor.u32 %v1716, %v1717
        %1720 = vrot.lane.b32.xlu0 %v1712, 96
        %v1721 = vpop.permute.xlu0 %1720
        %1722 = vrot.lane.b32.xlu0 %v1719, 96
        %v1723 = vpop.permute.xlu0 %1722
        %v1724 = vrot.slane %v1721, 4
        %v1725 = vrot.slane %v1723, 4
        %vm1726 = vcmask 1043456
        %v1727 = vsel %vm1726, %v1724, %v1725
        %vm1728 = vcmask 785408
        %v1729 = vsel %vm1728, %v1721, %v1727
        %v1730 = vsel %vm1728, %v1723, %v1725
        %vm1733 = vcmask 1042432
        %vm1734 = vmand %vm1733, %vm1496
        %vm1735 = vcmask 1046532
        %vm1736 = vsmask.f32 6418
        %vm1737 = vmand %vm1735, %vm1736
        %vm1738 = vmor %vm1737, %vm1734
        %v1739 = vld [vmem:[#allocation6] sm:$0x77]
        %v1740 = vsel %vm1738, %v1729, %v1739
        %1741 = vst [vmem:[#allocation6] sm:$0x77] %v1740
        %v1742 = vld [vmem:[#allocation6 + $0x8] sm:$0x7]
        %v1743 = vsel %vm1734, %v1730, %v1742
        %1744 = vst [vmem:[#allocation6 + $0x8] sm:$0x7] %v1743
        %v1745 = vpack.c.b16 %v1703, %v1703
        %v1746 = vrot.slane %v1745, 7
        %1747 = vrot.lane.b32.xlu0 %v1746, 96
        %v1748 = vpop.permute.xlu0 %1747
        %vm1750 = vcmask 518145
        %1751 = vst.msk [vmem:[#allocation7] sm:$0x6] %vm1750, %v1748
        %v1752 = vld [vmem:[%s14 + $0x8] sm:$0x5]
        %v1753 = vld [vmem:[%s14 + $0x9] sm:$0x5]
        %v1754 = vld [vmem:[#allocation6] sm:$0x33]
        %v1755 = vld [vmem:[#allocation6 + $0x8] sm:$0x3]
        %v1756 = vld [vmem:[%s6] sm:$0xf]
        %v1757 = vld [vmem:[%s6 + $0x4] sm:$0xf]
        %v1758 = vld [vmem:[%s6 + $0x8] sm:$0xf]
        %v1759 = vld [vmem:[%s6 + $0xc] sm:$0xf]
        %v1760 = vld [vmem:[%s6 + $0x10] sm:$0xf]
        %v1761 = vld [vmem:[%s6 + $0x14] sm:$0xf]
        %v1762 = vld [vmem:[%s6 + $0x18] sm:$0xf]
        %v1763 = vld [vmem:[%s6 + $0x1c] sm:$0xf]
        %v1764 = vld [vmem:[%s6 + $0x20] sm:$0xf]
        %v1765 = vld [vmem:[%s6 + $0x24] sm:$0xf]
        %v1766 = vld [vmem:[%s6 + $0x28] sm:$0xf]
        %v1767 = vld [vmem:[%s6 + $0x2c] sm:$0xf]
        %v1768 = vld [vmem:[%s6 + $0x30] sm:$0xf]
        %v1769 = vld [vmem:[%s6 + $0x34] sm:$0xf]
        %v1770 = vld [vmem:[%s6 + $0x38] sm:$0xf]
        %v1771 = vld [vmem:[%s6 + $0x3c] sm:$0xf]
        %v1772 = vld [vmem:[%s6 + $0x40] sm:$0xf]
        %v1773 = vld [vmem:[%s6 + $0x44] sm:$0xf]
        %v1774 = vld [vmem:[%s6 + $0x48] sm:$0xf]
        %v1775 = vld [vmem:[%s6 + $0x4c] sm:$0xf]
        %v1776 = vld [vmem:[%s6 + $0x50] sm:$0xf]
        %v1777 = vld [vmem:[%s6 + $0x54] sm:$0xf]
        %v1778 = vld [vmem:[%s6 + $0x58] sm:$0xf]
        %v1779 = vld [vmem:[%s6 + $0x5c] sm:$0xf]
        %v1780 = vld [vmem:[%s6 + $0x60] sm:$0xf]
        %v1781 = vld [vmem:[%s6 + $0x64] sm:$0xf]
        %v1782 = vld [vmem:[%s6 + $0x68] sm:$0xf]
        %v1783 = vld [vmem:[%s6 + $0x6c] sm:$0xf]
        %v1784 = vld [vmem:[%s6 + $0x70] sm:$0xf]
        %v1785 = vld [vmem:[%s6 + $0x74] sm:$0xf]
        %v1786 = vld [vmem:[%s6 + $0x78] sm:$0xf]
        %v1787 = vld [vmem:[%s6 + $0x7c] sm:$0xf]
        %v1788 = vld [vmem:[%s6 + $0x80] sm:$0xf]
        %v1789 = vld [vmem:[%s6 + $0x84] sm:$0xf]
        %v1790 = vld [vmem:[%s6 + $0x88] sm:$0xf]
        %v1791 = vld [vmem:[%s6 + $0x8c] sm:$0xf]
        %v1792 = vld [vmem:[%s6 + $0x90] sm:$0xf]
        %v1793 = vld [vmem:[%s6 + $0x94] sm:$0xf]
        %v1794 = vld [vmem:[%s6 + $0x98] sm:$0xf]
        %v1795 = vld [vmem:[%s6 + $0x9c] sm:$0xf]
        %v1796 = vld [vmem:[%s6 + $0xa0] sm:$0xf]
        %v1797 = vld [vmem:[%s6 + $0xa4] sm:$0xf]
        %v1798 = vld [vmem:[%s6 + $0xa8] sm:$0xf]
        %v1799 = vld [vmem:[%s6 + $0xac] sm:$0xf]
        %v1800 = vld [vmem:[%s6 + $0xb0] sm:$0xf]
        %v1801 = vld [vmem:[%s6 + $0xb4] sm:$0xf]
        %v1802 = vld [vmem:[%s6 + $0xb8] sm:$0xf]
        %v1803 = vld [vmem:[%s6 + $0xbc] sm:$0xf]
        %v1804 = vld [vmem:[#allocation6] sm:$0x77]
        %v1805 = vld [vmem:[#allocation6 + $0x8] sm:$0x7]
        %s1806 = scalar_lea.vmem %s6, 192
        %v1807 = vld [vmem:[%s1806] sm:$0xf]
        %v1808 = vld [vmem:[%s1806 + $0x4] sm:$0xf]
        %v1809 = vld [vmem:[%s1806 + $0x8] sm:$0xf]
        %v1810 = vld [vmem:[%s1806 + $0xc] sm:$0xf]
        %v1811 = vld [vmem:[%s1806 + $0x10] sm:$0xf]
        %v1812 = vld [vmem:[%s1806 + $0x14] sm:$0xf]
        %v1813 = vld [vmem:[%s1806 + $0x18] sm:$0xf]
        %v1814 = vld [vmem:[%s1806 + $0x1c] sm:$0xf]
        %v1815 = vld [vmem:[%s1806 + $0x20] sm:$0xf]
        %v1816 = vld [vmem:[%s1806 + $0x24] sm:$0xf]
        %v1817 = vld [vmem:[%s1806 + $0x28] sm:$0xf]
        %v1818 = vld [vmem:[%s1806 + $0x2c] sm:$0xf]
        %v1819 = vld [vmem:[%s1806 + $0x30] sm:$0xf]
        %v1820 = vld [vmem:[%s1806 + $0x34] sm:$0xf]
        %v1821 = vld [vmem:[%s1806 + $0x38] sm:$0xf]
        %v1822 = vld [vmem:[%s1806 + $0x3c] sm:$0xf]
        %v1823 = vld [vmem:[%s1806 + $0x40] sm:$0xf]
        %v1824 = vld [vmem:[%s1806 + $0x44] sm:$0xf]
        %v1825 = vld [vmem:[%s1806 + $0x48] sm:$0xf]
        %v1826 = vld [vmem:[%s1806 + $0x4c] sm:$0xf]
        %v1827 = vld [vmem:[%s1806 + $0x50] sm:$0xf]
        %v1828 = vld [vmem:[%s1806 + $0x54] sm:$0xf]
        %v1829 = vld [vmem:[%s1806 + $0x58] sm:$0xf]
        %v1830 = vld [vmem:[%s1806 + $0x5c] sm:$0xf]
        %v1831 = vld [vmem:[%s1806 + $0x60] sm:$0xf]
        %v1832 = vld [vmem:[%s1806 + $0x64] sm:$0xf]
        %v1833 = vld [vmem:[%s1806 + $0x68] sm:$0xf]
        %v1834 = vld [vmem:[%s1806 + $0x6c] sm:$0xf]
        %v1835 = vld [vmem:[%s1806 + $0x70] sm:$0xf]
        %v1836 = vld [vmem:[%s1806 + $0x74] sm:$0xf]
        %v1837 = vld [vmem:[%s1806 + $0x78] sm:$0xf]
        %v1838 = vld [vmem:[%s1806 + $0x7c] sm:$0xf]
        %v1839 = vld [vmem:[%s1806 + $0x80] sm:$0xf]
        %v1840 = vld [vmem:[%s1806 + $0x84] sm:$0xf]
        %v1841 = vld [vmem:[%s1806 + $0x88] sm:$0xf]
        %v1842 = vld [vmem:[%s1806 + $0x8c] sm:$0xf]
        %v1843 = vld [vmem:[%s1806 + $0x90] sm:$0xf]
        %v1844 = vld [vmem:[%s1806 + $0x94] sm:$0xf]
        %v1845 = vld [vmem:[%s1806 + $0x98] sm:$0xf]
        %v1846 = vld [vmem:[%s1806 + $0x9c] sm:$0xf]
        %v1847 = vld [vmem:[%s1806 + $0xa0] sm:$0xf]
        %v1848 = vld [vmem:[%s1806 + $0xa4] sm:$0xf]
        %v1849 = vld [vmem:[%s1806 + $0xa8] sm:$0xf]
        %v1850 = vld [vmem:[%s1806 + $0xac] sm:$0xf]
        %v1851 = vld [vmem:[%s1806 + $0xb0] sm:$0xf]
        %v1852 = vld [vmem:[%s1806 + $0xb4] sm:$0xf]
        %v1853 = vld [vmem:[%s1806 + $0xb8] sm:$0xf]
        %v1854 = vld [vmem:[%s1806 + $0xbc] sm:$0xf]
        %v1857 = vunpack.c.l.b16 %v1804
        %v1858 = vunpack.c.h.b16 %v1804
        %v1859 = vunpack.c.l.b16 %v1805
        %v1860 = vpack.c.b16 %v1857, %v1857
        %v1861 = vpack.c.b16 %v1858, %v1858
        %v1862 = vpack.c.b16 %v1859, %v1859
        %v1864 = vshrl.u32 %v1860, 16
        %v1866 = vshll.u32 %v1860, 16
        %v1868 = vrot.slane %v1866, 1
        %v1869 = vor.u32 %v1864, %v1868
        %v1871 = vshrl.u32 %v1861, 16
        %v1873 = vshll.u32 %v1861, 16
        %v1875 = vrot.slane %v1873, 1
        %v1876 = vor.u32 %v1871, %v1875
        %v1878 = vshrl.u32 %v1862, 16
        %v1880 = vshll.u32 %v1862, 16
        %v1882 = vrot.slane %v1880, 1
        %v1883 = vor.u32 %v1878, %v1882
        %v1935 = vunpack.c.l.b16 %v1807
        %v1936 = vunpack.c.l.b16 %v1808
        %v1937 = vunpack.c.l.b16 %v1809
        %v1938 = vunpack.c.l.b16 %v1810
        %v1939 = vunpack.c.l.b16 %v1811
        %v1940 = vunpack.c.l.b16 %v1812
        %v1941 = vunpack.c.l.b16 %v1813
        %v1942 = vunpack.c.l.b16 %v1814
        %v1943 = vunpack.c.l.b16 %v1815
        %v1944 = vunpack.c.l.b16 %v1816
        %v1945 = vunpack.c.l.b16 %v1817
        %v1946 = vunpack.c.l.b16 %v1818
        %v1947 = vunpack.c.l.b16 %v1819
        %v1948 = vunpack.c.l.b16 %v1820
        %v1949 = vunpack.c.l.b16 %v1821
        %v1950 = vunpack.c.l.b16 %v1822
        %v1951 = vunpack.c.l.b16 %v1823
        %v1952 = vunpack.c.l.b16 %v1824
        %v1953 = vunpack.c.l.b16 %v1825
        %v1954 = vunpack.c.l.b16 %v1826
        %v1955 = vunpack.c.l.b16 %v1827
        %v1956 = vunpack.c.l.b16 %v1828
        %v1957 = vunpack.c.l.b16 %v1829
        %v1958 = vunpack.c.l.b16 %v1830
        %v1959 = vunpack.c.l.b16 %v1831
        %v1960 = vunpack.c.l.b16 %v1832
        %v1961 = vunpack.c.l.b16 %v1833
        %v1962 = vunpack.c.l.b16 %v1834
        %v1963 = vunpack.c.l.b16 %v1835
        %v1964 = vunpack.c.l.b16 %v1836
        %v1965 = vunpack.c.l.b16 %v1837
        %v1966 = vunpack.c.l.b16 %v1838
        %v1967 = vunpack.c.l.b16 %v1839
        %v1968 = vunpack.c.l.b16 %v1840
        %v1969 = vunpack.c.l.b16 %v1841
        %v1970 = vunpack.c.l.b16 %v1842
        %v1971 = vunpack.c.l.b16 %v1843
        %v1972 = vunpack.c.l.b16 %v1844
        %v1973 = vunpack.c.l.b16 %v1845
        %v1974 = vunpack.c.l.b16 %v1846
        %v1975 = vunpack.c.l.b16 %v1847
        %v1976 = vunpack.c.l.b16 %v1848
        %v1977 = vunpack.c.l.b16 %v1849
        %v1978 = vunpack.c.l.b16 %v1850
        %v1979 = vunpack.c.l.b16 %v1851
        %v1980 = vunpack.c.l.b16 %v1852
        %v1981 = vunpack.c.l.b16 %v1853
        %v1982 = vunpack.c.l.b16 %v1854
        %v1983 = vpack.c.b16 %v1936, %v1935
        %v1984 = vpack.c.b16 %v1938, %v1937
        %v1985 = vpack.c.b16 %v1940, %v1939
        %v1986 = vpack.c.b16 %v1942, %v1941
        %v1987 = vpack.c.b16 %v1944, %v1943
        %v1988 = vpack.c.b16 %v1946, %v1945
        %v1989 = vpack.c.b16 %v1948, %v1947
        %v1990 = vpack.c.b16 %v1950, %v1949
        %v1991 = vpack.c.b16 %v1952, %v1951
        %v1992 = vpack.c.b16 %v1954, %v1953
        %v1993 = vpack.c.b16 %v1956, %v1955
        %v1994 = vpack.c.b16 %v1958, %v1957
        %v1995 = vpack.c.b16 %v1960, %v1959
        %v1996 = vpack.c.b16 %v1962, %v1961
        %v1997 = vpack.c.b16 %v1964, %v1963
        %v1998 = vpack.c.b16 %v1966, %v1965
        %v1999 = vpack.c.b16 %v1968, %v1967
        %v2000 = vpack.c.b16 %v1970, %v1969
        %v2001 = vpack.c.b16 %v1972, %v1971
        %v2002 = vpack.c.b16 %v1974, %v1973
        %v2003 = vpack.c.b16 %v1976, %v1975
        %v2004 = vpack.c.b16 %v1978, %v1977
        %v2005 = vpack.c.b16 %v1980, %v1979
        %v2006 = vpack.c.b16 %v1982, %v1981
        %2031 = vmatprep.subr.bf16.mxu0 0
        %2032 = vmatpush1.bf16.msra.mxu0 %v1983
        %2033 = vmatprep.subr.bf16.mxu0 0
        %2034 = vmatpush1.bf16.msra.mxu0 %v1984
        %2035 = vmatprep.subr.bf16.mxu0 0
        %2036 = vmatpush1.bf16.msra.mxu0 %v1985
        %2037 = vmatprep.subr.bf16.mxu0 0
        %2038 = vmatpush1.bf16.msra.mxu0 %v1986
        %2039 = vmatprep.subr.bf16.mxu0 0
        %2040 = vmatpush1.bf16.msra.mxu0 %v1987
        %2041 = vmatprep.subr.bf16.mxu0 0
        %2042 = vmatpush1.bf16.msra.mxu0 %v1988
        %2043 = vmatprep.subr.bf16.mxu0 0
        %2044 = vmatpush1.bf16.msra.mxu0 %v1989
        %2045 = vmatprep.subr.bf16.mxu0 0
        %2046 = vmatpush1.bf16.msra.mxu0 %v1990
        %2047 = vmatprep.subr.bf16.mxu0 0
        %2048 = vmatpush1.bf16.msra.mxu0 %v1991
        %2049 = vmatprep.subr.bf16.mxu0 0
        %2050 = vmatpush1.bf16.msra.mxu0 %v1992
        %2051 = vmatprep.subr.bf16.mxu0 0
        %2052 = vmatpush1.bf16.msra.mxu0 %v1993
        %2053 = vmatprep.subr.bf16.mxu0 0
        %2054 = vmatpush1.bf16.msra.mxu0 %v1994
        %2055 = vmatprep.subr.bf16.mxu0 0
        %2056 = vmatpush1.bf16.msra.mxu0 %v1995
        %2057 = vmatprep.subr.bf16.mxu0 0
        %2058 = vmatpush1.bf16.msra.mxu0 %v1996
        %2059 = vmatprep.subr.bf16.mxu0 0
        %2060 = vmatpush1.bf16.msra.mxu0 %v1997
        %2061 = vmatprep.subr.bf16.mxu0 0
        %2062 = vmatpush1.bf16.msra.mxu0 %v1998
        %2063 = vmatprep.mubr.bf16.mxu0 %v1876
        %2064 = vmatmul.mubr.bf16.gmra.mrb[0].mxu0 %v1869
        %v2065 = vpop.f32.mrb[0].mxu0
        %v2066 = vadd.f32 0.0, %v2065
        %v2067 = vpop.f32.mrb[0].mxu0
        %v2068 = vpop.f32.mrb[0].mxu0
        %v2069 = vpop.f32.mrb[0].mxu0
        %2070 = vdwg.mxu0
        %2071 = vmatprep.subr.bf16.mxu0 0
        %2072 = vmatpush1.bf16.msra.mxu0 %v1999
        %2073 = vmatprep.subr.bf16.mxu0 0
        %2074 = vmatpush1.bf16.msra.mxu0 %v2000
        %2075 = vmatprep.subr.bf16.mxu0 0
        %2076 = vmatpush1.bf16.msra.mxu0 %v2001
        %2077 = vmatprep.subr.bf16.mxu0 0
        %2078 = vmatpush1.bf16.msra.mxu0 %v2002
        %2079 = vmatprep.subr.bf16.mxu0 0
        %2080 = vmatpush1.bf16.msra.mxu0 %v2003
        %2081 = vmatprep.subr.bf16.mxu0 0
        %2082 = vmatpush1.bf16.msra.mxu0 %v2004
        %2083 = vmatprep.subr.bf16.mxu0 0
        %2084 = vmatpush1.bf16.msra.mxu0 %v2005
        %2085 = vmatprep.subr.bf16.mxu0 0
        %2086 = vmatpush1.bf16.msra.mxu0 %v2006
        %2087 = vmatprep.subr.bf16.mxu0 0
        %2088 = vmatpush1.bf16.msra.mxu0 0
        %2089 = vmatprep.subr.bf16.mxu0 0
        %2090 = vmatpush1.bf16.msra.mxu0 0
        %2091 = vmatprep.subr.bf16.mxu0 0
        %2092 = vmatpush1.bf16.msra.mxu0 0
        %2093 = vmatprep.subr.bf16.mxu0 0
        %2094 = vmatpush1.bf16.msra.mxu0 0
        %2095 = vmatprep.subr.bf16.mxu0 0
        %2096 = vmatpush1.bf16.msra.mxu0 0
        %2097 = vmatprep.subr.bf16.mxu0 0
        %2098 = vmatpush1.bf16.msra.mxu0 0
        %2099 = vmatprep.subr.bf16.mxu0 0
        %2100 = vmatpush1.bf16.msra.mxu0 0
        %2101 = vmatprep.subr.bf16.mxu0 0
        %2102 = vmatpush1.bf16.msra.mxu0 0
        %2103 = vmatprep.mubr.bf16.mxu0 0
        %2104 = vmatmul.mubr.bf16.gmra.mrb[0].mxu0 %v1883
        %v2105 = vpop.f32.mrb[0].mxu0
        %v2106 = vadd.f32 %v2066, %v2105
        %v2107 = vpop.f32.mrb[0].mxu0
        %v2108 = vpop.f32.mrb[0].mxu0
        %v2109 = vpop.f32.mrb[0].mxu0
        %2110 = vdwg.mxu0
        %v2113 = vunpack.c.l.b16 %v1754
        %v2114 = vunpack.c.h.b16 %v1754
        %v2115 = vunpack.c.l.b16 %v1755
        %v2116 = vpack.c.b16 %v2113, %v2113
        %v2117 = vpack.c.b16 %v2114, %v2114
        %v2118 = vpack.c.b16 %v2115, %v2115
        %v2170 = vunpack.c.l.b16 %v1756
        %v2171 = vunpack.c.l.b16 %v1757
        %v2172 = vunpack.c.l.b16 %v1758
        %v2173 = vunpack.c.l.b16 %v1759
        %v2174 = vunpack.c.l.b16 %v1760
        %v2175 = vunpack.c.l.b16 %v1761
        %v2176 = vunpack.c.l.b16 %v1762
        %v2177 = vunpack.c.l.b16 %v1763
        %v2178 = vunpack.c.l.b16 %v1764
        %v2179 = vunpack.c.l.b16 %v1765
        %v2180 = vunpack.c.l.b16 %v1766
        %v2181 = vunpack.c.l.b16 %v1767
        %v2182 = vunpack.c.l.b16 %v1768
        %v2183 = vunpack.c.l.b16 %v1769
        %v2184 = vunpack.c.l.b16 %v1770
        %v2185 = vunpack.c.l.b16 %v1771
        %v2186 = vunpack.c.l.b16 %v1772
        %v2187 = vunpack.c.l.b16 %v1773
        %v2188 = vunpack.c.l.b16 %v1774
        %v2189 = vunpack.c.l.b16 %v1775
        %v2190 = vunpack.c.l.b16 %v1776
        %v2191 = vunpack.c.l.b16 %v1777
        %v2192 = vunpack.c.l.b16 %v1778
        %v2193 = vunpack.c.l.b16 %v1779
        %v2194 = vunpack.c.l.b16 %v1780
        %v2195 = vunpack.c.l.b16 %v1781
        %v2196 = vunpack.c.l.b16 %v1782
        %v2197 = vunpack.c.l.b16 %v1783
        %v2198 = vunpack.c.l.b16 %v1784
        %v2199 = vunpack.c.l.b16 %v1785
        %v2200 = vunpack.c.l.b16 %v1786
        %v2201 = vunpack.c.l.b16 %v1787
        %v2202 = vunpack.c.l.b16 %v1788
        %v2203 = vunpack.c.l.b16 %v1789
        %v2204 = vunpack.c.l.b16 %v1790
        %v2205 = vunpack.c.l.b16 %v1791
        %v2206 = vunpack.c.l.b16 %v1792
        %v2207 = vunpack.c.l.b16 %v1793
        %v2208 = vunpack.c.l.b16 %v1794
        %v2209 = vunpack.c.l.b16 %v1795
        %v2210 = vunpack.c.l.b16 %v1796
        %v2211 = vunpack.c.l.b16 %v1797
        %v2212 = vunpack.c.l.b16 %v1798
        %v2213 = vunpack.c.l.b16 %v1799
        %v2214 = vunpack.c.l.b16 %v1800
        %v2215 = vunpack.c.l.b16 %v1801
        %v2216 = vunpack.c.l.b16 %v1802
        %v2217 = vunpack.c.l.b16 %v1803
        %v2218 = vpack.c.b16 %v2171, %v2170
        %v2219 = vpack.c.b16 %v2173, %v2172
        %v2220 = vpack.c.b16 %v2175, %v2174
        %v2221 = vpack.c.b16 %v2177, %v2176
        %v2222 = vpack.c.b16 %v2179, %v2178
        %v2223 = vpack.c.b16 %v2181, %v2180
        %v2224 = vpack.c.b16 %v2183, %v2182
        %v2225 = vpack.c.b16 %v2185, %v2184
        %v2226 = vpack.c.b16 %v2187, %v2186
        %v2227 = vpack.c.b16 %v2189, %v2188
        %v2228 = vpack.c.b16 %v2191, %v2190
        %v2229 = vpack.c.b16 %v2193, %v2192
        %v2230 = vpack.c.b16 %v2195, %v2194
        %v2231 = vpack.c.b16 %v2197, %v2196
        %v2232 = vpack.c.b16 %v2199, %v2198
        %v2233 = vpack.c.b16 %v2201, %v2200
        %v2234 = vpack.c.b16 %v2203, %v2202
        %v2235 = vpack.c.b16 %v2205, %v2204
        %v2236 = vpack.c.b16 %v2207, %v2206
        %v2237 = vpack.c.b16 %v2209, %v2208
        %v2238 = vpack.c.b16 %v2211, %v2210
        %v2239 = vpack.c.b16 %v2213, %v2212
        %v2240 = vpack.c.b16 %v2215, %v2214
        %v2241 = vpack.c.b16 %v2217, %v2216
        %2266 = vmatprep.subr.bf16.mxu0 0
        %2267 = vmatpush1.bf16.msra.mxu0 %v2218
        %2268 = vmatprep.subr.bf16.mxu0 0
        %2269 = vmatpush1.bf16.msra.mxu0 %v2219
        %2270 = vmatprep.subr.bf16.mxu0 0
        %2271 = vmatpush1.bf16.msra.mxu0 %v2220
        %2272 = vmatprep.subr.bf16.mxu0 0
        %2273 = vmatpush1.bf16.msra.mxu0 %v2221
        %2274 = vmatprep.subr.bf16.mxu0 0
        %2275 = vmatpush1.bf16.msra.mxu0 %v2222
        %2276 = vmatprep.subr.bf16.mxu0 0
        %2277 = vmatpush1.bf16.msra.mxu0 %v2223
        %2278 = vmatprep.subr.bf16.mxu0 0
        %2279 = vmatpush1.bf16.msra.mxu0 %v2224
        %2280 = vmatprep.subr.bf16.mxu0 0
        %2281 = vmatpush1.bf16.msra.mxu0 %v2225
        %2282 = vmatprep.subr.bf16.mxu0 0
        %2283 = vmatpush1.bf16.msra.mxu0 %v2226
        %2284 = vmatprep.subr.bf16.mxu0 0
        %2285 = vmatpush1.bf16.msra.mxu0 %v2227
        %2286 = vmatprep.subr.bf16.mxu0 0
        %2287 = vmatpush1.bf16.msra.mxu0 %v2228
        %2288 = vmatprep.subr.bf16.mxu0 0
        %2289 = vmatpush1.bf16.msra.mxu0 %v2229
        %2290 = vmatprep.subr.bf16.mxu0 0
        %2291 = vmatpush1.bf16.msra.mxu0 %v2230
        %2292 = vmatprep.subr.bf16.mxu0 0
        %2293 = vmatpush1.bf16.msra.mxu0 %v2231
        %2294 = vmatprep.subr.bf16.mxu0 0
        %2295 = vmatpush1.bf16.msra.mxu0 %v2232
        %2296 = vmatprep.subr.bf16.mxu0 0
        %2297 = vmatpush1.bf16.msra.mxu0 %v2233
        %2298 = vmatprep.mubr.bf16.mxu0 %v2117
        %2299 = vmatmul.mubr.bf16.gmra.mrb[0].mxu0 %v2116
        %v2300 = vpop.f32.mrb[0].mxu0
        %v2301 = vadd.f32 %v2106, %v2300
        %v2302 = vpop.f32.mrb[0].mxu0
        %v2303 = vpop.f32.mrb[0].mxu0
        %v2304 = vpop.f32.mrb[0].mxu0
        %2305 = vdwg.mxu0
        %2306 = vmatprep.subr.bf16.mxu0 0
        %2307 = vmatpush1.bf16.msra.mxu0 %v2234
        %2308 = vmatprep.subr.bf16.mxu0 0
        %2309 = vmatpush1.bf16.msra.mxu0 %v2235
        %2310 = vmatprep.subr.bf16.mxu0 0
        %2311 = vmatpush1.bf16.msra.mxu0 %v2236
        %2312 = vmatprep.subr.bf16.mxu0 0
        %2313 = vmatpush1.bf16.msra.mxu0 %v2237
        %2314 = vmatprep.subr.bf16.mxu0 0
        %2315 = vmatpush1.bf16.msra.mxu0 %v2238
        %2316 = vmatprep.subr.bf16.mxu0 0
        %2317 = vmatpush1.bf16.msra.mxu0 %v2239
        %2318 = vmatprep.subr.bf16.mxu0 0
        %2319 = vmatpush1.bf16.msra.mxu0 %v2240
        %2320 = vmatprep.subr.bf16.mxu0 0
        %2321 = vmatpush1.bf16.msra.mxu0 %v2241
        %2322 = vmatprep.subr.bf16.mxu0 0
        %2323 = vmatpush1.bf16.msra.mxu0 0
        %2324 = vmatprep.subr.bf16.mxu0 0
        %2325 = vmatpush1.bf16.msra.mxu0 0
        %2326 = vmatprep.subr.bf16.mxu0 0
        %2327 = vmatpush1.bf16.msra.mxu0 0
        %2328 = vmatprep.subr.bf16.mxu0 0
        %2329 = vmatpush1.bf16.msra.mxu0 0
        %2330 = vmatprep.subr.bf16.mxu0 0
        %2331 = vmatpush1.bf16.msra.mxu0 0
        %2332 = vmatprep.subr.bf16.mxu0 0
        %2333 = vmatpush1.bf16.msra.mxu0 0
        %2334 = vmatprep.subr.bf16.mxu0 0
        %2335 = vmatpush1.bf16.msra.mxu0 0
        %2336 = vmatprep.subr.bf16.mxu0 0
        %2337 = vmatpush1.bf16.msra.mxu0 0
        %2338 = vmatprep.mubr.bf16.mxu0 0
        %2339 = vmatmul.mubr.bf16.gmra.mrb[0].mxu0 %v2118
        %v2340 = vpop.f32.mrb[0].mxu0
        %v2341 = vadd.f32 %v2301, %v2340
        %v2342 = vpop.f32.mrb[0].mxu0
        %v2343 = vpop.f32.mrb[0].mxu0
        %v2344 = vpop.f32.mrb[0].mxu0
        %2345 = vdwg.mxu0
        %v2346 = vld [vmem:[#allocation6] sm:$0x66]
        %v2347 = vld [vmem:[#allocation6 + $0x8] sm:$0x6]
        %s2348 = scalar_lea.vmem %s6, 384
        %v2349 = vld [vmem:[%s2348] sm:$0xf]
        %v2350 = vld [vmem:[%s2348 + $0x4] sm:$0xf]
        %v2351 = vld [vmem:[%s2348 + $0x8] sm:$0xf]
        %v2352 = vld [vmem:[%s2348 + $0xc] sm:$0xf]
        %v2353 = vld [vmem:[%s2348 + $0x10] sm:$0xf]
        %v2354 = vld [vmem:[%s2348 + $0x14] sm:$0xf]
        %v2355 = vld [vmem:[%s2348 + $0x18] sm:$0xf]
        %v2356 = vld [vmem:[%s2348 + $0x1c] sm:$0xf]
        %v2357 = vld [vmem:[%s2348 + $0x20] sm:$0xf]
        %v2358 = vld [vmem:[%s2348 + $0x24] sm:$0xf]
        %v2359 = vld [vmem:[%s2348 + $0x28] sm:$0xf]
        %v2360 = vld [vmem:[%s2348 + $0x2c] sm:$0xf]
        %v2361 = vld [vmem:[%s2348 + $0x30] sm:$0xf]
        %v2362 = vld [vmem:[%s2348 + $0x34] sm:$0xf]
        %v2363 = vld [vmem:[%s2348 + $0x38] sm:$0xf]
        %v2364 = vld [vmem:[%s2348 + $0x3c] sm:$0xf]
        %v2365 = vld [vmem:[%s2348 + $0x40] sm:$0xf]
        %v2366 = vld [vmem:[%s2348 + $0x44] sm:$0xf]
        %v2367 = vld [vmem:[%s2348 + $0x48] sm:$0xf]
        %v2368 = vld [vmem:[%s2348 + $0x4c] sm:$0xf]
        %v2369 = vld [vmem:[%s2348 + $0x50] sm:$0xf]
        %v2370 = vld [vmem:[%s2348 + $0x54] sm:$0xf]
        %v2371 = vld [vmem:[%s2348 + $0x58] sm:$0xf]
        %v2372 = vld [vmem:[%s2348 + $0x5c] sm:$0xf]
        %v2373 = vld [vmem:[%s2348 + $0x60] sm:$0xf]
        %v2374 = vld [vmem:[%s2348 + $0x64] sm:$0xf]
        %v2375 = vld [vmem:[%s2348 + $0x68] sm:$0xf]
        %v2376 = vld [vmem:[%s2348 + $0x6c] sm:$0xf]
        %v2377 = vld [vmem:[%s2348 + $0x70] sm:$0xf]
        %v2378 = vld [vmem:[%s2348 + $0x74] sm:$0xf]
        %v2379 = vld [vmem:[%s2348 + $0x78] sm:$0xf]
        %v2380 = vld [vmem:[%s2348 + $0x7c] sm:$0xf]
        %v2381 = vld [vmem:[%s2348 + $0x80] sm:$0xf]
        %v2382 = vld [vmem:[%s2348 + $0x84] sm:$0xf]
        %v2383 = vld [vmem:[%s2348 + $0x88] sm:$0xf]
        %v2384 = vld [vmem:[%s2348 + $0x8c] sm:$0xf]
        %v2385 = vld [vmem:[%s2348 + $0x90] sm:$0xf]
        %v2386 = vld [vmem:[%s2348 + $0x94] sm:$0xf]
        %v2387 = vld [vmem:[%s2348 + $0x98] sm:$0xf]
        %v2388 = vld [vmem:[%s2348 + $0x9c] sm:$0xf]
        %v2389 = vld [vmem:[%s2348 + $0xa0] sm:$0xf]
        %v2390 = vld [vmem:[%s2348 + $0xa4] sm:$0xf]
        %v2391 = vld [vmem:[%s2348 + $0xa8] sm:$0xf]
        %v2392 = vld [vmem:[%s2348 + $0xac] sm:$0xf]
        %v2393 = vld [vmem:[%s2348 + $0xb0] sm:$0xf]
        %v2394 = vld [vmem:[%s2348 + $0xb4] sm:$0xf]
        %v2395 = vld [vmem:[%s2348 + $0xb8] sm:$0xf]
        %v2396 = vld [vmem:[%s2348 + $0xbc] sm:$0xf]
        %v2399 = vunpack.c.l.b16 %v2346
        %v2400 = vunpack.c.h.b16 %v2346
        %v2401 = vunpack.c.l.b16 %v2347
        %v2402 = vpack.c.b16 %v2399, %v2399
        %v2403 = vpack.c.b16 %v2400, %v2400
        %v2404 = vpack.c.b16 %v2401, %v2401
        %v2405 = vrot.slane %v2402, 1
        %v2406 = vrot.slane %v2403, 1
        %v2407 = vrot.slane %v2404, 1
        %v2459 = vunpack.c.l.b16 %v2349
        %v2460 = vunpack.c.l.b16 %v2350
        %v2461 = vunpack.c.l.b16 %v2351
        %v2462 = vunpack.c.l.b16 %v2352
        %v2463 = vunpack.c.l.b16 %v2353
        %v2464 = vunpack.c.l.b16 %v2354
        %v2465 = vunpack.c.l.b16 %v2355
        %v2466 = vunpack.c.l.b16 %v2356
        %v2467 = vunpack.c.l.b16 %v2357
        %v2468 = vunpack.c.l.b16 %v2358
        %v2469 = vunpack.c.l.b16 %v2359
        %v2470 = vunpack.c.l.b16 %v2360
        %v2471 = vunpack.c.l.b16 %v2361
        %v2472 = vunpack.c.l.b16 %v2362
        %v2473 = vunpack.c.l.b16 %v2363
        %v2474 = vunpack.c.l.b16 %v2364
        %v2475 = vunpack.c.l.b16 %v2365
        %v2476 = vunpack.c.l.b16 %v2366
        %v2477 = vunpack.c.l.b16 %v2367
        %v2478 = vunpack.c.l.b16 %v2368
        %v2479 = vunpack.c.l.b16 %v2369
        %v2480 = vunpack.c.l.b16 %v2370
        %v2481 = vunpack.c.l.b16 %v2371
        %v2482 = vunpack.c.l.b16 %v2372
        %v2483 = vunpack.c.l.b16 %v2373
        %v2484 = vunpack.c.l.b16 %v2374
        %v2485 = vunpack.c.l.b16 %v2375
        %v2486 = vunpack.c.l.b16 %v2376
        %v2487 = vunpack.c.l.b16 %v2377
        %v2488 = vunpack.c.l.b16 %v2378
        %v2489 = vunpack.c.l.b16 %v2379
        %v2490 = vunpack.c.l.b16 %v2380
        %v2491 = vunpack.c.l.b16 %v2381
        %v2492 = vunpack.c.l.b16 %v2382
        %v2493 = vunpack.c.l.b16 %v2383
        %v2494 = vunpack.c.l.b16 %v2384
        %v2495 = vunpack.c.l.b16 %v2385
        %v2496 = vunpack.c.l.b16 %v2386
        %v2497 = vunpack.c.l.b16 %v2387
        %v2498 = vunpack.c.l.b16 %v2388
        %v2499 = vunpack.c.l.b16 %v2389
        %v2500 = vunpack.c.l.b16 %v2390
        %v2501 = vunpack.c.l.b16 %v2391
        %v2502 = vunpack.c.l.b16 %v2392
        %v2503 = vunpack.c.l.b16 %v2393
        %v2504 = vunpack.c.l.b16 %v2394
        %v2505 = vunpack.c.l.b16 %v2395
        %v2506 = vunpack.c.l.b16 %v2396
        %v2507 = vpack.c.b16 %v2460, %v2459
        %v2508 = vpack.c.b16 %v2462, %v2461
        %v2509 = vpack.c.b16 %v2464, %v2463
        %v2510 = vpack.c.b16 %v2466, %v2465
        %v2511 = vpack.c.b16 %v2468, %v2467
        %v2512 = vpack.c.b16 %v2470, %v2469
        %v2513 = vpack.c.b16 %v2472, %v2471
        %v2514 = vpack.c.b16 %v2474, %v2473
        %v2515 = vpack.c.b16 %v2476, %v2475
        %v2516 = vpack.c.b16 %v2478, %v2477
        %v2517 = vpack.c.b16 %v2480, %v2479
        %v2518 = vpack.c.b16 %v2482, %v2481
        %v2519 = vpack.c.b16 %v2484, %v2483
        %v2520 = vpack.c.b16 %v2486, %v2485
        %v2521 = vpack.c.b16 %v2488, %v2487
        %v2522 = vpack.c.b16 %v2490, %v2489
        %v2523 = vpack.c.b16 %v2492, %v2491
        %v2524 = vpack.c.b16 %v2494, %v2493
        %v2525 = vpack.c.b16 %v2496, %v2495
        %v2526 = vpack.c.b16 %v2498, %v2497
        %v2527 = vpack.c.b16 %v2500, %v2499
        %v2528 = vpack.c.b16 %v2502, %v2501
        %v2529 = vpack.c.b16 %v2504, %v2503
        %v2530 = vpack.c.b16 %v2506, %v2505
        %2555 = vmatprep.subr.bf16.mxu0 0
        %2556 = vmatpush1.bf16.msra.mxu0 %v2507
        %2557 = vmatprep.subr.bf16.mxu0 0
        %2558 = vmatpush1.bf16.msra.mxu0 %v2508
        %2559 = vmatprep.subr.bf16.mxu0 0
        %2560 = vmatpush1.bf16.msra.mxu0 %v2509
        %2561 = vmatprep.subr.bf16.mxu0 0
        %2562 = vmatpush1.bf16.msra.mxu0 %v2510
        %2563 = vmatprep.subr.bf16.mxu0 0
        %2564 = vmatpush1.bf16.msra.mxu0 %v2511
        %2565 = vmatprep.subr.bf16.mxu0 0
        %2566 = vmatpush1.bf16.msra.mxu0 %v2512
        %2567 = vmatprep.subr.bf16.mxu0 0
        %2568 = vmatpush1.bf16.msra.mxu0 %v2513
        %2569 = vmatprep.subr.bf16.mxu0 0
        %2570 = vmatpush1.bf16.msra.mxu0 %v2514
        %2571 = vmatprep.subr.bf16.mxu0 0
        %2572 = vmatpush1.bf16.msra.mxu0 %v2515
        %2573 = vmatprep.subr.bf16.mxu0 0
        %2574 = vmatpush1.bf16.msra.mxu0 %v2516
        %2575 = vmatprep.subr.bf16.mxu0 0
        %2576 = vmatpush1.bf16.msra.mxu0 %v2517
        %2577 = vmatprep.subr.bf16.mxu0 0
        %2578 = vmatpush1.bf16.msra.mxu0 %v2518
        %2579 = vmatprep.subr.bf16.mxu0 0
        %2580 = vmatpush1.bf16.msra.mxu0 %v2519
        %2581 = vmatprep.subr.bf16.mxu0 0
        %2582 = vmatpush1.bf16.msra.mxu0 %v2520
        %2583 = vmatprep.subr.bf16.mxu0 0
        %2584 = vmatpush1.bf16.msra.mxu0 %v2521
        %2585 = vmatprep.subr.bf16.mxu0 0
        %2586 = vmatpush1.bf16.msra.mxu0 %v2522
        %2587 = vmatprep.mubr.bf16.mxu0 %v2406
        %2588 = vmatmul.mubr.bf16.gmra.mrb[0].mxu0 %v2405
        %v2589 = vpop.f32.mrb[0].mxu0
        %v2590 = vadd.f32 0.0, %v2589
        %v2591 = vpop.f32.mrb[0].mxu0
        %v2592 = vpop.f32.mrb[0].mxu0
        %v2593 = vpop.f32.mrb[0].mxu0
        %2594 = vdwg.mxu0
        %2595 = vmatprep.subr.bf16.mxu0 0
        %2596 = vmatpush1.bf16.msra.mxu0 %v2523
        %2597 = vmatprep.subr.bf16.mxu0 0
        %2598 = vmatpush1.bf16.msra.mxu0 %v2524
        %2599 = vmatprep.subr.bf16.mxu0 0
        %2600 = vmatpush1.bf16.msra.mxu0 %v2525
        %2601 = vmatprep.subr.bf16.mxu0 0
        %2602 = vmatpush1.bf16.msra.mxu0 %v2526
        %2603 = vmatprep.subr.bf16.mxu0 0
        %2604 = vmatpush1.bf16.msra.mxu0 %v2527
        %2605 = vmatprep.subr.bf16.mxu0 0
        %2606 = vmatpush1.bf16.msra.mxu0 %v2528
        %2607 = vmatprep.subr.bf16.mxu0 0
        %2608 = vmatpush1.bf16.msra.mxu0 %v2529
        %2609 = vmatprep.subr.bf16.mxu0 0
        %2610 = vmatpush1.bf16.msra.mxu0 %v2530
        %2611 = vmatprep.subr.bf16.mxu0 0
        %2612 = vmatpush1.bf16.msra.mxu0 0
        %2613 = vmatprep.subr.bf16.mxu0 0
        %2614 = vmatpush1.bf16.msra.mxu0 0
        %2615 = vmatprep.subr.bf16.mxu0 0
        %2616 = vmatpush1.bf16.msra.mxu0 0
        %2617 = vmatprep.subr.bf16.mxu0 0
        %2618 = vmatpush1.bf16.msra.mxu0 0
        %2619 = vmatprep.subr.bf16.mxu0 0
        %2620 = vmatpush1.bf16.msra.mxu0 0
        %2621 = vmatprep.subr.bf16.mxu0 0
        %2622 = vmatpush1.bf16.msra.mxu0 0
        %2623 = vmatprep.subr.bf16.mxu0 0
        %2624 = vmatpush1.bf16.msra.mxu0 0
        %2625 = vmatprep.subr.bf16.mxu0 0
        %2626 = vmatpush1.bf16.msra.mxu0 0
        %2627 = vmatprep.mubr.bf16.mxu0 0
        %2628 = vmatmul.mubr.bf16.gmra.mrb[0].mxu0 %v2407
        %v2629 = vpop.f32.mrb[0].mxu0
        %v2630 = vadd.f32 %v2590, %v2629
        %v2631 = vpop.f32.mrb[0].mxu0
        %v2632 = vpop.f32.mrb[0].mxu0
        %v2633 = vpop.f32.mrb[0].mxu0
        %2634 = vdwg.mxu0
        %v2635 = vadd.f32 %v2341, %v2630
        %v2637 = vlaneseq
        %v2638 = vshrl.u32 %v2637, 7
        %v2639 = vsub.s32 0, %v2638
        %v2640 = vrot.slane %v1752, %v2639
        %v2641 = vlaneseq
        %v2642 = vshrl.u32 %v2641, 7
        %v2643 = vsub.s32 2, %v2642
        %v2644 = vrot.slane %v1752, %v2643
        %v2647 = vlaneseq
        %v2648 = vshrl.u32 %v2647, 7
        %v2649 = vsub.s32 0, %v2648
        %v2650 = vrot.slane %v2640, %v2649
        %v2651 = vlaneseq
        %v2652 = vshrl.u32 %v2651, 7
        %v2653 = vsub.s32 0, %v2652
        %v2654 = vrot.slane %v2644, %v2653
        %2657 = vrot.lane.b32.xlu0 %v2650, 32
        %v2658 = vpop.permute.xlu0 %2657
        %2659 = vrot.lane.b32.xlu0 %v2654, 32
        %v2660 = vpop.permute.xlu0 %2659
        %v2661 = vsel %vm1199, %v2658, %v2660
        %v2663 = vmul.f32 %v2635, %v2661
        %v2665 = vlaneseq
        %v2666 = vshrl.u32 %v2665, 7
        %v2667 = vsub.s32 0, %v2666
        %v2668 = vrot.slane %v1753, %v2667
        %v2669 = vlaneseq
        %v2670 = vshrl.u32 %v2669, 7
        %v2671 = vsub.s32 2, %v2670
        %v2672 = vrot.slane %v1753, %v2671
        %v2675 = vlaneseq
        %v2676 = vshrl.u32 %v2675, 7
        %v2677 = vsub.s32 0, %v2676
        %v2678 = vrot.slane %v2668, %v2677
        %v2679 = vlaneseq
        %v2680 = vshrl.u32 %v2679, 7
        %v2681 = vsub.s32 0, %v2680
        %v2682 = vrot.slane %v2672, %v2681
        %2685 = vrot.lane.b32.xlu0 %v2678, 32
        %v2686 = vpop.permute.xlu0 %2685
        %2687 = vrot.lane.b32.xlu0 %v2682, 32
        %v2688 = vpop.permute.xlu0 %2687
        %v2689 = vsel %vm1199, %v2686, %v2688
        %v2691 = vadd.f32 %v2663, %v2689
        %v2692 = vmax.f32 %v2691, 0.0
        %v2693 = vld [vmem:[%s14 + $0xa] sm:$0x1]
        %v2694 = vld [vmem:[%s14 + $0xb] sm:$0x1]
        %v2695 = vld [vmem:[#allocation7] sm:$0x3]
        %v2696 = vld [vmem:[%s7] sm:$0xf]
        %v2697 = vld [vmem:[%s7 + $0x4] sm:$0xf]
        %v2698 = vld [vmem:[%s7 + $0x8] sm:$0xf]
        %v2699 = vld [vmem:[%s7 + $0xc] sm:$0xf]
        %v2700 = vld [vmem:[%s7 + $0x10] sm:$0xf]
        %v2701 = vld [vmem:[%s7 + $0x14] sm:$0xf]
        %v2702 = vld [vmem:[%s7 + $0x18] sm:$0xf]
        %v2703 = vld [vmem:[%s7 + $0x1c] sm:$0xf]
        %v2704 = vld [vmem:[#allocation7] sm:$0x7]
        %s2705 = scalar_lea.vmem %s7, 32
        %v2706 = vld [vmem:[%s2705] sm:$0xf]
        %v2707 = vld [vmem:[%s2705 + $0x4] sm:$0xf]
        %v2708 = vld [vmem:[%s2705 + $0x8] sm:$0xf]
        %v2709 = vld [vmem:[%s2705 + $0xc] sm:$0xf]
        %v2710 = vld [vmem:[%s2705 + $0x10] sm:$0xf]
        %v2711 = vld [vmem:[%s2705 + $0x14] sm:$0xf]
        %v2712 = vld [vmem:[%s2705 + $0x18] sm:$0xf]
        %v2713 = vld [vmem:[%s2705 + $0x1c] sm:$0xf]
        %v2715 = vunpack.c.l.b16 %v2704
        %v2716 = vpack.c.b16 %v2715, %v2715
        %v2718 = vshrl.u32 %v2716, 16
        %v2720 = vshll.u32 %v2716, 16
        %v2722 = vrot.slane %v2720, 1
        %v2723 = vor.u32 %v2718, %v2722
        %v2732 = vunpack.c.l.b16 %v2706
        %v2733 = vunpack.c.l.b16 %v2707
        %v2734 = vunpack.c.l.b16 %v2708
        %v2735 = vunpack.c.l.b16 %v2709
        %v2736 = vunpack.c.l.b16 %v2710
        %v2737 = vunpack.c.l.b16 %v2711
        %v2738 = vunpack.c.l.b16 %v2712
        %v2739 = vunpack.c.l.b16 %v2713
        %v2740 = vpack.c.b16 %v2733, %v2732
        %v2741 = vpack.c.b16 %v2735, %v2734
        %v2742 = vpack.c.b16 %v2737, %v2736
        %v2743 = vpack.c.b16 %v2739, %v2738
        %vm2748 = vcmask 523264
        %v2750 = vsel %vm2748, %v2723, 0
        %2752 = vmatprep.subr.bf16.mxu0 0
        %2753 = vmatpush1.bf16.msra.mxu0 %v2740
        %2754 = vmatprep.subr.bf16.mxu0 0
        %2755 = vmatpush1.bf16.msra.mxu0 %v2741
        %2756 = vmatprep.subr.bf16.mxu0 0
        %2757 = vmatpush1.bf16.msra.mxu0 %v2742
        %2758 = vmatprep.subr.bf16.mxu0 0
        %2759 = vmatpush1.bf16.msra.mxu0 %v2743
        %2760 = vmatprep.subr.bf16.mxu0 0
        %2761 = vmatpush1.bf16.msra.mxu0 0
        %2762 = vmatprep.subr.bf16.mxu0 0
        %2763 = vmatpush1.bf16.msra.mxu0 0
        %2764 = vmatprep.subr.bf16.mxu0 0
        %2765 = vmatpush1.bf16.msra.mxu0 0
        %2766 = vmatprep.subr.bf16.mxu0 0
        %2767 = vmatpush1.bf16.msra.mxu0 0
        %2768 = vmatprep.subr.bf16.mxu0 0
        %2769 = vmatpush1.bf16.msra.mxu0 0
        %2770 = vmatprep.subr.bf16.mxu0 0
        %2771 = vmatpush1.bf16.msra.mxu0 0
        %2772 = vmatprep.subr.bf16.mxu0 0
        %2773 = vmatpush1.bf16.msra.mxu0 0
        %2774 = vmatprep.subr.bf16.mxu0 0
        %2775 = vmatpush1.bf16.msra.mxu0 0
        %2776 = vmatprep.subr.bf16.mxu0 0
        %2777 = vmatpush1.bf16.msra.mxu0 0
        %2778 = vmatprep.subr.bf16.mxu0 0
        %2779 = vmatpush1.bf16.msra.mxu0 0
        %2780 = vmatprep.subr.bf16.mxu0 0
        %2781 = vmatpush1.bf16.msra.mxu0 0
        %2782 = vmatprep.subr.bf16.mxu0 0
        %2783 = vmatpush1.bf16.msra.mxu0 0
        %2784 = vmatprep.mubr.bf16.mxu0 0
        %2785 = vmatmul.mubr.bf16.gmra.mrb[0].mxu0 %v2750
        %v2786 = vpop.f32.mrb[0].mxu0
        %v2787 = vadd.f32 0.0, %v2786
        %v2788 = vpop.f32.mrb[0].mxu0
        %v2789 = vpop.f32.mrb[0].mxu0
        %v2790 = vpop.f32.mrb[0].mxu0
        %2791 = vdwg.mxu0
        %v2800 = vunpack.c.l.b16 %v2696
        %v2801 = vunpack.c.l.b16 %v2697
        %v2802 = vunpack.c.l.b16 %v2698
        %v2803 = vunpack.c.l.b16 %v2699
        %v2804 = vunpack.c.l.b16 %v2700
        %v2805 = vunpack.c.l.b16 %v2701
        %v2806 = vunpack.c.l.b16 %v2702
        %v2807 = vunpack.c.l.b16 %v2703
        %v2808 = vpack.c.b16 %v2801, %v2800
        %v2809 = vpack.c.b16 %v2803, %v2802
        %v2810 = vpack.c.b16 %v2805, %v2804
        %v2811 = vpack.c.b16 %v2807, %v2806
        %v2817 = vsel %vm2748, %v2695, 0
        %2819 = vmatprep.subr.bf16.mxu0 0
        %2820 = vmatpush1.bf16.msra.mxu0 %v2808
        %2821 = vmatprep.subr.bf16.mxu0 0
        %2822 = vmatpush1.bf16.msra.mxu0 %v2809
        %2823 = vmatprep.subr.bf16.mxu0 0
        %2824 = vmatpush1.bf16.msra.mxu0 %v2810
        %2825 = vmatprep.subr.bf16.mxu0 0
        %2826 = vmatpush1.bf16.msra.mxu0 %v2811
        %2827 = vmatprep.subr.bf16.mxu0 0
        %2828 = vmatpush1.bf16.msra.mxu0 0
        %2829 = vmatprep.subr.bf16.mxu0 0
        %2830 = vmatpush1.bf16.msra.mxu0 0
        %2831 = vmatprep.subr.bf16.mxu0 0
        %2832 = vmatpush1.bf16.msra.mxu0 0
        %2833 = vmatprep.subr.bf16.mxu0 0
        %2834 = vmatpush1.bf16.msra.mxu0 0
        %2835 = vmatprep.subr.bf16.mxu0 0
        %2836 = vmatpush1.bf16.msra.mxu0 0
        %2837 = vmatprep.subr.bf16.mxu0 0
        %2838 = vmatpush1.bf16.msra.mxu0 0
        %2839 = vmatprep.subr.bf16.mxu0 0
        %2840 = vmatpush1.bf16.msra.mxu0 0
        %2841 = vmatprep.subr.bf16.mxu0 0
        %2842 = vmatpush1.bf16.msra.mxu0 0
        %2843 = vmatprep.subr.bf16.mxu0 0
        %2844 = vmatpush1.bf16.msra.mxu0 0
        %2845 = vmatprep.subr.bf16.mxu0 0
        %2846 = vmatpush1.bf16.msra.mxu0 0
        %2847 = vmatprep.subr.bf16.mxu0 0
        %2848 = vmatpush1.bf16.msra.mxu0 0
        %2849 = vmatprep.subr.bf16.mxu0 0
        %2850 = vmatpush1.bf16.msra.mxu0 0
        %2851 = vmatprep.mubr.bf16.mxu0 0
        %2852 = vmatmul.mubr.bf16.gmra.mrb[0].mxu0 %v2817
        %v2853 = vpop.f32.mrb[0].mxu0
        %v2854 = vadd.f32 %v2787, %v2853
        %v2855 = vpop.f32.mrb[0].mxu0
        %v2856 = vpop.f32.mrb[0].mxu0
        %v2857 = vpop.f32.mrb[0].mxu0
        %2858 = vdwg.mxu0
        %v2859 = vld [vmem:[#allocation7] sm:$0x6]
        %s2860 = scalar_lea.vmem %s7, 64
        %v2861 = vld [vmem:[%s2860] sm:$0xf]
        %v2862 = vld [vmem:[%s2860 + $0x4] sm:$0xf]
        %v2863 = vld [vmem:[%s2860 + $0x8] sm:$0xf]
        %v2864 = vld [vmem:[%s2860 + $0xc] sm:$0xf]
        %v2865 = vld [vmem:[%s2860 + $0x10] sm:$0xf]
        %v2866 = vld [vmem:[%s2860 + $0x14] sm:$0xf]
        %v2867 = vld [vmem:[%s2860 + $0x18] sm:$0xf]
        %v2868 = vld [vmem:[%s2860 + $0x1c] sm:$0xf]
        %v2870 = vunpack.c.l.b16 %v2859
        %v2871 = vpack.c.b16 %v2870, %v2870
        %v2872 = vrot.slane %v2871, 1
        %v2881 = vunpack.c.l.b16 %v2861
        %v2882 = vunpack.c.l.b16 %v2862
        %v2883 = vunpack.c.l.b16 %v2863
        %v2884 = vunpack.c.l.b16 %v2864
        %v2885 = vunpack.c.l.b16 %v2865
        %v2886 = vunpack.c.l.b16 %v2866
        %v2887 = vunpack.c.l.b16 %v2867
        %v2888 = vunpack.c.l.b16 %v2868
        %v2889 = vpack.c.b16 %v2882, %v2881
        %v2890 = vpack.c.b16 %v2884, %v2883
        %v2891 = vpack.c.b16 %v2886, %v2885
        %v2892 = vpack.c.b16 %v2888, %v2887
        %v2898 = vsel %vm2748, %v2872, 0
        %2900 = vmatprep.subr.bf16.mxu0 0
        %2901 = vmatpush1.bf16.msra.mxu0 %v2889
        %2902 = vmatprep.subr.bf16.mxu0 0
        %2903 = vmatpush1.bf16.msra.mxu0 %v2890
        %2904 = vmatprep.subr.bf16.mxu0 0
        %2905 = vmatpush1.bf16.msra.mxu0 %v2891
        %2906 = vmatprep.subr.bf16.mxu0 0
        %2907 = vmatpush1.bf16.msra.mxu0 %v2892
        %2908 = vmatprep.subr.bf16.mxu0 0
        %2909 = vmatpush1.bf16.msra.mxu0 0
        %2910 = vmatprep.subr.bf16.mxu0 0
        %2911 = vmatpush1.bf16.msra.mxu0 0
        %2912 = vmatprep.subr.bf16.mxu0 0
        %2913 = vmatpush1.bf16.msra.mxu0 0
        %2914 = vmatprep.subr.bf16.mxu0 0
        %2915 = vmatpush1.bf16.msra.mxu0 0
        %2916 = vmatprep.subr.bf16.mxu0 0
        %2917 = vmatpush1.bf16.msra.mxu0 0
        %2918 = vmatprep.subr.bf16.mxu0 0
        %2919 = vmatpush1.bf16.msra.mxu0 0
        %2920 = vmatprep.subr.bf16.mxu0 0
        %2921 = vmatpush1.bf16.msra.mxu0 0
        %2922 = vmatprep.subr.bf16.mxu0 0
        %2923 = vmatpush1.bf16.msra.mxu0 0
        %2924 = vmatprep.subr.bf16.mxu0 0
        %2925 = vmatpush1.bf16.msra.mxu0 0
        %2926 = vmatprep.subr.bf16.mxu0 0
        %2927 = vmatpush1.bf16.msra.mxu0 0
        %2928 = vmatprep.subr.bf16.mxu0 0
        %2929 = vmatpush1.bf16.msra.mxu0 0
        %2930 = vmatprep.subr.bf16.mxu0 0
        %2931 = vmatpush1.bf16.msra.mxu0 0
        %2932 = vmatprep.mubr.bf16.mxu0 0
        %2933 = vmatmul.mubr.bf16.gmra.mrb[0].mxu0 %v2898
        %v2934 = vpop.f32.mrb[0].mxu0
        %v2935 = vadd.f32 0.0, %v2934
        %v2936 = vpop.f32.mrb[0].mxu0
        %v2937 = vpop.f32.mrb[0].mxu0
        %v2938 = vpop.f32.mrb[0].mxu0
        %2939 = vdwg.mxu0
        %v2940 = vadd.f32 %v2854, %v2935
        %v2941 = vld [vmem:[#allocation7] sm:$0xe]
        %s2942 = scalar_lea.vmem %s7, 96
        %v2943 = vld [vmem:[%s2942] sm:$0xf]
        %v2944 = vld [vmem:[%s2942 + $0x4] sm:$0xf]
        %v2945 = vld [vmem:[%s2942 + $0x8] sm:$0xf]
        %v2946 = vld [vmem:[%s2942 + $0xc] sm:$0xf]
        %v2947 = vld [vmem:[%s2942 + $0x10] sm:$0xf]
        %v2948 = vld [vmem:[%s2942 + $0x14] sm:$0xf]
        %v2949 = vld [vmem:[%s2942 + $0x18] sm:$0xf]
        %v2950 = vld [vmem:[%s2942 + $0x1c] sm:$0xf]
        %v2952 = vunpack.c.l.b16 %v2941
        %v2953 = vpack.c.b16 %v2952, %v2952
        %v2955 = vshrl.u32 %v2953, 16
        %v2957 = vrot.slane %v2955, 1
        %v2958 = vshll.u32 %v2953, 16
        %v2960 = vrot.slane %v2958, 2
        %v2961 = vor.u32 %v2957, %v2960
        %v2970 = vunpack.c.l.b16 %v2943
        %v2971 = vunpack.c.l.b16 %v2944
        %v2972 = vunpack.c.l.b16 %v2945
        %v2973 = vunpack.c.l.b16 %v2946
        %v2974 = vunpack.c.l.b16 %v2947
        %v2975 = vunpack.c.l.b16 %v2948
        %v2976 = vunpack.c.l.b16 %v2949
        %v2977 = vunpack.c.l.b16 %v2950
        %v2978 = vpack.c.b16 %v2971, %v2970
        %v2979 = vpack.c.b16 %v2973, %v2972
        %v2980 = vpack.c.b16 %v2975, %v2974
        %v2981 = vpack.c.b16 %v2977, %v2976
        %v2987 = vsel %vm2748, %v2961, 0
        %2989 = vmatprep.subr.bf16.mxu0 0
        %2990 = vmatpush1.bf16.msra.mxu0 %v2978
        %2991 = vmatprep.subr.bf16.mxu0 0
        %2992 = vmatpush1.bf16.msra.mxu0 %v2979
        %2993 = vmatprep.subr.bf16.mxu0 0
        %2994 = vmatpush1.bf16.msra.mxu0 %v2980
        %2995 = vmatprep.subr.bf16.mxu0 0
        %2996 = vmatpush1.bf16.msra.mxu0 %v2981
        %2997 = vmatprep.subr.bf16.mxu0 0
        %2998 = vmatpush1.bf16.msra.mxu0 0
        %2999 = vmatprep.subr.bf16.mxu0 0
        %3000 = vmatpush1.bf16.msra.mxu0 0
        %3001 = vmatprep.subr.bf16.mxu0 0
        %3002 = vmatpush1.bf16.msra.mxu0 0
        %3003 = vmatprep.subr.bf16.mxu0 0
        %3004 = vmatpush1.bf16.msra.mxu0 0
        %3005 = vmatprep.subr.bf16.mxu0 0
        %3006 = vmatpush1.bf16.msra.mxu0 0
        %3007 = vmatprep.subr.bf16.mxu0 0
        %3008 = vmatpush1.bf16.msra.mxu0 0
        %3009 = vmatprep.subr.bf16.mxu0 0
        %3010 = vmatpush1.bf16.msra.mxu0 0
        %3011 = vmatprep.subr.bf16.mxu0 0
        %3012 = vmatpush1.bf16.msra.mxu0 0
        %3013 = vmatprep.subr.bf16.mxu0 0
        %3014 = vmatpush1.bf16.msra.mxu0 0
        %3015 = vmatprep.subr.bf16.mxu0 0
        %3016 = vmatpush1.bf16.msra.mxu0 0
        %3017 = vmatprep.subr.bf16.mxu0 0
        %3018 = vmatpush1.bf16.msra.mxu0 0
        %3019 = vmatprep.subr.bf16.mxu0 0
        %3020 = vmatpush1.bf16.msra.mxu0 0
        %3021 = vmatprep.mubr.bf16.mxu0 0
        %3022 = vmatmul.mubr.bf16.gmra.mrb[0].mxu0 %v2987
        %v3023 = vpop.f32.mrb[0].mxu0
        %v3024 = vadd.f32 0.0, %v3023
        %v3025 = vpop.f32.mrb[0].mxu0
        %v3026 = vpop.f32.mrb[0].mxu0
        %v3027 = vpop.f32.mrb[0].mxu0
        %3028 = vdwg.mxu0
        %v3029 = vadd.f32 %v2940, %v3024
        %v3030 = vld [vmem:[#allocation7] sm:$0xc]
        %s3031 = scalar_lea.vmem %s7, 128
        %v3032 = vld [vmem:[%s3031] sm:$0xf]
        %v3033 = vld [vmem:[%s3031 + $0x4] sm:$0xf]
        %v3034 = vld [vmem:[%s3031 + $0x8] sm:$0xf]
        %v3035 = vld [vmem:[%s3031 + $0xc] sm:$0xf]
        %v3036 = vld [vmem:[%s3031 + $0x10] sm:$0xf]
        %v3037 = vld [vmem:[%s3031 + $0x14] sm:$0xf]
        %v3038 = vld [vmem:[%s3031 + $0x18] sm:$0xf]
        %v3039 = vld [vmem:[%s3031 + $0x1c] sm:$0xf]
        %v3041 = vunpack.c.l.b16 %v3030
        %v3042 = vpack.c.b16 %v3041, %v3041
        %v3043 = vrot.slane %v3042, 2
        %v3052 = vunpack.c.l.b16 %v3032
        %v3053 = vunpack.c.l.b16 %v3033
        %v3054 = vunpack.c.l.b16 %v3034
        %v3055 = vunpack.c.l.b16 %v3035
        %v3056 = vunpack.c.l.b16 %v3036
        %v3057 = vunpack.c.l.b16 %v3037
        %v3058 = vunpack.c.l.b16 %v3038
        %v3059 = vunpack.c.l.b16 %v3039
        %v3060 = vpack.c.b16 %v3053, %v3052
        %v3061 = vpack.c.b16 %v3055, %v3054
        %v3062 = vpack.c.b16 %v3057, %v3056
        %v3063 = vpack.c.b16 %v3059, %v3058
        %v3069 = vsel %vm2748, %v3043, 0
        %3071 = vmatprep.subr.bf16.mxu0 0
        %3072 = vmatpush1.bf16.msra.mxu0 %v3060
        %3073 = vmatprep.subr.bf16.mxu0 0
        %3074 = vmatpush1.bf16.msra.mxu0 %v3061
        %3075 = vmatprep.subr.bf16.mxu0 0
        %3076 = vmatpush1.bf16.msra.mxu0 %v3062
        %3077 = vmatprep.subr.bf16.mxu0 0
        %3078 = vmatpush1.bf16.msra.mxu0 %v3063
        %3079 = vmatprep.subr.bf16.mxu0 0
        %3080 = vmatpush1.bf16.msra.mxu0 0
        %3081 = vmatprep.subr.bf16.mxu0 0
        %3082 = vmatpush1.bf16.msra.mxu0 0
        %3083 = vmatprep.subr.bf16.mxu0 0
        %3084 = vmatpush1.bf16.msra.mxu0 0
        %3085 = vmatprep.subr.bf16.mxu0 0
        %3086 = vmatpush1.bf16.msra.mxu0 0
        %3087 = vmatprep.subr.bf16.mxu0 0
        %3088 = vmatpush1.bf16.msra.mxu0 0
        %3089 = vmatprep.subr.bf16.mxu0 0
        %3090 = vmatpush1.bf16.msra.mxu0 0
        %3091 = vmatprep.subr.bf16.mxu0 0
        %3092 = vmatpush1.bf16.msra.mxu0 0
        %3093 = vmatprep.subr.bf16.mxu0 0
        %3094 = vmatpush1.bf16.msra.mxu0 0
        %3095 = vmatprep.subr.bf16.mxu0 0
        %3096 = vmatpush1.bf16.msra.mxu0 0
        %3097 = vmatprep.subr.bf16.mxu0 0
        %3098 = vmatpush1.bf16.msra.mxu0 0
        %3099 = vmatprep.subr.bf16.mxu0 0
        %3100 = vmatpush1.bf16.msra.mxu0 0
        %3101 = vmatprep.subr.bf16.mxu0 0
        %3102 = vmatpush1.bf16.msra.mxu0 0
        %3103 = vmatprep.mubr.bf16.mxu0 0
        %3104 = vmatmul.mubr.bf16.gmra.mrb[0].mxu0 %v3069
        %v3105 = vpop.f32.mrb[0].mxu0
        %v3106 = vadd.f32 0.0, %v3105
        %v3107 = vpop.f32.mrb[0].mxu0
        %v3108 = vpop.f32.mrb[0].mxu0
        %v3109 = vpop.f32.mrb[0].mxu0
        %3110 = vdwg.mxu0
        %v3111 = vadd.f32 %v3029, %v3106
        %v3112 = vlaneseq
        %v3113 = vshrl.u32 %v3112, 7
        %v3114 = vsub.s32 0, %v3113
        %v3115 = vrot.slane %v2693, %v3114
        %3117 = vrot.lane.b32.xlu0 %v3115, 96
        %v3118 = vpop.permute.xlu0 %3117
        %v3120 = vmul.f32 %v3111, %v3118
        %v3121 = vlaneseq
        %v3122 = vshrl.u32 %v3121, 7
        %v3123 = vsub.s32 0, %v3122
        %v3124 = vrot.slane %v2694, %v3123
        %3126 = vrot.lane.b32.xlu0 %v3124, 96
        %v3127 = vpop.permute.xlu0 %3126
        %v3129 = vadd.f32 %v3120, %v3127
        %v3130 = vmax.f32 %v3129, 0.0
        %v3131 = vld [vmem:[#allocation5] sm:$0x7]
        %v3132 = vld [vmem:[#allocation5] sm:$0x3]
        %v3134 = vshrl.u32 %v3132, 16
        %v3136 = vrot.slane %v3134, 7
        %v3137 = vshll.u32 %v3132, 16
        %v3139 = vor.u32 %v3136, %v3137
        %3140 = vrot.lane.b32.xlu0 %v3139, 8
        %v3141 = vpop.permute.xlu0 %3140
        %v3143 = vmax.bf16 %v3131, %v3141
        %v3145 = vmax.bf16 %v3143, %v3139
        %3146 = vrot.lane.b32.xlu0 %v3139, 120
        %v3147 = vpop.permute.xlu0 %3146
        %v3149 = vmax.bf16 %v3145, %v3147
        %3151 = vrot.lane.b32.xlu0 %v3131, 8
        %v3152 = vpop.permute.xlu0 %3151
        %v3154 = vmax.bf16 %v3149, %v3152
        %3155 = vrot.lane.b32.xlu0 %v3131, 120
        %v3156 = vpop.permute.xlu0 %3155
        %v3158 = vmax.bf16 %v3154, %v3156
        %v3159 = vld [vmem:[#allocation5] sm:$0x6]
        %v3161 = vshrl.u32 %v3159, 16
        %v3163 = vrot.slane %v3161, 4
        %v3164 = vshll.u32 %v3159, 16
        %v3166 = vrot.slane %v3164, 5
        %v3167 = vor.u32 %v3163, %v3166
        %v3168 = vrot.slane %v3167, 4
        %3169 = vrot.lane.b32.xlu0 %v3168, 8
        %v3170 = vpop.permute.xlu0 %3169
        %v3172 = vmax.bf16 %v3158, %v3170
        %v3174 = vmax.bf16 %v3172, %v3168
        %3175 = vrot.lane.b32.xlu0 %v3168, 120
        %v3176 = vpop.permute.xlu0 %3175
        %v3178 = vmax.bf16 %v3174, %v3176
        %v3179 = vld [vmem:[%s8] sm:$0xf]
        %v3180 = vld [vmem:[%s8 + $0x4] sm:$0xf]
        %v3181 = vld [vmem:[%s8 + $0x8] sm:$0xf]
        %v3182 = vld [vmem:[%s8 + $0xc] sm:$0xf]
        %v3184 = vunpack.c.l.b16 %v3178
        %v3185 = vpack.c.b16 %v3184, %v3184
        %v3187 = vshrl.u32 %v3185, 16
        %v3189 = vshll.u32 %v3185, 16
        %v3191 = vrot.slane %v3189, 1
        %v3192 = vor.u32 %v3187, %v3191
        %3193 = vrot.lane.b32.xlu0 %v3192, 120
        %v3194 = vpop.permute.xlu0 %3193
        %v3199 = vunpack.c.l.b16 %v3179
        %v3200 = vunpack.c.l.b16 %v3180
        %v3201 = vunpack.c.l.b16 %v3181
        %v3202 = vunpack.c.l.b16 %v3182
        %v3203 = vpack.c.b16 %v3200, %v3199
        %v3204 = vpack.c.b16 %v3202, %v3201
        %v3208 = vsel %vm1199, %v3194, 0
        %3210 = vmatprep.subr.bf16.mxu0 0
        %3211 = vmatpush1.bf16.msra.mxu0 %v3203
        %3212 = vmatprep.subr.bf16.mxu0 0
        %3213 = vmatpush1.bf16.msra.mxu0 %v3204
        %3214 = vmatprep.subr.bf16.mxu0 0
        %3215 = vmatpush1.bf16.msra.mxu0 0
        %3216 = vmatprep.subr.bf16.mxu0 0
        %3217 = vmatpush1.bf16.msra.mxu0 0
        %3218 = vmatprep.subr.bf16.mxu0 0
        %3219 = vmatpush1.bf16.msra.mxu0 0
        %3220 = vmatprep.subr.bf16.mxu0 0
        %3221 = vmatpush1.bf16.msra.mxu0 0
        %3222 = vmatprep.subr.bf16.mxu0 0
        %3223 = vmatpush1.bf16.msra.mxu0 0
        %3224 = vmatprep.subr.bf16.mxu0 0
        %3225 = vmatpush1.bf16.msra.mxu0 0
        %3226 = vmatprep.subr.bf16.mxu0 0
        %3227 = vmatpush1.bf16.msra.mxu0 0
        %3228 = vmatprep.subr.bf16.mxu0 0
        %3229 = vmatpush1.bf16.msra.mxu0 0
        %3230 = vmatprep.subr.bf16.mxu0 0
        %3231 = vmatpush1.bf16.msra.mxu0 0
        %3232 = vmatprep.subr.bf16.mxu0 0
        %3233 = vmatpush1.bf16.msra.mxu0 0
        %3234 = vmatprep.subr.bf16.mxu0 0
        %3235 = vmatpush1.bf16.msra.mxu0 0
        %3236 = vmatprep.subr.bf16.mxu0 0
        %3237 = vmatpush1.bf16.msra.mxu0 0
        %3238 = vmatprep.subr.bf16.mxu0 0
        %3239 = vmatpush1.bf16.msra.mxu0 0
        %3240 = vmatprep.subr.bf16.mxu0 0
        %3241 = vmatpush1.bf16.msra.mxu0 0
        %3242 = vmatprep.mubr.bf16.mxu0 0
        %3243 = vmatmul.mubr.bf16.gmra.mrb[0].mxu0 %v3208
        %v3244 = vpop.f32.mrb[0].mxu0
        %v3245 = vadd.f32 0.0, %v3244
        %v3246 = vpop.f32.mrb[0].mxu0
        %v3247 = vpop.f32.mrb[0].mxu0
        %v3248 = vpop.f32.mrb[0].mxu0
        %3249 = vdwg.mxu0
        %3250 = vrot.lane.b32.xlu0 %v3115, 64
        %v3251 = vpop.permute.xlu0 %3250
        %v3253 = vmul.f32 %v3245, %v3251
        %3254 = vrot.lane.b32.xlu0 %v3124, 64
        %v3255 = vpop.permute.xlu0 %3254
        %v3257 = vadd.f32 %v3253, %v3255
        %v3258 = vmax.f32 %v3257, 0.0
        %v3260 = vrot.slane %v1688, 1
        %v3262 = vmax.f32 %v1688, %v3260
        %3263 = vst.msk [vmem:[#allocation3] sm:$0x1] %vm500, %v3262
        %v3265 = vrot.slane %v3262, 2
        %3267 = vst.msk [vmem:[#allocation3 + $0x1] sm:$0x1] %vm500, %v3265
        %v3269 = vrot.slane %v2692, 1
        %v3271 = vmax.f32 %v2692, %v3269
        %3273 = vrot.lane.b32.xlu0 %v3271, 32
        %v3274 = vpop.permute.xlu0 %3273
        %vm3276 = vcmask 778496
        %3277 = vst.msk [vmem:[#allocation3] sm:$0x1] %vm3276, %v3274
        %v3278 = vrot.slane %v3271, 2
        %3279 = vrot.lane.b32.xlu0 %v3278, 32
        %v3280 = vpop.permute.xlu0 %3279
        %3282 = vst.msk [vmem:[#allocation3 + $0x1] sm:$0x1] %vm3276, %v3280
        %v3284 = vrot.slane %v3130, 1
        %v3286 = vmax.f32 %v3130, %v3284
        %3288 = vrot.lane.b32.xlu0 %v3286, 96
        %v3289 = vpop.permute.xlu0 %3288
        %vm3291 = vcmask 1041152
        %3292 = vst.msk [vmem:[#allocation3] sm:$0x1] %vm3291, %v3289
        %v3293 = vrot.slane %v3286, 2
        %3294 = vrot.lane.b32.xlu0 %v3293, 96
        %v3295 = vpop.permute.xlu0 %3294
        %3297 = vst.msk [vmem:[#allocation3 + $0x1] sm:$0x1] %vm3291, %v3295
        %v3299 = vrot.slane %v3258, 1
        %v3301 = vmax.f32 %v3258, %v3299
        %3302 = vst.msk [vmem:[#allocation3 + $0x8] sm:$0x1] %vm1023, %v3301
        %v3304 = vrot.slane %v3301, 2
        %3306 = vst.msk [vmem:[#allocation3 + $0x9] sm:$0x1] %vm1023, %v3304
        %v3307 = vld [vmem:[#allocation3] sm:$0x3]
        %3309 = vrot.lane.b32.xlu0 %v3307, 120
        %v3310 = vpop.permute.xlu0 %3309
        %v3312 = vmax.f32 %v3307, %v3310
        %v3313 = vpack.c.bf16 %v3312, %v3312
        %v3314 = vld [vmem:[%s9] sm:$0xf]
        %v3315 = vld [vmem:[%s9 + $0x4] sm:$0xf]
        %v3316 = vld [vmem:[%s9 + $0x8] sm:$0xf]
        %3317 = vrot.lane.b32.xlu0 %v3307, 112
        %v3318 = vpop.permute.xlu0 %3317
        %v3320 = vmax.f32 %v3307, %v3318
        %v3321 = vpack.c.bf16 %v3320, %v3320
        %v3322 = vld [vmem:[%s9 + $0xc] sm:$0xf]
        %v3323 = vld [vmem:[%s9 + $0x10] sm:$0xf]
        %v3324 = vld [vmem:[%s9 + $0x14] sm:$0xf]
        %v3325 = vld [vmem:[%s9 + $0x18] sm:$0xf]
        %v3326 = vld [vmem:[%s9 + $0x1c] sm:$0xf]
        %v3327 = vld [vmem:[%s9 + $0x20] sm:$0xf]
        %3329 = vrot.lane.b32.xlu0 %v3321, 96
        %v3330 = vpop.permute.xlu0 %3329
        %v3337 = vunpack.c.l.b16 %v3322
        %v3338 = vunpack.c.l.b16 %v3323
        %v3339 = vunpack.c.l.b16 %v3324
        %v3340 = vunpack.c.l.b16 %v3325
        %v3341 = vunpack.c.l.b16 %v3326
        %v3342 = vunpack.c.l.b16 %v3327
        %v3343 = vpack.c.b16 %v3338, %v3337
        %v3344 = vpack.c.b16 %v3340, %v3339
        %v3345 = vpack.c.b16 %v3342, %v3341
        %vm3349 = vcmask 392192
        %v3351 = vsel %vm3349, %v3330, 0
        %3353 = vmatprep.subr.bf16.mxu0 0
        %3354 = vmatpush1.bf16.msra.mxu0 %v3343
        %3355 = vmatprep.subr.bf16.mxu0 0
        %3356 = vmatpush1.bf16.msra.mxu0 %v3344
        %3357 = vmatprep.subr.bf16.mxu0 0
        %3358 = vmatpush1.bf16.msra.mxu0 %v3345
        %3359 = vmatprep.subr.bf16.mxu0 0
        %3360 = vmatpush1.bf16.msra.mxu0 0
        %3361 = vmatprep.subr.bf16.mxu0 0
        %3362 = vmatpush1.bf16.msra.mxu0 0
        %3363 = vmatprep.subr.bf16.mxu0 0
        %3364 = vmatpush1.bf16.msra.mxu0 0
        %3365 = vmatprep.subr.bf16.mxu0 0
        %3366 = vmatpush1.bf16.msra.mxu0 0
        %3367 = vmatprep.subr.bf16.mxu0 0
        %3368 = vmatpush1.bf16.msra.mxu0 0
        %3369 = vmatprep.subr.bf16.mxu0 0
        %3370 = vmatpush1.bf16.msra.mxu0 0
        %3371 = vmatprep.subr.bf16.mxu0 0
        %3372 = vmatpush1.bf16.msra.mxu0 0
        %3373 = vmatprep.subr.bf16.mxu0 0
        %3374 = vmatpush1.bf16.msra.mxu0 0
        %3375 = vmatprep.subr.bf16.mxu0 0
        %3376 = vmatpush1.bf16.msra.mxu0 0
        %3377 = vmatprep.subr.bf16.mxu0 0
        %3378 = vmatpush1.bf16.msra.mxu0 0
        %3379 = vmatprep.subr.bf16.mxu0 0
        %3380 = vmatpush1.bf16.msra.mxu0 0
        %3381 = vmatprep.subr.bf16.mxu0 0
        %3382 = vmatpush1.bf16.msra.mxu0 0
        %3383 = vmatprep.subr.bf16.mxu0 0
        %3384 = vmatpush1.bf16.msra.mxu0 0
        %3385 = vmatprep.mubr.bf16.mxu0 0
        %3386 = vmatmul.mubr.bf16.gmra.mrb[0].mxu0 %v3351
        %v3387 = vpop.f32.mrb[0].mxu0
        %v3388 = vadd.f32 0.0, %v3387
        %v3389 = vpop.f32.mrb[0].mxu0
        %v3390 = vpop.f32.mrb[0].mxu0
        %v3391 = vpop.f32.mrb[0].mxu0
        %3392 = vdwg.mxu0
        %v3396 = vunpack.c.l.b16 %v3314
        %v3397 = vunpack.c.l.b16 %v3315
        %v3398 = vunpack.c.l.b16 %v3316
        %v3399 = vpack.c.b16 %v3397, %v3396
        %v3400 = vpack.c.b16 %v3398, %v3398
        %vm3402 = vcmask 195584
        %v3404 = vsel %vm3402, %v3313, 0
        %v3407 = vsel %vm1437, %v3400, 0
        %3409 = vmatprep.subr.bf16.mxu0 0
        %3410 = vmatpush1.bf16.msra.mxu0 %v3399
        %3411 = vmatprep.subr.bf16.mxu0 0
        %3412 = vmatpush1.bf16.msra.mxu0 %v3407
        %3413 = vmatprep.subr.bf16.mxu0 0
        %3414 = vmatpush1.bf16.msra.mxu0 0
        %3415 = vmatprep.subr.bf16.mxu0 0
        %3416 = vmatpush1.bf16.msra.mxu0 0
        %3417 = vmatprep.subr.bf16.mxu0 0
        %3418 = vmatpush1.bf16.msra.mxu0 0
        %3419 = vmatprep.subr.bf16.mxu0 0
        %3420 = vmatpush1.bf16.msra.mxu0 0
        %3421 = vmatprep.subr.bf16.mxu0 0
        %3422 = vmatpush1.bf16.msra.mxu0 0
        %3423 = vmatprep.subr.bf16.mxu0 0
        %3424 = vmatpush1.bf16.msra.mxu0 0
        %3425 = vmatprep.subr.bf16.mxu0 0
        %3426 = vmatpush1.bf16.msra.mxu0 0
        %3427 = vmatprep.subr.bf16.mxu0 0
        %3428 = vmatpush1.bf16.msra.mxu0 0
        %3429 = vmatprep.subr.bf16.mxu0 0
        %3430 = vmatpush1.bf16.msra.mxu0 0
        %3431 = vmatprep.subr.bf16.mxu0 0
        %3432 = vmatpush1.bf16.msra.mxu0 0
        %3433 = vmatprep.subr.bf16.mxu0 0
        %3434 = vmatpush1.bf16.msra.mxu0 0
        %3435 = vmatprep.subr.bf16.mxu0 0
        %3436 = vmatpush1.bf16.msra.mxu0 0
        %3437 = vmatprep.subr.bf16.mxu0 0
        %3438 = vmatpush1.bf16.msra.mxu0 0
        %3439 = vmatprep.subr.bf16.mxu0 0
        %3440 = vmatpush1.bf16.msra.mxu0 0
        %3441 = vmatprep.mubr.bf16.mxu0 0
        %3442 = vmatmul.mubr.bf16.gmra.mrb[0].mxu0 %v3404
        %v3443 = vpop.f32.mrb[0].mxu0
        %v3444 = vadd.f32 %v3388, %v3443
        %v3445 = vpop.f32.mrb[0].mxu0
        %v3446 = vpop.f32.mrb[0].mxu0
        %v3447 = vpop.f32.mrb[0].mxu0
        %3448 = vdwg.mxu0
        %v3449 = vld [vmem:[%s9 + $0x24] sm:$0xf]
        %v3450 = vld [vmem:[%s9 + $0x28] sm:$0xf]
        %v3451 = vld [vmem:[%s9 + $0x2c] sm:$0xf]
        %3453 = vrot.lane.b32.xlu0 %v3313, 32
        %v3454 = vpop.permute.xlu0 %3453
        %v3458 = vunpack.c.l.b16 %v3449
        %v3459 = vunpack.c.l.b16 %v3450
        %v3460 = vunpack.c.l.b16 %v3451
        %v3461 = vpack.c.b16 %v3459, %v3458
        %v3462 = vpack.c.b16 %v3460, %v3460
        %v3465 = vsel %vm3402, %v3454, 0
        %v3468 = vsel %vm1437, %v3462, 0
        %3470 = vmatprep.subr.bf16.mxu0 0
        %3471 = vmatpush1.bf16.msra.mxu0 %v3461
        %3472 = vmatprep.subr.bf16.mxu0 0
        %3473 = vmatpush1.bf16.msra.mxu0 %v3468
        %3474 = vmatprep.subr.bf16.mxu0 0
        %3475 = vmatpush1.bf16.msra.mxu0 0
        %3476 = vmatprep.subr.bf16.mxu0 0
        %3477 = vmatpush1.bf16.msra.mxu0 0
        %3478 = vmatprep.subr.bf16.mxu0 0
        %3479 = vmatpush1.bf16.msra.mxu0 0
        %3480 = vmatprep.subr.bf16.mxu0 0
        %3481 = vmatpush1.bf16.msra.mxu0 0
        %3482 = vmatprep.subr.bf16.mxu0 0
        %3483 = vmatpush1.bf16.msra.mxu0 0
        %3484 = vmatprep.subr.bf16.mxu0 0
        %3485 = vmatpush1.bf16.msra.mxu0 0
        %3486 = vmatprep.subr.bf16.mxu0 0
        %3487 = vmatpush1.bf16.msra.mxu0 0
        %3488 = vmatprep.subr.bf16.mxu0 0
        %3489 = vmatpush1.bf16.msra.mxu0 0
        %3490 = vmatprep.subr.bf16.mxu0 0
        %3491 = vmatpush1.bf16.msra.mxu0 0
        %3492 = vmatprep.subr.bf16.mxu0 0
        %3493 = vmatpush1.bf16.msra.mxu0 0
        %3494 = vmatprep.subr.bf16.mxu0 0
        %3495 = vmatpush1.bf16.msra.mxu0 0
        %3496 = vmatprep.subr.bf16.mxu0 0
        %3497 = vmatpush1.bf16.msra.mxu0 0
        %3498 = vmatprep.subr.bf16.mxu0 0
        %3499 = vmatpush1.bf16.msra.mxu0 0
        %3500 = vmatprep.subr.bf16.mxu0 0
        %3501 = vmatpush1.bf16.msra.mxu0 0
        %3502 = vmatprep.mubr.bf16.mxu0 0
        %3503 = vmatmul.mubr.bf16.gmra.mrb[0].mxu0 %v3465
        %v3504 = vpop.f32.mrb[0].mxu0
        %v3505 = vadd.f32 0.0, %v3504
        %v3506 = vpop.f32.mrb[0].mxu0
        %v3507 = vpop.f32.mrb[0].mxu0
        %v3508 = vpop.f32.mrb[0].mxu0
        %3509 = vdwg.mxu0
        %v3510 = vadd.f32 %v3444, %v3505
        %v3511 = vld [vmem:[#allocation3 + $0x8] sm:$0x3]
        %3513 = vrot.lane.b32.xlu0 %v3511, 112
        %v3514 = vpop.permute.xlu0 %3513
        %v3516 = vmax.f32 %v3511, %v3514
        %v3517 = vpack.c.bf16 %v3516, %v3516
        %v3518 = vld [vmem:[%s9 + $0x30] sm:$0xf]
        %v3519 = vld [vmem:[%s9 + $0x34] sm:$0xf]
        %v3520 = vld [vmem:[%s9 + $0x38] sm:$0xf]
        %v3521 = vld [vmem:[%s9 + $0x3c] sm:$0xf]
        %v3522 = vld [vmem:[%s9 + $0x40] sm:$0xf]
        %v3523 = vld [vmem:[%s9 + $0x44] sm:$0xf]
        %v3530 = vunpack.c.l.b16 %v3518
        %v3531 = vunpack.c.l.b16 %v3519
        %v3532 = vunpack.c.l.b16 %v3520
        %v3533 = vunpack.c.l.b16 %v3521
        %v3534 = vunpack.c.l.b16 %v3522
        %v3535 = vunpack.c.l.b16 %v3523
        %v3536 = vpack.c.b16 %v3531, %v3530
        %v3537 = vpack.c.b16 %v3533, %v3532
        %v3538 = vpack.c.b16 %v3535, %v3534
        %v3543 = vsel %vm3349, %v3517, 0
        %3545 = vmatprep.subr.bf16.mxu0 0
        %3546 = vmatpush1.bf16.msra.mxu0 %v3536
        %3547 = vmatprep.subr.bf16.mxu0 0
        %3548 = vmatpush1.bf16.msra.mxu0 %v3537
        %3549 = vmatprep.subr.bf16.mxu0 0
        %3550 = vmatpush1.bf16.msra.mxu0 %v3538
        %3551 = vmatprep.subr.bf16.mxu0 0
        %3552 = vmatpush1.bf16.msra.mxu0 0
        %3553 = vmatprep.subr.bf16.mxu0 0
        %3554 = vmatpush1.bf16.msra.mxu0 0
        %3555 = vmatprep.subr.bf16.mxu0 0
        %3556 = vmatpush1.bf16.msra.mxu0 0
        %3557 = vmatprep.subr.bf16.mxu0 0
        %3558 = vmatpush1.bf16.msra.mxu0 0
        %3559 = vmatprep.subr.bf16.mxu0 0
        %3560 = vmatpush1.bf16.msra.mxu0 0
        %3561 = vmatprep.subr.bf16.mxu0 0
        %3562 = vmatpush1.bf16.msra.mxu0 0
        %3563 = vmatprep.subr.bf16.mxu0 0
        %3564 = vmatpush1.bf16.msra.mxu0 0
        %3565 = vmatprep.subr.bf16.mxu0 0
        %3566 = vmatpush1.bf16.msra.mxu0 0
        %3567 = vmatprep.subr.bf16.mxu0 0
        %3568 = vmatpush1.bf16.msra.mxu0 0
        %3569 = vmatprep.subr.bf16.mxu0 0
        %3570 = vmatpush1.bf16.msra.mxu0 0
        %3571 = vmatprep.subr.bf16.mxu0 0
        %3572 = vmatpush1.bf16.msra.mxu0 0
        %3573 = vmatprep.subr.bf16.mxu0 0
        %3574 = vmatpush1.bf16.msra.mxu0 0
        %3575 = vmatprep.subr.bf16.mxu0 0
        %3576 = vmatpush1.bf16.msra.mxu0 0
        %3577 = vmatprep.mubr.bf16.mxu0 0
        %3578 = vmatmul.mubr.bf16.gmra.mrb[0].mxu0 %v3543
        %v3579 = vpop.f32.mrb[0].mxu0
        %v3580 = vadd.f32 0.0, %v3579
        %v3581 = vpop.f32.mrb[0].mxu0
        %v3582 = vpop.f32.mrb[0].mxu0
        %v3583 = vpop.f32.mrb[0].mxu0
        %3584 = vdwg.mxu0
        %v3585 = vadd.f32 %v3510, %v3580
        %v3586 = vpack.c.bf16 %v3585, %v3585
        %v3589 = vunpack.c.l.s4 1983009808
        %v3590 = vunpack.c.0.s8 %v3589
        %v3591 = vlaneseq
        %v3592 = vshrl.u32 %v3591, 7
        %v3593 = vsub.s32 %v3590, %v3592
        %v3594 = vrot.slane %v3586, %v3593
        %v3596 = vshrl.u32 %v3594, 16
        %v3598 = vrot.slane %v3596, 7
        %v3599 = vshll.u32 %v3594, 16
        %v3601 = vor.u32 %v3598, %v3599
        %3602 = vrot.lane.b32.xlu0 %v3601, 48
        %v3603 = vpop.permute.xlu0 %3602
        %v3604 = vrot.slane %v3603, 6
        %vm3605 = vcmask 392192
        %v3606 = vsel %vm3605, %v3604, %v3603
        %vm3608 = vcmask 1041792
        %vm3609 = vsmask.f32 1282
        %vm3610 = vmand %vm3608, %vm3609
        %vm3611 = vcmask 125954
        %vm3612 = vsmask.f32 3338
        %vm3613 = vmand %vm3611, %vm3612
        %vm3614 = vmor %vm3613, %vm3610
        %v3615 = vld [vmem:[#allocation8] sm:$0xf]
        %v3616 = vsel %vm3614, %v3606, %v3615
        %3617 = vst [vmem:[#allocation8] sm:$0xf] %v3616
        %s3618 = scalar_lea.vmem %s14, 12
        %v3619 = vld [vmem:[%s3618] ss:$2 sm:$0x3]
        %s3620 = scalar_lea.vmem %s14, 13
        %v3621 = vld [vmem:[%s3620] ss:$2 sm:$0x3]
        %v3622 = vld [vmem:[%s10] sm:$0xff]
        %v3623 = vld [vmem:[%s10 + $0x8] sm:$0xff]
        %v3624 = vld [vmem:[%s10 + $0x10] sm:$0xff]
        %v3625 = vld [vmem:[%s10 + $0x18] sm:$0xff]
        %v3626 = vld [vmem:[%s10 + $0x20] sm:$0xff]
        %v3627 = vld [vmem:[%s10 + $0x28] sm:$0xff]
        %v3628 = vld [vmem:[%s10 + $0x30] sm:$0xff]
        %v3629 = vld [vmem:[%s10 + $0x38] sm:$0xff]
        %v3630 = vld [vmem:[%s10 + $0x40] sm:$0xff]
        %v3631 = vld [vmem:[%s10 + $0x48] sm:$0xff]
        %v3632 = vld [vmem:[%s10 + $0x50] sm:$0xff]
        %v3633 = vld [vmem:[%s10 + $0x58] sm:$0xff]
        %v3646 = vunpack.c.l.b16 %v3622
        %v3647 = vunpack.c.h.b16 %v3622
        %v3648 = vunpack.c.l.b16 %v3623
        %v3649 = vunpack.c.h.b16 %v3623
        %v3650 = vunpack.c.l.b16 %v3624
        %v3651 = vunpack.c.h.b16 %v3624
        %v3652 = vunpack.c.l.b16 %v3625
        %v3653 = vunpack.c.h.b16 %v3625
        %v3654 = vunpack.c.l.b16 %v3626
        %v3655 = vunpack.c.h.b16 %v3626
        %v3656 = vunpack.c.l.b16 %v3627
        %v3657 = vunpack.c.h.b16 %v3627
        %v3658 = vunpack.c.l.b16 %v3628
        %v3659 = vunpack.c.h.b16 %v3628
        %v3660 = vunpack.c.l.b16 %v3629
        %v3661 = vunpack.c.h.b16 %v3629
        %v3662 = vunpack.c.l.b16 %v3630
        %v3663 = vunpack.c.h.b16 %v3630
        %v3664 = vunpack.c.l.b16 %v3631
        %v3665 = vunpack.c.h.b16 %v3631
        %v3666 = vunpack.c.l.b16 %v3632
        %v3667 = vunpack.c.h.b16 %v3632
        %v3668 = vunpack.c.l.b16 %v3633
        %v3669 = vunpack.c.h.b16 %v3633
        %v3670 = vpack.c.b16 %v3648, %v3646
        %v3671 = vpack.c.b16 %v3649, %v3647
        %v3672 = vpack.c.b16 %v3652, %v3650
        %v3673 = vpack.c.b16 %v3653, %v3651
        %v3674 = vpack.c.b16 %v3656, %v3654
        %v3675 = vpack.c.b16 %v3657, %v3655
        %v3676 = vpack.c.b16 %v3660, %v3658
        %v3677 = vpack.c.b16 %v3661, %v3659
        %v3678 = vpack.c.b16 %v3664, %v3662
        %v3679 = vpack.c.b16 %v3665, %v3663
        %v3680 = vpack.c.b16 %v3668, %v3666
        %v3681 = vpack.c.b16 %v3669, %v3667
        %vm3694 = vcmask 785408
        %v3696 = vsel %vm3694, %v3586, 0
        %3698 = vmatprep.subr.bf16.mxu0 %v3671
        %3699 = vmatpush1.bf16.msra.mxu0 %v3670
        %3700 = vmatprep.subr.bf16.mxu0 %v3673
        %3701 = vmatpush1.bf16.msra.mxu0 %v3672
        %3702 = vmatprep.subr.bf16.mxu0 %v3675
        %3703 = vmatpush1.bf16.msra.mxu0 %v3674
        %3704 = vmatprep.subr.bf16.mxu0 %v3677
        %3705 = vmatpush1.bf16.msra.mxu0 %v3676
        %3706 = vmatprep.subr.bf16.mxu0 %v3679
        %3707 = vmatpush1.bf16.msra.mxu0 %v3678
        %3708 = vmatprep.subr.bf16.mxu0 %v3681
        %3709 = vmatpush1.bf16.msra.mxu0 %v3680
        %3710 = vmatprep.subr.bf16.mxu0 0
        %3711 = vmatpush1.bf16.msra.mxu0 0
        %3712 = vmatprep.subr.bf16.mxu0 0
        %3713 = vmatpush1.bf16.msra.mxu0 0
        %3714 = vmatprep.subr.bf16.mxu0 0
        %3715 = vmatpush1.bf16.msra.mxu0 0
        %3716 = vmatprep.subr.bf16.mxu0 0
        %3717 = vmatpush1.bf16.msra.mxu0 0
        %3718 = vmatprep.subr.bf16.mxu0 0
        %3719 = vmatpush1.bf16.msra.mxu0 0
        %3720 = vmatprep.subr.bf16.mxu0 0
        %3721 = vmatpush1.bf16.msra.mxu0 0
        %3722 = vmatprep.subr.bf16.mxu0 0
        %3723 = vmatpush1.bf16.msra.mxu0 0
        %3724 = vmatprep.subr.bf16.mxu0 0
        %3725 = vmatpush1.bf16.msra.mxu0 0
        %3726 = vmatprep.subr.bf16.mxu0 0
        %3727 = vmatpush1.bf16.msra.mxu0 0
        %3728 = vmatprep.subr.bf16.mxu0 0
        %3729 = vmatpush1.bf16.msra.mxu0 0
        %3730 = vmatprep.mubr.bf16.mxu0 0
        %3731 = vmatmul.mubr.bf16.gmra.mrb[0].mxu0 %v3696
        %v3732 = vpop.f32.mrb[0].mxu0
        %v3733 = vadd.f32 0.0, %v3732
        %v3734 = vpop.f32.mrb[0].mxu0
        %v3735 = vadd.f32 0.0, %v3734
        %v3736 = vpop.f32.mrb[0].mxu0
        %v3737 = vpop.f32.mrb[0].mxu0
        %3738 = vdwg.mxu0
        %v3740 = vlaneseq
        %v3741 = vshrl.u32 %v3740, 7
        %v3742 = vsub.s32 0, %v3741
        %v3743 = vrot.slane %v3619, %v3742
        %v3744 = vlaneseq
        %v3745 = vshrl.u32 %v3744, 7
        %v3746 = vsub.s32 1, %v3745
        %v3747 = vrot.slane %v3619, %v3746
        %v3750 = vmul.f32 %v3733, %v3743
        %v3751 = vmul.f32 %v3735, %v3747
        %v3753 = vlaneseq
        %v3754 = vshrl.u32 %v3753, 7
        %v3755 = vsub.s32 0, %v3754
        %v3756 = vrot.slane %v3621, %v3755
        %v3757 = vlaneseq
        %v3758 = vshrl.u32 %v3757, 7
        %v3759 = vsub.s32 1, %v3758
        %v3760 = vrot.slane %v3621, %v3759
        %v3763 = vadd.f32 %v3750, %v3756
        %v3764 = vadd.f32 %v3751, %v3760
        %v3765 = vmax.f32 %v3763, 0.0
        %v3766 = vmax.f32 %v3764, 0.0
        %v3767 = vpack.c.bf16 %v3765, %v3765
        %v3768 = vpack.c.bf16 %v3766, %v3766
        %v3771 = vcombine.low %v3767, %v3768
        %v3773 = vunpack.c.l.s4 1983009808
        %v3774 = vunpack.c.0.s8 %v3773
        %v3775 = vlaneseq
        %v3776 = vshrl.u32 %v3775, 7
        %v3777 = vsub.s32 %v3774, %v3776
        %v3778 = vrot.slane %v3771, %v3777
        %v3780 = vshrl.u32 %v3778, 16
        %v3782 = vrot.slane %v3780, 7
        %v3783 = vshll.u32 %v3778, 16
        %v3785 = vor.u32 %v3782, %v3783
        %3786 = vrot.lane.b32.xlu0 %v3785, 96
        %v3787 = vpop.permute.xlu0 %3786
        %v3788 = vrot.slane %v3787, 2
        %v3789 = vsel %vm1728, %v3787, %v3788
        %vm3791 = vcmask 1041408
        %vm3792 = vmand %vm3791, %vm3609
        %vm3793 = vcmask 519170
        %vm3794 = vmand %vm3793, %vm3612
        %vm3795 = vmor %vm3794, %vm3792
        %v3796 = vld [vmem:[#allocation9] sm:$0xf]
        %v3797 = vsel %vm3795, %v3789, %v3796
        %3798 = vst [vmem:[#allocation9] sm:$0xf] %v3797
        %v3799 = vunpack.c.l.b16 %v3768
        %v3800 = vpack.c.b16 %v3799, %v3799
        %v3801 = vrot.slane %v3800, 7
        %3802 = vrot.lane.b32.xlu0 %v3801, 32
        %v3803 = vpop.permute.xlu0 %3802
        %vm3805 = vcmask 254977
        %3806 = vst.msk [vmem:[#allocation10] sm:$0x2] %vm3805, %v3803
        %v3807 = vld [vmem:[%s14 + $0x10] sm:$0x1]
        %v3808 = vld [vmem:[%s14 + $0x11] sm:$0x1]
        %v3809 = vld [vmem:[#allocation9] sm:$0x5]
        %v3810 = vld [vmem:[%s11] sm:$0xf]
        %v3811 = vld [vmem:[%s11 + $0x4] sm:$0xf]
        %v3812 = vld [vmem:[%s11 + $0x8] sm:$0xf]
        %v3813 = vld [vmem:[%s11 + $0xc] sm:$0xf]
        %v3814 = vld [vmem:[%s11 + $0x10] sm:$0xf]
        %v3815 = vld [vmem:[%s11 + $0x14] sm:$0xf]
        %v3816 = vld [vmem:[%s11 + $0x18] sm:$0xf]
        %v3817 = vld [vmem:[%s11 + $0x1c] sm:$0xf]
        %v3818 = vld [vmem:[%s11 + $0x20] sm:$0xf]
        %v3819 = vld [vmem:[%s11 + $0x24] sm:$0xf]
        %v3820 = vld [vmem:[%s11 + $0x28] sm:$0xf]
        %v3821 = vld [vmem:[%s11 + $0x2c] sm:$0xf]
        %v3822 = vld [vmem:[%s11 + $0x30] sm:$0xf]
        %v3823 = vld [vmem:[%s11 + $0x34] sm:$0xf]
        %v3824 = vld [vmem:[%s11 + $0x38] sm:$0xf]
        %v3825 = vld [vmem:[%s11 + $0x3c] sm:$0xf]
        %v3826 = vld [vmem:[%s11 + $0x40] sm:$0xf]
        %v3827 = vld [vmem:[%s11 + $0x44] sm:$0xf]
        %v3828 = vld [vmem:[%s11 + $0x48] sm:$0xf]
        %v3829 = vld [vmem:[%s11 + $0x4c] sm:$0xf]
        %v3830 = vld [vmem:[%s11 + $0x50] sm:$0xf]
        %v3831 = vld [vmem:[%s11 + $0x54] sm:$0xf]
        %v3832 = vld [vmem:[%s11 + $0x58] sm:$0xf]
        %v3833 = vld [vmem:[%s11 + $0x5c] sm:$0xf]
        %v3834 = vld [vmem:[#allocation9] sm:$0xf]
        %s3835 = scalar_lea.vmem %s11, 96
        %v3836 = vld [vmem:[%s3835] sm:$0xf]
        %v3837 = vld [vmem:[%s3835 + $0x4] sm:$0xf]
        %v3838 = vld [vmem:[%s3835 + $0x8] sm:$0xf]
        %v3839 = vld [vmem:[%s3835 + $0xc] sm:$0xf]
        %v3840 = vld [vmem:[%s3835 + $0x10] sm:$0xf]
        %v3841 = vld [vmem:[%s3835 + $0x14] sm:$0xf]
        %v3842 = vld [vmem:[%s3835 + $0x18] sm:$0xf]
        %v3843 = vld [vmem:[%s3835 + $0x1c] sm:$0xf]
        %v3844 = vld [vmem:[%s3835 + $0x20] sm:$0xf]
        %v3845 = vld [vmem:[%s3835 + $0x24] sm:$0xf]
        %v3846 = vld [vmem:[%s3835 + $0x28] sm:$0xf]
        %v3847 = vld [vmem:[%s3835 + $0x2c] sm:$0xf]
        %v3848 = vld [vmem:[%s3835 + $0x30] sm:$0xf]
        %v3849 = vld [vmem:[%s3835 + $0x34] sm:$0xf]
        %v3850 = vld [vmem:[%s3835 + $0x38] sm:$0xf]
        %v3851 = vld [vmem:[%s3835 + $0x3c] sm:$0xf]
        %v3852 = vld [vmem:[%s3835 + $0x40] sm:$0xf]
        %v3853 = vld [vmem:[%s3835 + $0x44] sm:$0xf]
        %v3854 = vld [vmem:[%s3835 + $0x48] sm:$0xf]
        %v3855 = vld [vmem:[%s3835 + $0x4c] sm:$0xf]
        %v3856 = vld [vmem:[%s3835 + $0x50] sm:$0xf]
        %v3857 = vld [vmem:[%s3835 + $0x54] sm:$0xf]
        %v3858 = vld [vmem:[%s3835 + $0x58] sm:$0xf]
        %v3859 = vld [vmem:[%s3835 + $0x5c] sm:$0xf]
        %v3862 = vunpack.c.l.s4 1983009808
        %v3863 = vunpack.c.0.s8 %v3862
        %v3864 = vlaneseq
        %v3865 = vshrl.u32 %v3864, 7
        %v3866 = vsub.s32 %v3863, %v3865
        %v3867 = vrot.slane %v3834, %v3866
        %v3868 = vcombine.high %v3867, %v3867
        %v3870 = vshrl.u32 %v3867, 16
        %v3872 = vshll.u32 %v3867, 16
        %v3874 = vrot.slane %v3872, 1
        %v3875 = vor.u32 %v3870, %v3874
        %v3877 = vshrl.u32 %v3868, 16
        %v3879 = vshll.u32 %v3868, 16
        %v3881 = vrot.slane %v3879, 1
        %v3882 = vor.u32 %v3877, %v3881
        %v3908 = vunpack.c.l.b16 %v3836
        %v3909 = vunpack.c.l.b16 %v3837
        %v3910 = vunpack.c.l.b16 %v3838
        %v3911 = vunpack.c.l.b16 %v3839
        %v3912 = vunpack.c.l.b16 %v3840
        %v3913 = vunpack.c.l.b16 %v3841
        %v3914 = vunpack.c.l.b16 %v3842
        %v3915 = vunpack.c.l.b16 %v3843
        %v3916 = vunpack.c.l.b16 %v3844
        %v3917 = vunpack.c.l.b16 %v3845
        %v3918 = vunpack.c.l.b16 %v3846
        %v3919 = vunpack.c.l.b16 %v3847
        %v3920 = vunpack.c.l.b16 %v3848
        %v3921 = vunpack.c.l.b16 %v3849
        %v3922 = vunpack.c.l.b16 %v3850
        %v3923 = vunpack.c.l.b16 %v3851
        %v3924 = vunpack.c.l.b16 %v3852
        %v3925 = vunpack.c.l.b16 %v3853
        %v3926 = vunpack.c.l.b16 %v3854
        %v3927 = vunpack.c.l.b16 %v3855
        %v3928 = vunpack.c.l.b16 %v3856
        %v3929 = vunpack.c.l.b16 %v3857
        %v3930 = vunpack.c.l.b16 %v3858
        %v3931 = vunpack.c.l.b16 %v3859
        %v3932 = vpack.c.b16 %v3909, %v3908
        %v3933 = vpack.c.b16 %v3911, %v3910
        %v3934 = vpack.c.b16 %v3913, %v3912
        %v3935 = vpack.c.b16 %v3915, %v3914
        %v3936 = vpack.c.b16 %v3917, %v3916
        %v3937 = vpack.c.b16 %v3919, %v3918
        %v3938 = vpack.c.b16 %v3921, %v3920
        %v3939 = vpack.c.b16 %v3923, %v3922
        %v3940 = vpack.c.b16 %v3925, %v3924
        %v3941 = vpack.c.b16 %v3927, %v3926
        %v3942 = vpack.c.b16 %v3929, %v3928
        %v3943 = vpack.c.b16 %v3931, %v3930
        %v3957 = vsel %vm2748, %v3882, 0
        %3959 = vmatprep.subr.bf16.mxu0 0
        %3960 = vmatpush1.bf16.msra.mxu0 %v3932
        %3961 = vmatprep.subr.bf16.mxu0 0
        %3962 = vmatpush1.bf16.msra.mxu0 %v3933
        %3963 = vmatprep.subr.bf16.mxu0 0
        %3964 = vmatpush1.bf16.msra.mxu0 %v3934
        %3965 = vmatprep.subr.bf16.mxu0 0
        %3966 = vmatpush1.bf16.msra.mxu0 %v3935
        %3967 = vmatprep.subr.bf16.mxu0 0
        %3968 = vmatpush1.bf16.msra.mxu0 %v3936
        %3969 = vmatprep.subr.bf16.mxu0 0
        %3970 = vmatpush1.bf16.msra.mxu0 %v3937
        %3971 = vmatprep.subr.bf16.mxu0 0
        %3972 = vmatpush1.bf16.msra.mxu0 %v3938
        %3973 = vmatprep.subr.bf16.mxu0 0
        %3974 = vmatpush1.bf16.msra.mxu0 %v3939
        %3975 = vmatprep.subr.bf16.mxu0 0
        %3976 = vmatpush1.bf16.msra.mxu0 %v3940
        %3977 = vmatprep.subr.bf16.mxu0 0
        %3978 = vmatpush1.bf16.msra.mxu0 %v3941
        %3979 = vmatprep.subr.bf16.mxu0 0
        %3980 = vmatpush1.bf16.msra.mxu0 %v3942
        %3981 = vmatprep.subr.bf16.mxu0 0
        %3982 = vmatpush1.bf16.msra.mxu0 %v3943
        %3983 = vmatprep.subr.bf16.mxu0 0
        %3984 = vmatpush1.bf16.msra.mxu0 0
        %3985 = vmatprep.subr.bf16.mxu0 0
        %3986 = vmatpush1.bf16.msra.mxu0 0
        %3987 = vmatprep.subr.bf16.mxu0 0
        %3988 = vmatpush1.bf16.msra.mxu0 0
        %3989 = vmatprep.subr.bf16.mxu0 0
        %3990 = vmatpush1.bf16.msra.mxu0 0
        %3991 = vmatprep.mubr.bf16.mxu0 %v3957
        %3992 = vmatmul.mubr.bf16.gmra.mrb[0].mxu0 %v3875
        %v3993 = vpop.f32.mrb[0].mxu0
        %v3994 = vadd.f32 0.0, %v3993
        %v3995 = vpop.f32.mrb[0].mxu0
        %v3996 = vpop.f32.mrb[0].mxu0
        %v3997 = vpop.f32.mrb[0].mxu0
        %3998 = vdwg.mxu0
        %v4001 = vunpack.c.l.s4 1983009808
        %v4002 = vunpack.c.0.s8 %v4001
        %v4003 = vlaneseq
        %v4004 = vshrl.u32 %v4003, 7
        %v4005 = vsub.s32 %v4002, %v4004
        %v4006 = vrot.slane %v3809, %v4005
        %v4007 = vcombine.high %v4006, %v4006
        %v4033 = vunpack.c.l.b16 %v3810
        %v4034 = vunpack.c.l.b16 %v3811
        %v4035 = vunpack.c.l.b16 %v3812
        %v4036 = vunpack.c.l.b16 %v3813
        %v4037 = vunpack.c.l.b16 %v3814
        %v4038 = vunpack.c.l.b16 %v3815
        %v4039 = vunpack.c.l.b16 %v3816
        %v4040 = vunpack.c.l.b16 %v3817
        %v4041 = vunpack.c.l.b16 %v3818
        %v4042 = vunpack.c.l.b16 %v3819
        %v4043 = vunpack.c.l.b16 %v3820
        %v4044 = vunpack.c.l.b16 %v3821
        %v4045 = vunpack.c.l.b16 %v3822
        %v4046 = vunpack.c.l.b16 %v3823
        %v4047 = vunpack.c.l.b16 %v3824
        %v4048 = vunpack.c.l.b16 %v3825
        %v4049 = vunpack.c.l.b16 %v3826
        %v4050 = vunpack.c.l.b16 %v3827
        %v4051 = vunpack.c.l.b16 %v3828
        %v4052 = vunpack.c.l.b16 %v3829
        %v4053 = vunpack.c.l.b16 %v3830
        %v4054 = vunpack.c.l.b16 %v3831
        %v4055 = vunpack.c.l.b16 %v3832
        %v4056 = vunpack.c.l.b16 %v3833
        %v4057 = vpack.c.b16 %v4034, %v4033
        %v4058 = vpack.c.b16 %v4036, %v4035
        %v4059 = vpack.c.b16 %v4038, %v4037
        %v4060 = vpack.c.b16 %v4040, %v4039
        %v4061 = vpack.c.b16 %v4042, %v4041
        %v4062 = vpack.c.b16 %v4044, %v4043
        %v4063 = vpack.c.b16 %v4046, %v4045
        %v4064 = vpack.c.b16 %v4048, %v4047
        %v4065 = vpack.c.b16 %v4050, %v4049
        %v4066 = vpack.c.b16 %v4052, %v4051
        %v4067 = vpack.c.b16 %v4054, %v4053
        %v4068 = vpack.c.b16 %v4056, %v4055
        %v4082 = vsel %vm2748, %v4007, 0
        %4084 = vmatprep.subr.bf16.mxu0 0
        %4085 = vmatpush1.bf16.msra.mxu0 %v4057
        %4086 = vmatprep.subr.bf16.mxu0 0
        %4087 = vmatpush1.bf16.msra.mxu0 %v4058
        %4088 = vmatprep.subr.bf16.mxu0 0
        %4089 = vmatpush1.bf16.msra.mxu0 %v4059
        %4090 = vmatprep.subr.bf16.mxu0 0
        %4091 = vmatpush1.bf16.msra.mxu0 %v4060
        %4092 = vmatprep.subr.bf16.mxu0 0
        %4093 = vmatpush1.bf16.msra.mxu0 %v4061
        %4094 = vmatprep.subr.bf16.mxu0 0
        %4095 = vmatpush1.bf16.msra.mxu0 %v4062
        %4096 = vmatprep.subr.bf16.mxu0 0
        %4097 = vmatpush1.bf16.msra.mxu0 %v4063
        %4098 = vmatprep.subr.bf16.mxu0 0
        %4099 = vmatpush1.bf16.msra.mxu0 %v4064
        %4100 = vmatprep.subr.bf16.mxu0 0
        %4101 = vmatpush1.bf16.msra.mxu0 %v4065
        %4102 = vmatprep.subr.bf16.mxu0 0
        %4103 = vmatpush1.bf16.msra.mxu0 %v4066
        %4104 = vmatprep.subr.bf16.mxu0 0
        %4105 = vmatpush1.bf16.msra.mxu0 %v4067
        %4106 = vmatprep.subr.bf16.mxu0 0
        %4107 = vmatpush1.bf16.msra.mxu0 %v4068
        %4108 = vmatprep.subr.bf16.mxu0 0
        %4109 = vmatpush1.bf16.msra.mxu0 0
        %4110 = vmatprep.subr.bf16.mxu0 0
        %4111 = vmatpush1.bf16.msra.mxu0 0
        %4112 = vmatprep.subr.bf16.mxu0 0
        %4113 = vmatpush1.bf16.msra.mxu0 0
        %4114 = vmatprep.subr.bf16.mxu0 0
        %4115 = vmatpush1.bf16.msra.mxu0 0
        %4116 = vmatprep.mubr.bf16.mxu0 %v4082
        %4117 = vmatmul.mubr.bf16.gmra.mrb[0].mxu0 %v4006
        %v4118 = vpop.f32.mrb[0].mxu0
        %v4119 = vadd.f32 %v3994, %v4118
        %v4120 = vpop.f32.mrb[0].mxu0
        %v4121 = vpop.f32.mrb[0].mxu0
        %v4122 = vpop.f32.mrb[0].mxu0
        %4123 = vdwg.mxu0
        %v4124 = vld [vmem:[#allocation9] sm:$0xa]
        %s4125 = scalar_lea.vmem %s11, 192
        %v4126 = vld [vmem:[%s4125] sm:$0xf]
        %v4127 = vld [vmem:[%s4125 + $0x4] sm:$0xf]
        %v4128 = vld [vmem:[%s4125 + $0x8] sm:$0xf]
        %v4129 = vld [vmem:[%s4125 + $0xc] sm:$0xf]
        %v4130 = vld [vmem:[%s4125 + $0x10] sm:$0xf]
        %v4131 = vld [vmem:[%s4125 + $0x14] sm:$0xf]
        %v4132 = vld [vmem:[%s4125 + $0x18] sm:$0xf]
        %v4133 = vld [vmem:[%s4125 + $0x1c] sm:$0xf]
        %v4134 = vld [vmem:[%s4125 + $0x20] sm:$0xf]
        %v4135 = vld [vmem:[%s4125 + $0x24] sm:$0xf]
        %v4136 = vld [vmem:[%s4125 + $0x28] sm:$0xf]
        %v4137 = vld [vmem:[%s4125 + $0x2c] sm:$0xf]
        %v4138 = vld [vmem:[%s4125 + $0x30] sm:$0xf]
        %v4139 = vld [vmem:[%s4125 + $0x34] sm:$0xf]
        %v4140 = vld [vmem:[%s4125 + $0x38] sm:$0xf]
        %v4141 = vld [vmem:[%s4125 + $0x3c] sm:$0xf]
        %v4142 = vld [vmem:[%s4125 + $0x40] sm:$0xf]
        %v4143 = vld [vmem:[%s4125 + $0x44] sm:$0xf]
        %v4144 = vld [vmem:[%s4125 + $0x48] sm:$0xf]
        %v4145 = vld [vmem:[%s4125 + $0x4c] sm:$0xf]
        %v4146 = vld [vmem:[%s4125 + $0x50] sm:$0xf]
        %v4147 = vld [vmem:[%s4125 + $0x54] sm:$0xf]
        %v4148 = vld [vmem:[%s4125 + $0x58] sm:$0xf]
        %v4149 = vld [vmem:[%s4125 + $0x5c] sm:$0xf]
        %v4152 = vunpack.c.l.s4 1983009808
        %v4153 = vunpack.c.0.s8 %v4152
        %v4154 = vlaneseq
        %v4155 = vshrl.u32 %v4154, 7
        %v4156 = vsub.s32 %v4153, %v4155
        %v4157 = vrot.slane %v4124, %v4156
        %v4158 = vcombine.high %v4157, %v4157
        %v4159 = vrot.slane %v4157, 1
        %v4160 = vrot.slane %v4158, 1
        %v4186 = vunpack.c.l.b16 %v4126
        %v4187 = vunpack.c.l.b16 %v4127
        %v4188 = vunpack.c.l.b16 %v4128
        %v4189 = vunpack.c.l.b16 %v4129
        %v4190 = vunpack.c.l.b16 %v4130
        %v4191 = vunpack.c.l.b16 %v4131
        %v4192 = vunpack.c.l.b16 %v4132
        %v4193 = vunpack.c.l.b16 %v4133
        %v4194 = vunpack.c.l.b16 %v4134
        %v4195 = vunpack.c.l.b16 %v4135
        %v4196 = vunpack.c.l.b16 %v4136
        %v4197 = vunpack.c.l.b16 %v4137
        %v4198 = vunpack.c.l.b16 %v4138
        %v4199 = vunpack.c.l.b16 %v4139
        %v4200 = vunpack.c.l.b16 %v4140
        %v4201 = vunpack.c.l.b16 %v4141
        %v4202 = vunpack.c.l.b16 %v4142
        %v4203 = vunpack.c.l.b16 %v4143
        %v4204 = vunpack.c.l.b16 %v4144
        %v4205 = vunpack.c.l.b16 %v4145
        %v4206 = vunpack.c.l.b16 %v4146
        %v4207 = vunpack.c.l.b16 %v4147
        %v4208 = vunpack.c.l.b16 %v4148
        %v4209 = vunpack.c.l.b16 %v4149
        %v4210 = vpack.c.b16 %v4187, %v4186
        %v4211 = vpack.c.b16 %v4189, %v4188
        %v4212 = vpack.c.b16 %v4191, %v4190
        %v4213 = vpack.c.b16 %v4193, %v4192
        %v4214 = vpack.c.b16 %v4195, %v4194
        %v4215 = vpack.c.b16 %v4197, %v4196
        %v4216 = vpack.c.b16 %v4199, %v4198
        %v4217 = vpack.c.b16 %v4201, %v4200
        %v4218 = vpack.c.b16 %v4203, %v4202
        %v4219 = vpack.c.b16 %v4205, %v4204
        %v4220 = vpack.c.b16 %v4207, %v4206
        %v4221 = vpack.c.b16 %v4209, %v4208
        %v4235 = vsel %vm2748, %v4160, 0
        %4237 = vmatprep.subr.bf16.mxu0 0
        %4238 = vmatpush1.bf16.msra.mxu0 %v4210
        %4239 = vmatprep.subr.bf16.mxu0 0
        %4240 = vmatpush1.bf16.msra.mxu0 %v4211
        %4241 = vmatprep.subr.bf16.mxu0 0
        %4242 = vmatpush1.bf16.msra.mxu0 %v4212
        %4243 = vmatprep.subr.bf16.mxu0 0
        %4244 = vmatpush1.bf16.msra.mxu0 %v4213
        %4245 = vmatprep.subr.bf16.mxu0 0
        %4246 = vmatpush1.bf16.msra.mxu0 %v4214
        %4247 = vmatprep.subr.bf16.mxu0 0
        %4248 = vmatpush1.bf16.msra.mxu0 %v4215
        %4249 = vmatprep.subr.bf16.mxu0 0
        %4250 = vmatpush1.bf16.msra.mxu0 %v4216
        %4251 = vmatprep.subr.bf16.mxu0 0
        %4252 = vmatpush1.bf16.msra.mxu0 %v4217
        %4253 = vmatprep.subr.bf16.mxu0 0
        %4254 = vmatpush1.bf16.msra.mxu0 %v4218
        %4255 = vmatprep.subr.bf16.mxu0 0
        %4256 = vmatpush1.bf16.msra.mxu0 %v4219
        %4257 = vmatprep.subr.bf16.mxu0 0
        %4258 = vmatpush1.bf16.msra.mxu0 %v4220
        %4259 = vmatprep.subr.bf16.mxu0 0
        %4260 = vmatpush1.bf16.msra.mxu0 %v4221
        %4261 = vmatprep.subr.bf16.mxu0 0
        %4262 = vmatpush1.bf16.msra.mxu0 0
        %4263 = vmatprep.subr.bf16.mxu0 0
        %4264 = vmatpush1.bf16.msra.mxu0 0
        %4265 = vmatprep.subr.bf16.mxu0 0
        %4266 = vmatpush1.bf16.msra.mxu0 0
        %4267 = vmatprep.subr.bf16.mxu0 0
        %4268 = vmatpush1.bf16.msra.mxu0 0
        %4269 = vmatprep.mubr.bf16.mxu0 %v4235
        %4270 = vmatmul.mubr.bf16.gmra.mrb[0].mxu0 %v4159
        %v4271 = vpop.f32.mrb[0].mxu0
        %v4272 = vadd.f32 0.0, %v4271
        %v4273 = vpop.f32.mrb[0].mxu0
        %v4274 = vpop.f32.mrb[0].mxu0
        %v4275 = vpop.f32.mrb[0].mxu0
        %4276 = vdwg.mxu0
        %v4277 = vadd.f32 %v4119, %v4272
        %v4278 = vlaneseq
        %v4279 = vshrl.u32 %v4278, 7
        %v4280 = vsub.s32 0, %v4279
        %v4281 = vrot.slane %v3807, %v4280
        %v4282 = vmul.f32 %v4277, %v4281
        %v4283 = vlaneseq
        %v4284 = vshrl.u32 %v4283, 7
        %v4285 = vsub.s32 0, %v4284
        %v4286 = vrot.slane %v3808, %v4285
        %v4287 = vadd.f32 %v4282, %v4286
        %v4288 = vmax.f32 %v4287, 0.0
        %v4289 = vld [vmem:[%s14 + $0x10] sm:$0x1]
        %v4290 = vld [vmem:[%s14 + $0x11] sm:$0x1]
        %v4291 = vld [vmem:[#allocation10] sm:$0x1]
        %v4292 = vld [vmem:[%s12] sm:$0xf]
        %v4293 = vld [vmem:[%s12 + $0x4] sm:$0xf]
        %v4294 = vld [vmem:[%s12 + $0x8] sm:$0xf]
        %v4295 = vld [vmem:[%s12 + $0xc] sm:$0xf]
        %v4296 = vld [vmem:[#allocation10] sm:$0x3]
        %s4297 = scalar_lea.vmem %s12, 16
        %v4298 = vld [vmem:[%s4297] sm:$0xf]
        %v4299 = vld [vmem:[%s4297 + $0x4] sm:$0xf]
        %v4300 = vld [vmem:[%s4297 + $0x8] sm:$0xf]
        %v4301 = vld [vmem:[%s4297 + $0xc] sm:$0xf]
        %v4303 = vunpack.c.l.b16 %v4296
        %v4304 = vpack.c.b16 %v4303, %v4303
        %v4306 = vshrl.u32 %v4304, 16
        %v4308 = vshll.u32 %v4304, 16
        %v4310 = vrot.slane %v4308, 1
        %v4311 = vor.u32 %v4306, %v4310
        %v4316 = vunpack.c.l.b16 %v4298
        %v4317 = vunpack.c.l.b16 %v4299
        %v4318 = vunpack.c.l.b16 %v4300
        %v4319 = vunpack.c.l.b16 %v4301
        %v4320 = vpack.c.b16 %v4317, %v4316
        %v4321 = vpack.c.b16 %v4319, %v4318
        %v4325 = vsel %vm1199, %v4311, 0
        %4327 = vmatprep.subr.bf16.mxu0 0
        %4328 = vmatpush1.bf16.msra.mxu0 %v4320
        %4329 = vmatprep.subr.bf16.mxu0 0
        %4330 = vmatpush1.bf16.msra.mxu0 %v4321
        %4331 = vmatprep.subr.bf16.mxu0 0
        %4332 = vmatpush1.bf16.msra.mxu0 0
        %4333 = vmatprep.subr.bf16.mxu0 0
        %4334 = vmatpush1.bf16.msra.mxu0 0
        %4335 = vmatprep.subr.bf16.mxu0 0
        %4336 = vmatpush1.bf16.msra.mxu0 0
        %4337 = vmatprep.subr.bf16.mxu0 0
        %4338 = vmatpush1.bf16.msra.mxu0 0
        %4339 = vmatprep.subr.bf16.mxu0 0
        %4340 = vmatpush1.bf16.msra.mxu0 0
        %4341 = vmatprep.subr.bf16.mxu0 0
        %4342 = vmatpush1.bf16.msra.mxu0 0
        %4343 = vmatprep.subr.bf16.mxu0 0
        %4344 = vmatpush1.bf16.msra.mxu0 0
        %4345 = vmatprep.subr.bf16.mxu0 0
        %4346 = vmatpush1.bf16.msra.mxu0 0
        %4347 = vmatprep.subr.bf16.mxu0 0
        %4348 = vmatpush1.bf16.msra.mxu0 0
        %4349 = vmatprep.subr.bf16.mxu0 0
        %4350 = vmatpush1.bf16.msra.mxu0 0
        %4351 = vmatprep.subr.bf16.mxu0 0
        %4352 = vmatpush1.bf16.msra.mxu0 0
        %4353 = vmatprep.subr.bf16.mxu0 0
        %4354 = vmatpush1.bf16.msra.mxu0 0
        %4355 = vmatprep.subr.bf16.mxu0 0
        %4356 = vmatpush1.bf16.msra.mxu0 0
        %4357 = vmatprep.subr.bf16.mxu0 0
        %4358 = vmatpush1.bf16.msra.mxu0 0
        %4359 = vmatprep.mubr.bf16.mxu0 0
        %4360 = vmatmul.mubr.bf16.gmra.mrb[0].mxu0 %v4325
        %v4361 = vpop.f32.mrb[0].mxu0
        %v4362 = vadd.f32 0.0, %v4361
        %v4363 = vpop.f32.mrb[0].mxu0
        %v4364 = vpop.f32.mrb[0].mxu0
        %v4365 = vpop.f32.mrb[0].mxu0
        %4366 = vdwg.mxu0
        %v4371 = vunpack.c.l.b16 %v4292
        %v4372 = vunpack.c.l.b16 %v4293
        %v4373 = vunpack.c.l.b16 %v4294
        %v4374 = vunpack.c.l.b16 %v4295
        %v4375 = vpack.c.b16 %v4372, %v4371
        %v4376 = vpack.c.b16 %v4374, %v4373
        %v4380 = vsel %vm1199, %v4291, 0
        %4382 = vmatprep.subr.bf16.mxu0 0
        %4383 = vmatpush1.bf16.msra.mxu0 %v4375
        %4384 = vmatprep.subr.bf16.mxu0 0
        %4385 = vmatpush1.bf16.msra.mxu0 %v4376
        %4386 = vmatprep.subr.bf16.mxu0 0
        %4387 = vmatpush1.bf16.msra.mxu0 0
        %4388 = vmatprep.subr.bf16.mxu0 0
        %4389 = vmatpush1.bf16.msra.mxu0 0
        %4390 = vmatprep.subr.bf16.mxu0 0
        %4391 = vmatpush1.bf16.msra.mxu0 0
        %4392 = vmatprep.subr.bf16.mxu0 0
        %4393 = vmatpush1.bf16.msra.mxu0 0
        %4394 = vmatprep.subr.bf16.mxu0 0
        %4395 = vmatpush1.bf16.msra.mxu0 0
        %4396 = vmatprep.subr.bf16.mxu0 0
        %4397 = vmatpush1.bf16.msra.mxu0 0
        %4398 = vmatprep.subr.bf16.mxu0 0
        %4399 = vmatpush1.bf16.msra.mxu0 0
        %4400 = vmatprep.subr.bf16.mxu0 0
        %4401 = vmatpush1.bf16.msra.mxu0 0
        %4402 = vmatprep.subr.bf16.mxu0 0
        %4403 = vmatpush1.bf16.msra.mxu0 0
        %4404 = vmatprep.subr.bf16.mxu0 0
        %4405 = vmatpush1.bf16.msra.mxu0 0
        %4406 = vmatprep.subr.bf16.mxu0 0
        %4407 = vmatpush1.bf16.msra.mxu0 0
        %4408 = vmatprep.subr.bf16.mxu0 0
        %4409 = vmatpush1.bf16.msra.mxu0 0
        %4410 = vmatprep.subr.bf16.mxu0 0
        %4411 = vmatpush1.bf16.msra.mxu0 0
        %4412 = vmatprep.subr.bf16.mxu0 0
        %4413 = vmatpush1.bf16.msra.mxu0 0
        %4414 = vmatprep.mubr.bf16.mxu0 0
        %4415 = vmatmul.mubr.bf16.gmra.mrb[0].mxu0 %v4380
        %v4416 = vpop.f32.mrb[0].mxu0
        %v4417 = vadd.f32 %v4362, %v4416
        %v4418 = vpop.f32.mrb[0].mxu0
        %v4419 = vpop.f32.mrb[0].mxu0
        %v4420 = vpop.f32.mrb[0].mxu0
        %4421 = vdwg.mxu0
        %v4422 = vld [vmem:[#allocation10] sm:$0x2]
        %s4423 = scalar_lea.vmem %s12, 32
        %v4424 = vld [vmem:[%s4423] sm:$0xf]
        %v4425 = vld [vmem:[%s4423 + $0x4] sm:$0xf]
        %v4426 = vld [vmem:[%s4423 + $0x8] sm:$0xf]
        %v4427 = vld [vmem:[%s4423 + $0xc] sm:$0xf]
        %v4429 = vunpack.c.l.b16 %v4422
        %v4430 = vpack.c.b16 %v4429, %v4429
        %v4431 = vrot.slane %v4430, 1
        %v4436 = vunpack.c.l.b16 %v4424
        %v4437 = vunpack.c.l.b16 %v4425
        %v4438 = vunpack.c.l.b16 %v4426
        %v4439 = vunpack.c.l.b16 %v4427
        %v4440 = vpack.c.b16 %v4437, %v4436
        %v4441 = vpack.c.b16 %v4439, %v4438
        %v4445 = vsel %vm1199, %v4431, 0
        %4447 = vmatprep.subr.bf16.mxu0 0
        %4448 = vmatpush1.bf16.msra.mxu0 %v4440
        %4449 = vmatprep.subr.bf16.mxu0 0
        %4450 = vmatpush1.bf16.msra.mxu0 %v4441
        %4451 = vmatprep.subr.bf16.mxu0 0
        %4452 = vmatpush1.bf16.msra.mxu0 0
        %4453 = vmatprep.subr.bf16.mxu0 0
        %4454 = vmatpush1.bf16.msra.mxu0 0
        %4455 = vmatprep.subr.bf16.mxu0 0
        %4456 = vmatpush1.bf16.msra.mxu0 0
        %4457 = vmatprep.subr.bf16.mxu0 0
        %4458 = vmatpush1.bf16.msra.mxu0 0
        %4459 = vmatprep.subr.bf16.mxu0 0
        %4460 = vmatpush1.bf16.msra.mxu0 0
        %4461 = vmatprep.subr.bf16.mxu0 0
        %4462 = vmatpush1.bf16.msra.mxu0 0
        %4463 = vmatprep.subr.bf16.mxu0 0
        %4464 = vmatpush1.bf16.msra.mxu0 0
        %4465 = vmatprep.subr.bf16.mxu0 0
        %4466 = vmatpush1.bf16.msra.mxu0 0
        %4467 = vmatprep.subr.bf16.mxu0 0
        %4468 = vmatpush1.bf16.msra.mxu0 0
        %4469 = vmatprep.subr.bf16.mxu0 0
        %4470 = vmatpush1.bf16.msra.mxu0 0
        %4471 = vmatprep.subr.bf16.mxu0 0
        %4472 = vmatpush1.bf16.msra.mxu0 0
        %4473 = vmatprep.subr.bf16.mxu0 0
        %4474 = vmatpush1.bf16.msra.mxu0 0
        %4475 = vmatprep.subr.bf16.mxu0 0
        %4476 = vmatpush1.bf16.msra.mxu0 0
        %4477 = vmatprep.subr.bf16.mxu0 0
        %4478 = vmatpush1.bf16.msra.mxu0 0
        %4479 = vmatprep.mubr.bf16.mxu0 0
        %4480 = vmatmul.mubr.bf16.gmra.mrb[0].mxu0 %v4445
        %v4481 = vpop.f32.mrb[0].mxu0
        %v4482 = vadd.f32 0.0, %v4481
        %v4483 = vpop.f32.mrb[0].mxu0
        %v4484 = vpop.f32.mrb[0].mxu0
        %v4485 = vpop.f32.mrb[0].mxu0
        %4486 = vdwg.mxu0
        %v4487 = vadd.f32 %v4417, %v4482
        %v4488 = vld [vmem:[#allocation10] sm:$0x6]
        %s4489 = scalar_lea.vmem %s12, 48
        %v4490 = vld [vmem:[%s4489] sm:$0xf]
        %v4491 = vld [vmem:[%s4489 + $0x4] sm:$0xf]
        %v4492 = vld [vmem:[%s4489 + $0x8] sm:$0xf]
        %v4493 = vld [vmem:[%s4489 + $0xc] sm:$0xf]
        %v4495 = vunpack.c.l.b16 %v4488
        %v4496 = vpack.c.b16 %v4495, %v4495
        %v4498 = vshrl.u32 %v4496, 16
        %v4500 = vrot.slane %v4498, 1
        %v4501 = vshll.u32 %v4496, 16
        %v4503 = vrot.slane %v4501, 2
        %v4504 = vor.u32 %v4500, %v4503
        %v4509 = vunpack.c.l.b16 %v4490
        %v4510 = vunpack.c.l.b16 %v4491
        %v4511 = vunpack.c.l.b16 %v4492
        %v4512 = vunpack.c.l.b16 %v4493
        %v4513 = vpack.c.b16 %v4510, %v4509
        %v4514 = vpack.c.b16 %v4512, %v4511
        %v4518 = vsel %vm1199, %v4504, 0
        %4520 = vmatprep.subr.bf16.mxu0 0
        %4521 = vmatpush1.bf16.msra.mxu0 %v4513
        %4522 = vmatprep.subr.bf16.mxu0 0
        %4523 = vmatpush1.bf16.msra.mxu0 %v4514
        %4524 = vmatprep.subr.bf16.mxu0 0
        %4525 = vmatpush1.bf16.msra.mxu0 0
        %4526 = vmatprep.subr.bf16.mxu0 0
        %4527 = vmatpush1.bf16.msra.mxu0 0
        %4528 = vmatprep.subr.bf16.mxu0 0
        %4529 = vmatpush1.bf16.msra.mxu0 0
        %4530 = vmatprep.subr.bf16.mxu0 0
        %4531 = vmatpush1.bf16.msra.mxu0 0
        %4532 = vmatprep.subr.bf16.mxu0 0
        %4533 = vmatpush1.bf16.msra.mxu0 0
        %4534 = vmatprep.subr.bf16.mxu0 0
        %4535 = vmatpush1.bf16.msra.mxu0 0
        %4536 = vmatprep.subr.bf16.mxu0 0
        %4537 = vmatpush1.bf16.msra.mxu0 0
        %4538 = vmatprep.subr.bf16.mxu0 0
        %4539 = vmatpush1.bf16.msra.mxu0 0
        %4540 = vmatprep.subr.bf16.mxu0 0
        %4541 = vmatpush1.bf16.msra.mxu0 0
        %4542 = vmatprep.subr.bf16.mxu0 0
        %4543 = vmatpush1.bf16.msra.mxu0 0
        %4544 = vmatprep.subr.bf16.mxu0 0
        %4545 = vmatpush1.bf16.msra.mxu0 0
        %4546 = vmatprep.subr.bf16.mxu0 0
        %4547 = vmatpush1.bf16.msra.mxu0 0
        %4548 = vmatprep.subr.bf16.mxu0 0
        %4549 = vmatpush1.bf16.msra.mxu0 0
        %4550 = vmatprep.subr.bf16.mxu0 0
        %4551 = vmatpush1.bf16.msra.mxu0 0
        %4552 = vmatprep.mubr.bf16.mxu0 0
        %4553 = vmatmul.mubr.bf16.gmra.mrb[0].mxu0 %v4518
        %v4554 = vpop.f32.mrb[0].mxu0
        %v4555 = vadd.f32 0.0, %v4554
        %v4556 = vpop.f32.mrb[0].mxu0
        %v4557 = vpop.f32.mrb[0].mxu0
        %v4558 = vpop.f32.mrb[0].mxu0
        %4559 = vdwg.mxu0
        %v4560 = vadd.f32 %v4487, %v4555
        %v4561 = vld [vmem:[#allocation10] sm:$0x4]
        %s4562 = scalar_lea.vmem %s12, 64
        %v4563 = vld [vmem:[%s4562] sm:$0xf]
        %v4564 = vld [vmem:[%s4562 + $0x4] sm:$0xf]
        %v4565 = vld [vmem:[%s4562 + $0x8] sm:$0xf]
        %v4566 = vld [vmem:[%s4562 + $0xc] sm:$0xf]
        %v4568 = vunpack.c.l.b16 %v4561
        %v4569 = vpack.c.b16 %v4568, %v4568
        %v4570 = vrot.slane %v4569, 2
        %v4575 = vunpack.c.l.b16 %v4563
        %v4576 = vunpack.c.l.b16 %v4564
        %v4577 = vunpack.c.l.b16 %v4565
        %v4578 = vunpack.c.l.b16 %v4566
        %v4579 = vpack.c.b16 %v4576, %v4575
        %v4580 = vpack.c.b16 %v4578, %v4577
        %v4584 = vsel %vm1199, %v4570, 0
        %4586 = vmatprep.subr.bf16.mxu0 0
        %4587 = vmatpush1.bf16.msra.mxu0 %v4579
        %4588 = vmatprep.subr.bf16.mxu0 0
        %4589 = vmatpush1.bf16.msra.mxu0 %v4580
        %4590 = vmatprep.subr.bf16.mxu0 0
        %4591 = vmatpush1.bf16.msra.mxu0 0
        %4592 = vmatprep.subr.bf16.mxu0 0
        %4593 = vmatpush1.bf16.msra.mxu0 0
        %4594 = vmatprep.subr.bf16.mxu0 0
        %4595 = vmatpush1.bf16.msra.mxu0 0
        %4596 = vmatprep.subr.bf16.mxu0 0
        %4597 = vmatpush1.bf16.msra.mxu0 0
        %4598 = vmatprep.subr.bf16.mxu0 0
        %4599 = vmatpush1.bf16.msra.mxu0 0
        %4600 = vmatprep.subr.bf16.mxu0 0
        %4601 = vmatpush1.bf16.msra.mxu0 0
        %4602 = vmatprep.subr.bf16.mxu0 0
        %4603 = vmatpush1.bf16.msra.mxu0 0
        %4604 = vmatprep.subr.bf16.mxu0 0
        %4605 = vmatpush1.bf16.msra.mxu0 0
        %4606 = vmatprep.subr.bf16.mxu0 0
        %4607 = vmatpush1.bf16.msra.mxu0 0
        %4608 = vmatprep.subr.bf16.mxu0 0
        %4609 = vmatpush1.bf16.msra.mxu0 0
        %4610 = vmatprep.subr.bf16.mxu0 0
        %4611 = vmatpush1.bf16.msra.mxu0 0
        %4612 = vmatprep.subr.bf16.mxu0 0
        %4613 = vmatpush1.bf16.msra.mxu0 0
        %4614 = vmatprep.subr.bf16.mxu0 0
        %4615 = vmatpush1.bf16.msra.mxu0 0
        %4616 = vmatprep.subr.bf16.mxu0 0
        %4617 = vmatpush1.bf16.msra.mxu0 0
        %4618 = vmatprep.mubr.bf16.mxu0 0
        %4619 = vmatmul.mubr.bf16.gmra.mrb[0].mxu0 %v4584
        %v4620 = vpop.f32.mrb[0].mxu0
        %v4621 = vadd.f32 0.0, %v4620
        %v4622 = vpop.f32.mrb[0].mxu0
        %v4623 = vpop.f32.mrb[0].mxu0
        %v4624 = vpop.f32.mrb[0].mxu0
        %4625 = vdwg.mxu0
        %v4626 = vadd.f32 %v4560, %v4621
        %v4627 = vlaneseq
        %v4628 = vshrl.u32 %v4627, 7
        %v4629 = vsub.s32 0, %v4628
        %v4630 = vrot.slane %v4289, %v4629
        %4632 = vrot.lane.b32.xlu0 %v4630, 64
        %v4633 = vpop.permute.xlu0 %4632
        %v4635 = vmul.f32 %v4626, %v4633
        %v4636 = vlaneseq
        %v4637 = vshrl.u32 %v4636, 7
        %v4638 = vsub.s32 0, %v4637
        %v4639 = vrot.slane %v4290, %v4638
        %4641 = vrot.lane.b32.xlu0 %v4639, 64
        %v4642 = vpop.permute.xlu0 %4641
        %v4644 = vadd.f32 %v4635, %v4642
        %v4645 = vmax.f32 %v4644, 0.0
        %v4646 = vld [vmem:[#allocation8] sm:$0xf]
        %v4647 = vld [vmem:[#allocation8] sm:$0x1]
        %v4649 = vshrl.u32 %v4647, 16
        %v4651 = vrot.slane %v4649, 7
        %v4652 = vshll.u32 %v4647, 16
        %v4654 = vor.u32 %v4651, %v4652
        %4655 = vrot.lane.b32.xlu0 %v4654, 48
        %v4656 = vpop.permute.xlu0 %4655
        %v4657 = vrot.slane %v4656, 6
        %v4658 = vsel %vm3605, %v4657, %v4656
        %v4660 = vmax.bf16 %v4646, %v4658
        %v4661 = vld [vmem:[#allocation8] sm:$0x5]
        %v4663 = vshrl.u32 %v4661, 16
        %v4665 = vrot.slane %v4663, 7
        %v4666 = vshll.u32 %v4661, 16
        %v4668 = vor.u32 %v4665, %v4666
        %v4670 = vmax.bf16 %v4660, %v4668
        %4671 = vrot.lane.b32.xlu0 %v4668, 80
        %v4672 = vpop.permute.xlu0 %4671
        %v4673 = vrot.slane %v4672, 2
        %vm4674 = vcmask 654336
        %v4675 = vsel %vm4674, %v4672, %v4673
        %v4677 = vmax.bf16 %v4670, %v4675
        %v4678 = vld [vmem:[#allocation8] sm:$0x3]
        %4680 = vrot.lane.b32.xlu0 %v4678, 48
        %v4681 = vpop.permute.xlu0 %4680
        %v4682 = vrot.slane %v4681, 6
        %v4683 = vsel %vm3605, %v4682, %v4681
        %v4685 = vmax.bf16 %v4677, %v4683
        %4687 = vrot.lane.b32.xlu0 %v4646, 80
        %v4688 = vpop.permute.xlu0 %4687
        %v4689 = vrot.slane %v4688, 2
        %v4690 = vsel %vm4674, %v4688, %v4689
        %v4692 = vmax.bf16 %v4685, %v4690
        %v4693 = vld [vmem:[#allocation8] sm:$0x2]
        %v4695 = vshrl.u32 %v4693, 16
        %v4697 = vrot.slane %v4695, 6
        %v4698 = vshll.u32 %v4693, 16
        %v4700 = vrot.slane %v4698, 7
        %v4701 = vor.u32 %v4697, %v4700
        %v4702 = vrot.slane %v4701, 2
        %4703 = vrot.lane.b32.xlu0 %v4702, 48
        %v4704 = vpop.permute.xlu0 %4703
        %v4705 = vrot.slane %v4704, 6
        %v4706 = vsel %vm3605, %v4705, %v4704
        %v4708 = vmax.bf16 %v4692, %v4706
        %v4709 = vld [vmem:[#allocation8] sm:$0xa]
        %v4711 = vshrl.u32 %v4709, 16
        %v4713 = vrot.slane %v4711, 6
        %v4714 = vshll.u32 %v4709, 16
        %v4716 = vrot.slane %v4714, 7
        %v4717 = vor.u32 %v4713, %v4716
        %v4718 = vrot.slane %v4717, 2
        %v4720 = vmax.bf16 %v4708, %v4718
        %4721 = vrot.lane.b32.xlu0 %v4718, 80
        %v4722 = vpop.permute.xlu0 %4721
        %v4723 = vrot.slane %v4722, 2
        %v4724 = vsel %vm4674, %v4722, %v4723
        %v4726 = vmax.bf16 %v4720, %v4724
        %v4727 = vld [vmem:[%s14 + $0x10] sm:$0x5]
        %v4728 = vld [vmem:[%s14 + $0x11] sm:$0x5]
        %v4729 = vld [vmem:[%s13] sm:$0xf]
        %v4730 = vld [vmem:[%s13 + $0x4] sm:$0xf]
        %v4731 = vld [vmem:[%s13 + $0x8] sm:$0xf]
        %v4732 = vld [vmem:[%s13 + $0xc] sm:$0xf]
        %v4733 = vld [vmem:[%s13 + $0x10] sm:$0xf]
        %v4734 = vld [vmem:[%s13 + $0x14] sm:$0xf]
        %v4735 = vld [vmem:[%s13 + $0x18] sm:$0xf]
        %v4736 = vld [vmem:[%s13 + $0x1c] sm:$0xf]
        %v4737 = vld [vmem:[%s13 + $0x20] sm:$0xf]
        %v4738 = vld [vmem:[%s13 + $0x24] sm:$0xf]
        %v4739 = vld [vmem:[%s13 + $0x28] sm:$0xf]
        %v4740 = vld [vmem:[%s13 + $0x2c] sm:$0xf]
        %v4743 = vunpack.c.l.s4 1983009808
        %v4744 = vunpack.c.0.s8 %v4743
        %v4745 = vlaneseq
        %v4746 = vshrl.u32 %v4745, 7
        %v4747 = vsub.s32 %v4744, %v4746
        %v4748 = vrot.slane %v4726, %v4747
        %v4749 = vcombine.high %v4748, %v4748
        %v4751 = vshrl.u32 %v4748, 16
        %v4753 = vshll.u32 %v4748, 16
        %v4755 = vrot.slane %v4753, 1
        %v4756 = vor.u32 %v4751, %v4755
        %v4758 = vshrl.u32 %v4749, 16
        %v4760 = vshll.u32 %v4749, 16
        %v4762 = vrot.slane %v4760, 1
        %v4763 = vor.u32 %v4758, %v4762
        %4764 = vrot.lane.b32.xlu0 %v4756, 80
        %v4765 = vpop.permute.xlu0 %4764
        %4766 = vrot.lane.b32.xlu0 %v4763, 80
        %v4767 = vpop.permute.xlu0 %4766
        %v4768 = vsel %vm4674, %v4765, %v4767
        %v4781 = vunpack.c.l.b16 %v4729
        %v4782 = vunpack.c.l.b16 %v4730
        %v4783 = vunpack.c.l.b16 %v4731
        %v4784 = vunpack.c.l.b16 %v4732
        %v4785 = vunpack.c.l.b16 %v4733
        %v4786 = vunpack.c.l.b16 %v4734
        %v4787 = vunpack.c.l.b16 %v4735
        %v4788 = vunpack.c.l.b16 %v4736
        %v4789 = vunpack.c.l.b16 %v4737
        %v4790 = vunpack.c.l.b16 %v4738
        %v4791 = vunpack.c.l.b16 %v4739
        %v4792 = vunpack.c.l.b16 %v4740
        %v4793 = vpack.c.b16 %v4782, %v4781
        %v4794 = vpack.c.b16 %v4784, %v4783
        %v4795 = vpack.c.b16 %v4786, %v4785
        %v4796 = vpack.c.b16 %v4788, %v4787
        %v4797 = vpack.c.b16 %v4790, %v4789
        %v4798 = vpack.c.b16 %v4792, %v4791
        %v4806 = vsel %vm3694, %v4768, 0
        %4808 = vmatprep.subr.bf16.mxu0 0
        %4809 = vmatpush1.bf16.msra.mxu0 %v4793
        %4810 = vmatprep.subr.bf16.mxu0 0
        %4811 = vmatpush1.bf16.msra.mxu0 %v4794
        %4812 = vmatprep.subr.bf16.mxu0 0
        %4813 = vmatpush1.bf16.msra.mxu0 %v4795
        %4814 = vmatprep.subr.bf16.mxu0 0
        %4815 = vmatpush1.bf16.msra.mxu0 %v4796
        %4816 = vmatprep.subr.bf16.mxu0 0
        %4817 = vmatpush1.bf16.msra.mxu0 %v4797
        %4818 = vmatprep.subr.bf16.mxu0 0
        %4819 = vmatpush1.bf16.msra.mxu0 %v4798
        %4820 = vmatprep.subr.bf16.mxu0 0
        %4821 = vmatpush1.bf16.msra.mxu0 0
        %4822 = vmatprep.subr.bf16.mxu0 0
        %4823 = vmatpush1.bf16.msra.mxu0 0
        %4824 = vmatprep.subr.bf16.mxu0 0
        %4825 = vmatpush1.bf16.msra.mxu0 0
        %4826 = vmatprep.subr.bf16.mxu0 0
        %4827 = vmatpush1.bf16.msra.mxu0 0
        %4828 = vmatprep.subr.bf16.mxu0 0
        %4829 = vmatpush1.bf16.msra.mxu0 0
        %4830 = vmatprep.subr.bf16.mxu0 0
        %4831 = vmatpush1.bf16.msra.mxu0 0
        %4832 = vmatprep.subr.bf16.mxu0 0
        %4833 = vmatpush1.bf16.msra.mxu0 0
        %4834 = vmatprep.subr.bf16.mxu0 0
        %4835 = vmatpush1.bf16.msra.mxu0 0
        %4836 = vmatprep.subr.bf16.mxu0 0
        %4837 = vmatpush1.bf16.msra.mxu0 0
        %4838 = vmatprep.subr.bf16.mxu0 0
        %4839 = vmatpush1.bf16.msra.mxu0 0
        %4840 = vmatprep.mubr.bf16.mxu0 0
        %4841 = vmatmul.mubr.bf16.gmra.mrb[0].mxu0 %v4806
        %v4842 = vpop.f32.mrb[0].mxu0
        %v4843 = vadd.f32 0.0, %v4842
        %v4844 = vpop.f32.mrb[0].mxu0
        %v4845 = vpop.f32.mrb[0].mxu0
        %v4846 = vpop.f32.mrb[0].mxu0
        %4847 = vdwg.mxu0
        %v4849 = vlaneseq
        %v4850 = vshrl.u32 %v4849, 7
        %v4851 = vsub.s32 0, %v4850
        %v4852 = vrot.slane %v4727, %v4851
        %v4853 = vlaneseq
        %v4854 = vshrl.u32 %v4853, 7
        %v4855 = vsub.s32 2, %v4854
        %v4856 = vrot.slane %v4727, %v4855
        %v4859 = vlaneseq
        %v4860 = vshrl.u32 %v4859, 7
        %v4861 = vsub.s32 0, %v4860
        %v4862 = vrot.slane %v4852, %v4861
        %v4863 = vlaneseq
        %v4864 = vshrl.u32 %v4863, 7
        %v4865 = vsub.s32 0, %v4864
        %v4866 = vrot.slane %v4856, %v4865
        %4869 = vrot.lane.b32.xlu0 %v4862, 32
        %v4870 = vpop.permute.xlu0 %4869
        %4871 = vrot.lane.b32.xlu0 %v4866, 32
        %v4872 = vpop.permute.xlu0 %4871
        %v4873 = vsel %vm1199, %v4870, %v4872
        %v4875 = vmul.f32 %v4843, %v4873
        %v4877 = vlaneseq
        %v4878 = vshrl.u32 %v4877, 7
        %v4879 = vsub.s32 0, %v4878
        %v4880 = vrot.slane %v4728, %v4879
        %v4881 = vlaneseq
        %v4882 = vshrl.u32 %v4881, 7
        %v4883 = vsub.s32 2, %v4882
        %v4884 = vrot.slane %v4728, %v4883
        %v4887 = vlaneseq
        %v4888 = vshrl.u32 %v4887, 7
        %v4889 = vsub.s32 0, %v4888
        %v4890 = vrot.slane %v4880, %v4889
        %v4891 = vlaneseq
        %v4892 = vshrl.u32 %v4891, 7
        %v4893 = vsub.s32 0, %v4892
        %v4894 = vrot.slane %v4884, %v4893
        %4897 = vrot.lane.b32.xlu0 %v4890, 32
        %v4898 = vpop.permute.xlu0 %4897
        %4899 = vrot.lane.b32.xlu0 %v4894, 32
        %v4900 = vpop.permute.xlu0 %4899
        %v4901 = vsel %vm1199, %v4898, %v4900
        %v4903 = vadd.f32 %v4875, %v4901
        %v4904 = vmax.f32 %v4903, 0.0
        %4906 = vrot.lane.b32.xlu0 %v3765, 112
        %v4907 = vpop.permute.xlu0 %4906
        %v4909 = vadd.f32 %v3765, %v4907
        %v4910 = vrot.slane %v3765, 1
        %v4912 = vadd.f32 %v4909, %v4910
        %4913 = vrot.lane.b32.xlu0 %v4910, 112
        %v4914 = vpop.permute.xlu0 %4913
        %v4916 = vadd.f32 %v4912, %v4914
        %v4917 = vmul.f32 %v4916, 0.25
        %vm4918 = vcmask 122880
        %4919 = vst.msk [vmem:[%s486] sm:$0x1] %vm4918, %v4917
        %4921 = vrot.lane.b32.xlu0 %v4288, 96
        %v4922 = vpop.permute.xlu0 %4921
        %v4924 = vadd.f32 %v4288, %v4922
        %v4925 = vrot.slane %v4288, 1
        %v4927 = vadd.f32 %v4924, %v4925
        %4928 = vrot.lane.b32.xlu0 %v4925, 96
        %v4929 = vpop.permute.xlu0 %4928
        %v4931 = vadd.f32 %v4927, %v4929
        %v4932 = vmul.f32 %v4931, 0.25
        %4934 = vrot.lane.b32.xlu0 %v4932, 16
        %v4935 = vpop.permute.xlu0 %4934
        %vm4937 = vcmask 385152
        %4938 = vst.msk [vmem:[%s486] sm:$0x1] %vm4937, %v4935
        %4940 = vrot.lane.b32.xlu0 %v4645, 112
        %v4941 = vpop.permute.xlu0 %4940
        %v4943 = vadd.f32 %v4645, %v4941
        %v4944 = vrot.slane %v4645, 1
        %v4946 = vadd.f32 %v4943, %v4944
        %4947 = vrot.lane.b32.xlu0 %v4944, 112
        %v4948 = vpop.permute.xlu0 %4947
        %v4950 = vadd.f32 %v4946, %v4948
        %v4951 = vmul.f32 %v4950, 0.25
        %4953 = vrot.lane.b32.xlu0 %v4951, 48
        %v4954 = vpop.permute.xlu0 %4953
        %vm4956 = vcmask 516480
        %4957 = vst.msk [vmem:[%s486] sm:$0x1] %vm4956, %v4954
        %4959 = vrot.lane.b32.xlu0 %v4904, 96
        %v4960 = vpop.permute.xlu0 %4959
        %v4962 = vadd.f32 %v4904, %v4960
        %v4963 = vrot.slane %v4904, 1
        %v4965 = vadd.f32 %v4962, %v4963
        %4966 = vrot.lane.b32.xlu0 %v4963, 96
        %v4967 = vpop.permute.xlu0 %4966
        %v4969 = vadd.f32 %v4965, %v4967
        %v4970 = vmul.f32 %v4969, 0.25
        %4972 = vrot.lane.b32.xlu0 %v4970, 64
        %v4973 = vpop.permute.xlu0 %4972
        %vm4975 = vcmask 778752
        %4976 = vst.msk [vmem:[%s486] sm:$0x1] %vm4975, %v4973
        %s4977 = sand.u32 %s357, 1
        %s4978 = scalar_lea.sflag [#allocation12], %s4977
        %s4979 = sand.u32 %s357, 1
        %s4980 = scalar_lea.vmem [#allocation11], %s4979
        // Predicated region
        $region81: #{apply_fn.1} parent=79 // pred_check
          %p4981 = pneg %p367
        $region82: #{apply_fn.1} parent=79 // pred_check_branch
          %4983 = sbr.rel (%p4981) target = $region84
        $region83: #{apply_fn.1} parent=79 // pred_region
          %s4985 = ssub.s32 16, 16
          %4986 = vsyncadd %s4978, %s4985
          %s4987 = smul.addr %s29, 16
          %s4988 = scalar_lea.hbm %s15, %s4987
          %s4990 = sshll.u32 %s4980, 4
          %s4991 = int_to_ptr.vmem [resolvable:$true] %s4990
          %4993 = dma.vmem_to_hbm [thread:$0]  %s4991, 16, %s4988, %s4978
        $region84: #{apply_fn.1} parent=79 // pred_fallthru
          _
      $region80: #{apply_fn.1} parent=5 // pred_fallthru
        _
      %p4994 = scmp.le.s32.totalorder 2, %s24
      // Predicated region
      $region85: #{apply_fn.1} parent=5 // pred_check
        %p4995 = pneg %p4994
      $region86: #{apply_fn.1} parent=5 // pred_check_branch
        %4997 = sbr.rel (%p4995) target = $region88
      $region87: #{apply_fn.1} parent=5 // pred_region
        %s4998 = ssub.s32 %s24, 2
        // Predicated region
        $region89: #{apply_fn.1} parent=87 // pred_check
          %p4999 = pneg %p373
        $region90: #{apply_fn.1} parent=87 // pred_check_branch
          %5001 = sbr.rel (%p4999) target = $region92
        $region91: #{apply_fn.1} parent=87 // pred_region
          %s5002 = sand.u32 %s358, 1
          %s5003 = scalar_lea.sflag [#allocation12], %s5002
          %s5004 = sand.u32 %s358, 1
          %s5005 = scalar_lea.vmem [#allocation11], %s5004
          %5006 = dma.done %s5003, 16
        $region92: #{apply_fn.1} parent=87 // pred_fallthru
          _
      $region88: #{apply_fn.1} parent=5 // pred_fallthru
        _
    $region6: #{apply_fn.1} parent=1 // loop_footer
      %s28 = sadd.s32 1, %s24
    $region7: #{apply_fn.1} parent=1 // loop_footer_branch
      %23 = sbr.rel target = $region3
    $region8: #{apply_fn.1} parent=1 // loop_exit
      _
    %5007 = vsyncpa [#allocation12], 1
    %s5008 = scalar_lea.sflag [#allocation12], 1
    %5009 = vsyncpa %s5008, 1

</llo_original>
